<compile_context>
chip_gen: v7x
topology: tpu7x:2x2x1
jax: 0.10.0
libtpu: 0.0.40
codegen_flags: <defaults>
</compile_context>

<pallas_src>
import functools

import jax
import jax.numpy as jnp
from jax.experimental import pallas as pl
from jax.experimental.pallas import tpu as pltpu

# Layer widths of the PyTorch module: input_size -> 1024 -> ... -> 8 -> output_size
HIDDEN_SIZES = [1024, 512, 256, 128, 64, 32, 16, 8]

_LANE = 128      # lane width: every feature dim is padded up to a multiple of this
_SUBLANE = 8     # sublane width: batch tile must be a multiple of this
_TB_MAX = 512    # max batch tile (VMEM stays at a few MB; amortizes ~0.35us/step grid overhead)


def _round_up(x, m):
    return ((x + m - 1) // m) * m


# ---------------------------------------------------------------------------
# One-time parameter preparation (hoisted out of the per-call forward path).
# ---------------------------------------------------------------------------
def prepare_params(params):
    """Pad every layer dim below 128 up to 128 lanes, cast weights to bf16, keep biases f32,
    and stack the uniform (128,128) tail layers into single tensors.

    params: flat tuple (w1, b1, ..., w9, b9) with w_i (in_i, out_i), b_i (1, out_i) or (out_i,).
    Returns (prepared_arrays_dict, static_meta_dict).
    """
    n_layers = len(params) // 2
    big_w, big_b, tail_w, tail_b = [], [], [], []
    layer_spec = []                              # per layer: (is_tail, position in its list)
    for i in range(n_layers):
        w = jnp.asarray(params[2 * i], jnp.float32)
        b = jnp.asarray(params[2 * i + 1], jnp.float32).reshape(1, -1)
        d_in, d_out = w.shape
        in_pad = _round_up(d_in, _LANE)
        out_pad = _round_up(d_out, _LANE)
        # Zero padding keeps results exact: padded weight rows/cols and bias cols are 0; ReLU(0)=0.
        w_p = jnp.pad(w, ((0, in_pad - d_in), (0, out_pad - d_out))).astype(jnp.bfloat16)
        b_p = jnp.pad(b, ((0, 0), (0, out_pad - d_out)))
        if (in_pad, out_pad) == (_LANE, _LANE):
            layer_spec.append((True, len(tail_w)))
            tail_w.append(w_p)
            tail_b.append(b_p)
        else:
            layer_spec.append((False, len(big_w)))
            big_w.append(w_p)
            big_b.append(b_p)
    prepared = {
        "big_w": tuple(big_w),
        "big_b": tuple(big_b),
        "tail_w": jnp.stack(tail_w) if tail_w else None,   # (n_tail, 128, 128) bf16
        "tail_b": jnp.stack(tail_b) if tail_b else None,   # (n_tail, 1, 128)   f32
    }
    meta = {
        "layer_spec": tuple(layer_spec),
        "out_features": int(params[-1].shape[-1]),
    }
    return prepared, meta


# ---------------------------------------------------------------------------
# Kernel: fused 9-layer MLP forward for one batch tile.
# ---------------------------------------------------------------------------
def mlp_kernel(x_ref, *refs, layer_spec, n_big, has_tail):
    """refs = (w_big0, b_big0, ..., w_big{n-1}, b_big{n-1}, [tail_w, tail_b], out).

    Weights bf16, biases f32; matmuls accumulate in f32 on the MXU; final layer has no ReLU.
    """
    out_ref = refs[-1]
    big_refs = refs[:2 * n_big]
    tail_w_ref = refs[2 * n_big] if has_tail else None
    tail_b_ref = refs[2 * n_big + 1] if has_tail else None

    h = x_ref[...]                                      # (TB, in_pad0) bf16 (cast in wrapper)
    n_layers = len(layer_spec)
    for li, (is_tail, pos) in enumerate(layer_spec):
        if is_tail:
            w = tail_w_ref[pos]                         # (128, 128) bf16
            b = tail_b_ref[pos]                         # (1, 128)   f32
        else:
            w = big_refs[2 * pos][...]                  # (in_pad, out_pad) bf16
            b = big_refs[2 * pos + 1][...]              # (1, out_pad)      f32
        acc = jnp.dot(h, w, preferred_element_type=jnp.float32) + b
        if li < n_layers - 1:
            h = jnp.maximum(acc, 0.0).astype(jnp.bfloat16)   # ReLU in f32, bf16 for next MXU op
        else:
            out_ref[...] = acc.astype(out_ref.dtype)


# ---------------------------------------------------------------------------
# Jitted per-call forward: only activation prep happens before the pallas_call.
# ---------------------------------------------------------------------------
@functools.partial(jax.jit, static_argnames=("layer_spec", "out_features"))
def mlp_forward(x, prepared, *, layer_spec, out_features):
    big_w, big_b = prepared["big_w"], prepared["big_b"]
    tail_w, tail_b = prepared["tail_w"], prepared["tail_b"]
    has_tail = tail_w is not None
    n_big = len(big_w)

    def _wshape(spec):
        is_tail, pos = spec
        return (_LANE, _LANE) if is_tail else tuple(big_w[pos].shape)

    in_pad0 = _wshape(layer_spec[0])[0]
    out_pad = _wshape(layer_spec[-1])[1]

    B, F = x.shape

    # ---- batch tiling: choose step count first, then a balanced, 8-aligned tile ----
    steps = pl.cdiv(B, _TB_MAX)
    if B >= 2 * _SUBLANE:
        steps = max(steps, 2)        # give v7x's two TensorCores something to split
        steps += steps % 2           # even step count balances the two cores
    tb = _round_up(pl.cdiv(B, steps), _SUBLANE)
    grid_b = pl.cdiv(B, tb)
    b_padded = grid_b * tb

    # ---- activation prep (cheap, per call): bf16 cast + lane/batch zero padding ----
    x = x.astype(jnp.bfloat16)
    x = jnp.pad(x, ((0, b_padded - B), (0, in_pad0 - F)))

    flat = [x]
    in_specs = [pl.BlockSpec((tb, in_pad0), lambda i: (i, 0))]
    for w, b in zip(big_w, big_b):
        flat += [w, b]
        # Constant block index across the grid -> weights/biases stay VMEM-resident (no re-DMA).
        in_specs.append(pl.BlockSpec(tuple(w.shape), lambda i: (0, 0)))
        in_specs.append(pl.BlockSpec(tuple(b.shape), lambda i: (0, 0)))
    if has_tail:
        flat += [tail_w, tail_b]
        in_specs.append(pl.BlockSpec(tuple(tail_w.shape), lambda i: (0, 0, 0)))
        in_specs.append(pl.BlockSpec(tuple(tail_b.shape), lambda i: (0, 0, 0)))
    out_spec = pl.BlockSpec((tb, out_pad), lambda i: (i, 0))   # lane-dense (out_pad = 128)

    dims = [_wshape(s) for s in layer_spec]
    flops = 2 * b_padded * sum(di * do for di, do in dims)
    bytes_accessed = (sum(di * do * 2 for di, do in dims)      # bf16 weights
                      + sum(do * 4 for _, do in dims)          # f32 biases
                      + b_padded * in_pad0 * 2                 # bf16 input
                      + b_padded * out_pad * 4)                # f32 output

    kernel = functools.partial(mlp_kernel, layer_spec=layer_spec,
                               n_big=n_big, has_tail=has_tail)

    out = pl.pallas_call(
        kernel,
        out_shape=jax.ShapeDtypeStruct((b_padded, out_pad), jnp.float32),
        grid_spec=pltpu.PrefetchScalarGridSpec(
            num_scalar_prefetch=0,
            grid=(grid_b,),
            in_specs=in_specs,
            out_specs=out_spec,
        ),
        compiler_params=pltpu.CompilerParams(
            dimension_semantics=("parallel",),     # batch grid shards across v7x's 2 TCs
            vmem_limit_bytes=32 * 1024 * 1024,     # explicit headroom on every generation
        ),
        cost_estimate=pl.CostEstimate(
            flops=flops, transcendentals=0, bytes_accessed=bytes_accessed),
    )(*flat)
    return out[:B, :out_features]


# ---------------------------------------------------------------------------
# Parameter init + pure-JAX reference (mirrors the PyTorch Model layer shapes).
# ---------------------------------------------------------------------------
def init_params(key, input_size, output_size):
    sizes = [input_size] + HIDDEN_SIZES + [output_size]
    params = []
    for i in range(len(sizes) - 1):
        fan_in, fan_out = sizes[i], sizes[i + 1]
        key, wk, bk = jax.random.split(key, 3)
        bound = 1.0 / jnp.sqrt(jnp.float32(fan_in))
        w = jax.random.uniform(wk, (fan_in, fan_out), jnp.float32, -bound, bound)
        b = jax.random.uniform(bk, (1, fan_out), jnp.float32, -bound, bound)
        params += [w, b]
    return tuple(params)


def reference_forward(x, params, weight_dtype=jnp.float32):
    """Pure-JAX reference. weight_dtype=bf16 reproduces the kernel's numerics."""
    h = x
    n_layers = len(params) // 2
    for i in range(n_layers):
        w = params[2 * i].astype(weight_dtype)
        b = params[2 * i + 1]
        h = jnp.dot(h.astype(w.dtype), w, preferred_element_type=jnp.float32) + b
        if i < n_layers - 1:
            h = jnp.maximum(h, 0.0)
    return h


if __name__ == "__main__":
    input_size, output_size, batch = 64, 10, 8

    key = jax.random.PRNGKey(0)
    key, xk = jax.random.split(key)
    x = jax.random.normal(xk, (batch, input_size), jnp.float32)
    params = init_params(key, input_size, output_size)

    # One-time parameter prep (deliberately outside the per-call jitted path).
    prepared, meta = prepare_params(params)

    out = mlp_forward(x, prepared,
                      layer_spec=meta["layer_spec"],
                      out_features=meta["out_features"])
    out = jax.block_until_ready(out)
    assert out.shape == (batch, output_size)

    # Check against a reference with matching bf16-weight numerics (tight tolerance) ...
    ref_bf16 = reference_forward(x, params, weight_dtype=jnp.bfloat16)
    assert jnp.allclose(out, ref_bf16, atol=2e-2, rtol=2e-2), \
        float(jnp.max(jnp.abs(out - ref_bf16)))
    # ... and against the full-f32 PyTorch-equivalent reference (looser: bf16 weights by design).
    ref_f32 = reference_forward(x, params, weight_dtype=jnp.float32)
    assert jnp.allclose(out, ref_f32, atol=1e-1, rtol=1e-1), \
        float(jnp.max(jnp.abs(out - ref_f32)))

    print("KERNEL_OK")
</pallas_src>

<mosaic_0001>
module attributes {stable_mosaic.version = 11 : i64} {
  func.func @mlp_kernel(%arg0: i32, %arg1: memref<8x128xbf16, #tpu.memory_space<vmem>>, %arg2: memref<128x1024xbf16, #tpu.memory_space<vmem>>, %arg3: memref<1x1024xf32, #tpu.memory_space<vmem>>, %arg4: memref<1024x512xbf16, #tpu.memory_space<vmem>>, %arg5: memref<1x512xf32, #tpu.memory_space<vmem>>, %arg6: memref<512x256xbf16, #tpu.memory_space<vmem>>, %arg7: memref<1x256xf32, #tpu.memory_space<vmem>>, %arg8: memref<256x128xbf16, #tpu.memory_space<vmem>>, %arg9: memref<1x128xf32, #tpu.memory_space<vmem>>, %arg10: memref<5x128x128xbf16, #tpu.memory_space<vmem>>, %arg11: memref<5x1x128xf32, #tpu.memory_space<vmem>>, %arg12: memref<8x128xf32, #tpu.memory_space<vmem>>) attributes {dimension_semantics = [#tpu.dimension_semantics<parallel>], iteration_bounds = array<i64: 1>, scalar_prefetch = 0 : i64, scratch_operands = 0 : i64, tpu.core_type = #tpu.core_type<tc>, window_params = [{transform_indices = @transform_0, window_bounds = array<i64: 8, 128>}, {pipeline_mode = #tpu.pipeline_mode<synchronous>, transform_indices = @transform_1, window_bounds = array<i64: 128, 1024>}, {pipeline_mode = #tpu.pipeline_mode<synchronous>, transform_indices = @transform_2, window_bounds = array<i64: 1, 1024>}, {pipeline_mode = #tpu.pipeline_mode<synchronous>, transform_indices = @transform_3, window_bounds = array<i64: 1024, 512>}, {pipeline_mode = #tpu.pipeline_mode<synchronous>, transform_indices = @transform_4, window_bounds = array<i64: 1, 512>}, {pipeline_mode = #tpu.pipeline_mode<synchronous>, transform_indices = @transform_5, window_bounds = array<i64: 512, 256>}, {pipeline_mode = #tpu.pipeline_mode<synchronous>, transform_indices = @transform_6, window_bounds = array<i64: 1, 256>}, {pipeline_mode = #tpu.pipeline_mode<synchronous>, transform_indices = @transform_7, window_bounds = array<i64: 256, 128>}, {pipeline_mode = #tpu.pipeline_mode<synchronous>, transform_indices = @transform_8, window_bounds = array<i64: 1, 128>}, {pipeline_mode = #tpu.pipeline_mode<synchronous>, transform_indices = @transform_9, window_bounds = array<i64: 5, 128, 128>}, {pipeline_mode = #tpu.pipeline_mode<synchronous>, transform_indices = @transform_10, window_bounds = array<i64: 5, 1, 128>}, {transform_indices = @transform_11, window_bounds = array<i64: 8, 128>}]} {
    %c0 = arith.constant 0 : index
    %c0_0 = arith.constant 0 : index
    %0 = vector.load %arg1[%c0, %c0_0] : memref<8x128xbf16, #tpu.memory_space<vmem>>, vector<8x128xbf16>
    %c0_1 = arith.constant 0 : index
    %c0_2 = arith.constant 0 : index
    %1 = vector.load %arg2[%c0_1, %c0_2] : memref<128x1024xbf16, #tpu.memory_space<vmem>>, vector<128x1024xbf16>
    %c0_3 = arith.constant 0 : index
    %c0_4 = arith.constant 0 : index
    %2 = vector.load %arg3[%c0_3, %c0_4] : memref<1x1024xf32, #tpu.memory_space<vmem>>, vector<1x1024xf32>
    %cst = arith.constant dense<0.000000e+00> : vector<8x1024xf32>
    %3 = tpu.matmul %0, %1, %cst {dimension_numbers = #tpu.dot_dimension_numbers<[1], [0], [0], [1], [0, 0, 1, 1], [], []>} : vector<8x128xbf16>, vector<128x1024xbf16>, vector<8x1024xf32> -> vector<8x1024xf32>
    %4 = vector.broadcast %2 : vector<1x1024xf32> to vector<8x1024xf32>
    %5 = arith.addf %3, %4 : vector<8x1024xf32>
    %cst_5 = arith.constant 0.000000e+00 : f32
    %6 = vector.broadcast %cst_5 : f32 to vector<8x1024xf32>
    %7 = arith.maximumf %5, %6 : vector<8x1024xf32>
    %8 = arith.truncf %7 : vector<8x1024xf32> to vector<8x1024xbf16>
    %c0_6 = arith.constant 0 : index
    %c0_7 = arith.constant 0 : index
    %9 = vector.load %arg4[%c0_6, %c0_7] : memref<1024x512xbf16, #tpu.memory_space<vmem>>, vector<1024x512xbf16>
    %c0_8 = arith.constant 0 : index
    %c0_9 = arith.constant 0 : index
    %10 = vector.load %arg5[%c0_8, %c0_9] : memref<1x512xf32, #tpu.memory_space<vmem>>, vector<1x512xf32>
    %cst_10 = arith.constant dense<0.000000e+00> : vector<8x512xf32>
    %11 = tpu.matmul %8, %9, %cst_10 {dimension_numbers = #tpu.dot_dimension_numbers<[1], [0], [0], [1], [0, 0, 1, 1], [], []>} : vector<8x1024xbf16>, vector<1024x512xbf16>, vector<8x512xf32> -> vector<8x512xf32>
    %12 = vector.broadcast %10 : vector<1x512xf32> to vector<8x512xf32>
    %13 = arith.addf %11, %12 : vector<8x512xf32>
    %cst_11 = arith.constant 0.000000e+00 : f32
    %14 = vector.broadcast %cst_11 : f32 to vector<8x512xf32>
    %15 = arith.maximumf %13, %14 : vector<8x512xf32>
    %16 = arith.truncf %15 : vector<8x512xf32> to vector<8x512xbf16>
    %c0_12 = arith.constant 0 : index
    %c0_13 = arith.constant 0 : index
    %17 = vector.load %arg6[%c0_12, %c0_13] : memref<512x256xbf16, #tpu.memory_space<vmem>>, vector<512x256xbf16>
    %c0_14 = arith.constant 0 : index
    %c0_15 = arith.constant 0 : index
    %18 = vector.load %arg7[%c0_14, %c0_15] : memref<1x256xf32, #tpu.memory_space<vmem>>, vector<1x256xf32>
    %cst_16 = arith.constant dense<0.000000e+00> : vector<8x256xf32>
    %19 = tpu.matmul %16, %17, %cst_16 {dimension_numbers = #tpu.dot_dimension_numbers<[1], [0], [0], [1], [0, 0, 1, 1], [], []>} : vector<8x512xbf16>, vector<512x256xbf16>, vector<8x256xf32> -> vector<8x256xf32>
    %20 = vector.broadcast %18 : vector<1x256xf32> to vector<8x256xf32>
    %21 = arith.addf %19, %20 : vector<8x256xf32>
    %cst_17 = arith.constant 0.000000e+00 : f32
    %22 = vector.broadcast %cst_17 : f32 to vector<8x256xf32>
    %23 = arith.maximumf %21, %22 : vector<8x256xf32>
    %24 = arith.truncf %23 : vector<8x256xf32> to vector<8x256xbf16>
    %c0_18 = arith.constant 0 : index
    %c0_19 = arith.constant 0 : index
    %25 = vector.load %arg8[%c0_18, %c0_19] : memref<256x128xbf16, #tpu.memory_space<vmem>>, vector<256x128xbf16>
    %c0_20 = arith.constant 0 : index
    %c0_21 = arith.constant 0 : index
    %26 = vector.load %arg9[%c0_20, %c0_21] : memref<1x128xf32, #tpu.memory_space<vmem>>, vector<1x128xf32>
    %cst_22 = arith.constant dense<0.000000e+00> : vector<8x128xf32>
    %27 = tpu.matmul %24, %25, %cst_22 {dimension_numbers = #tpu.dot_dimension_numbers<[1], [0], [0], [1], [0, 0, 1, 1], [], []>} : vector<8x256xbf16>, vector<256x128xbf16>, vector<8x128xf32> -> vector<8x128xf32>
    %28 = vector.broadcast %26 : vector<1x128xf32> to vector<8x128xf32>
    %29 = arith.addf %27, %28 : vector<8x128xf32>
    %cst_23 = arith.constant 0.000000e+00 : f32
    %30 = vector.broadcast %cst_23 : f32 to vector<8x128xf32>
    %31 = arith.maximumf %29, %30 : vector<8x128xf32>
    %32 = arith.truncf %31 : vector<8x128xf32> to vector<8x128xbf16>
    %c0_24 = arith.constant 0 : index
    %c0_25 = arith.constant 0 : index
    %c0_26 = arith.constant 0 : index
    %33 = vector.load %arg10[%c0_24, %c0_25, %c0_26] : memref<5x128x128xbf16, #tpu.memory_space<vmem>>, vector<1x128x128xbf16>
    %34 = vector.shape_cast %33 : vector<1x128x128xbf16> to vector<128x128xbf16>
    %c0_27 = arith.constant 0 : index
    %c0_28 = arith.constant 0 : index
    %c0_29 = arith.constant 0 : index
    %35 = vector.load %arg11[%c0_27, %c0_28, %c0_29] : memref<5x1x128xf32, #tpu.memory_space<vmem>>, vector<1x1x128xf32>
    %36 = vector.shape_cast %35 : vector<1x1x128xf32> to vector<1x128xf32>
    %cst_30 = arith.constant dense<0.000000e+00> : vector<8x128xf32>
    %37 = tpu.matmul %32, %34, %cst_30 {dimension_numbers = #tpu.dot_dimension_numbers<[1], [0], [0], [1], [0, 0, 1, 1], [], []>} : vector<8x128xbf16>, vector<128x128xbf16>, vector<8x128xf32> -> vector<8x128xf32>
    %38 = vector.broadcast %36 : vector<1x128xf32> to vector<8x128xf32>
    %39 = arith.addf %37, %38 : vector<8x128xf32>
    %cst_31 = arith.constant 0.000000e+00 : f32
    %40 = vector.broadcast %cst_31 : f32 to vector<8x128xf32>
    %41 = arith.maximumf %39, %40 : vector<8x128xf32>
    %42 = arith.truncf %41 : vector<8x128xf32> to vector<8x128xbf16>
    %c1 = arith.constant 1 : index
    %c0_32 = arith.constant 0 : index
    %c0_33 = arith.constant 0 : index
    %43 = vector.load %arg10[%c1, %c0_32, %c0_33] : memref<5x128x128xbf16, #tpu.memory_space<vmem>>, vector<1x128x128xbf16>
    %44 = vector.shape_cast %43 : vector<1x128x128xbf16> to vector<128x128xbf16>
    %c1_34 = arith.constant 1 : index
    %c0_35 = arith.constant 0 : index
    %c0_36 = arith.constant 0 : index
    %45 = vector.load %arg11[%c1_34, %c0_35, %c0_36] : memref<5x1x128xf32, #tpu.memory_space<vmem>>, vector<1x1x128xf32>
    %46 = vector.shape_cast %45 : vector<1x1x128xf32> to vector<1x128xf32>
    %cst_37 = arith.constant dense<0.000000e+00> : vector<8x128xf32>
    %47 = tpu.matmul %42, %44, %cst_37 {dimension_numbers = #tpu.dot_dimension_numbers<[1], [0], [0], [1], [0, 0, 1, 1], [], []>} : vector<8x128xbf16>, vector<128x128xbf16>, vector<8x128xf32> -> vector<8x128xf32>
    %48 = vector.broadcast %46 : vector<1x128xf32> to vector<8x128xf32>
    %49 = arith.addf %47, %48 : vector<8x128xf32>
    %cst_38 = arith.constant 0.000000e+00 : f32
    %50 = vector.broadcast %cst_38 : f32 to vector<8x128xf32>
    %51 = arith.maximumf %49, %50 : vector<8x128xf32>
    %52 = arith.truncf %51 : vector<8x128xf32> to vector<8x128xbf16>
    %c2 = arith.constant 2 : index
    %c0_39 = arith.constant 0 : index
    %c0_40 = arith.constant 0 : index
    %53 = vector.load %arg10[%c2, %c0_39, %c0_40] : memref<5x128x128xbf16, #tpu.memory_space<vmem>>, vector<1x128x128xbf16>
    %54 = vector.shape_cast %53 : vector<1x128x128xbf16> to vector<128x128xbf16>
    %c2_41 = arith.constant 2 : index
    %c0_42 = arith.constant 0 : index
    %c0_43 = arith.constant 0 : index
    %55 = vector.load %arg11[%c2_41, %c0_42, %c0_43] : memref<5x1x128xf32, #tpu.memory_space<vmem>>, vector<1x1x128xf32>
    %56 = vector.shape_cast %55 : vector<1x1x128xf32> to vector<1x128xf32>
    %cst_44 = arith.constant dense<0.000000e+00> : vector<8x128xf32>
    %57 = tpu.matmul %52, %54, %cst_44 {dimension_numbers = #tpu.dot_dimension_numbers<[1], [0], [0], [1], [0, 0, 1, 1], [], []>} : vector<8x128xbf16>, vector<128x128xbf16>, vector<8x128xf32> -> vector<8x128xf32>
    %58 = vector.broadcast %56 : vector<1x128xf32> to vector<8x128xf32>
    %59 = arith.addf %57, %58 : vector<8x128xf32>
    %cst_45 = arith.constant 0.000000e+00 : f32
    %60 = vector.broadcast %cst_45 : f32 to vector<8x128xf32>
    %61 = arith.maximumf %59, %60 : vector<8x128xf32>
    %62 = arith.truncf %61 : vector<8x128xf32> to vector<8x128xbf16>
    %c3 = arith.constant 3 : index
    %c0_46 = arith.constant 0 : index
    %c0_47 = arith.constant 0 : index
    %63 = vector.load %arg10[%c3, %c0_46, %c0_47] : memref<5x128x128xbf16, #tpu.memory_space<vmem>>, vector<1x128x128xbf16>
    %64 = vector.shape_cast %63 : vector<1x128x128xbf16> to vector<128x128xbf16>
    %c3_48 = arith.constant 3 : index
    %c0_49 = arith.constant 0 : index
    %c0_50 = arith.constant 0 : index
    %65 = vector.load %arg11[%c3_48, %c0_49, %c0_50] : memref<5x1x128xf32, #tpu.memory_space<vmem>>, vector<1x1x128xf32>
    %66 = vector.shape_cast %65 : vector<1x1x128xf32> to vector<1x128xf32>
    %cst_51 = arith.constant dense<0.000000e+00> : vector<8x128xf32>
    %67 = tpu.matmul %62, %64, %cst_51 {dimension_numbers = #tpu.dot_dimension_numbers<[1], [0], [0], [1], [0, 0, 1, 1], [], []>} : vector<8x128xbf16>, vector<128x128xbf16>, vector<8x128xf32> -> vector<8x128xf32>
    %68 = vector.broadcast %66 : vector<1x128xf32> to vector<8x128xf32>
    %69 = arith.addf %67, %68 : vector<8x128xf32>
    %cst_52 = arith.constant 0.000000e+00 : f32
    %70 = vector.broadcast %cst_52 : f32 to vector<8x128xf32>
    %71 = arith.maximumf %69, %70 : vector<8x128xf32>
    %72 = arith.truncf %71 : vector<8x128xf32> to vector<8x128xbf16>
    %c4 = arith.constant 4 : index
    %c0_53 = arith.constant 0 : index
    %c0_54 = arith.constant 0 : index
    %73 = vector.load %arg10[%c4, %c0_53, %c0_54] : memref<5x128x128xbf16, #tpu.memory_space<vmem>>, vector<1x128x128xbf16>
    %74 = vector.shape_cast %73 : vector<1x128x128xbf16> to vector<128x128xbf16>
    %c4_55 = arith.constant 4 : index
    %c0_56 = arith.constant 0 : index
    %c0_57 = arith.constant 0 : index
    %75 = vector.load %arg11[%c4_55, %c0_56, %c0_57] : memref<5x1x128xf32, #tpu.memory_space<vmem>>, vector<1x1x128xf32>
    %76 = vector.shape_cast %75 : vector<1x1x128xf32> to vector<1x128xf32>
    %cst_58 = arith.constant dense<0.000000e+00> : vector<8x128xf32>
    %77 = tpu.matmul %72, %74, %cst_58 {dimension_numbers = #tpu.dot_dimension_numbers<[1], [0], [0], [1], [0, 0, 1, 1], [], []>} : vector<8x128xbf16>, vector<128x128xbf16>, vector<8x128xf32> -> vector<8x128xf32>
    %78 = vector.broadcast %76 : vector<1x128xf32> to vector<8x128xf32>
    %79 = arith.addf %77, %78 : vector<8x128xf32>
    %c0_59 = arith.constant 0 : index
    %c0_60 = arith.constant 0 : index
    %80 = vector.load %arg12[%c0_59, %c0_60] : memref<8x128xf32, #tpu.memory_space<vmem>>, vector<8x128xf32>
    tpu.vector_store %arg12[%c0_59, %c0_60], %79 {strides = array<i32>} : memref<8x128xf32, #tpu.memory_space<vmem>>, vector<8x128xf32>,
    return
  }
  func.func @transform_0(%arg0: i32) -> (i32, i32) {
    %c0_i32 = arith.constant 0 : i32
    %c0_i32_0 = arith.constant 0 : i32
    return %arg0, %c0_i32 : i32, i32
  }
  func.func @transform_1(%arg0: i32) -> (i32, i32) {
    %c0_i32 = arith.constant 0 : i32
    %c0_i32_0 = arith.constant 0 : i32
    %c0_i32_1 = arith.constant 0 : i32
    return %c0_i32, %c0_i32_0 : i32, i32
  }
  func.func @transform_2(%arg0: i32) -> (i32, i32) {
    %c0_i32 = arith.constant 0 : i32
    %c0_i32_0 = arith.constant 0 : i32
    %c0_i32_1 = arith.constant 0 : i32
    return %c0_i32, %c0_i32_0 : i32, i32
  }
  func.func @transform_3(%arg0: i32) -> (i32, i32) {
    %c0_i32 = arith.constant 0 : i32
    %c0_i32_0 = arith.constant 0 : i32
    %c0_i32_1 = arith.constant 0 : i32
    return %c0_i32, %c0_i32_0 : i32, i32
  }
  func.func @transform_4(%arg0: i32) -> (i32, i32) {
    %c0_i32 = arith.constant 0 : i32
    %c0_i32_0 = arith.constant 0 : i32
    %c0_i32_1 = arith.constant 0 : i32
    return %c0_i32, %c0_i32_0 : i32, i32
  }
  func.func @transform_5(%arg0: i32) -> (i32, i32) {
    %c0_i32 = arith.constant 0 : i32
    %c0_i32_0 = arith.constant 0 : i32
    %c0_i32_1 = arith.constant 0 : i32
    return %c0_i32, %c0_i32_0 : i32, i32
  }
  func.func @transform_6(%arg0: i32) -> (i32, i32) {
    %c0_i32 = arith.constant 0 : i32
    %c0_i32_0 = arith.constant 0 : i32
    %c0_i32_1 = arith.constant 0 : i32
    return %c0_i32, %c0_i32_0 : i32, i32
  }
  func.func @transform_7(%arg0: i32) -> (i32, i32) {
    %c0_i32 = arith.constant 0 : i32
    %c0_i32_0 = arith.constant 0 : i32
    %c0_i32_1 = arith.constant 0 : i32
    return %c0_i32, %c0_i32_0 : i32, i32
  }
  func.func @transform_8(%arg0: i32) -> (i32, i32) {
    %c0_i32 = arith.constant 0 : i32
    %c0_i32_0 = arith.constant 0 : i32
    %c0_i32_1 = arith.constant 0 : i32
    return %c0_i32, %c0_i32_0 : i32, i32
  }
  func.func @transform_9(%arg0: i32) -> (i32, i32, i32) {
    %c0_i32 = arith.constant 0 : i32
    %c0_i32_0 = arith.constant 0 : i32
    %c0_i32_1 = arith.constant 0 : i32
    %c0_i32_2 = arith.constant 0 : i32
    return %c0_i32, %c0_i32_0, %c0_i32_1 : i32, i32, i32
  }
  func.func @transform_10(%arg0: i32) -> (i32, i32, i32) {
    %c0_i32 = arith.constant 0 : i32
    %c0_i32_0 = arith.constant 0 : i32
    %c0_i32_1 = arith.constant 0 : i32
    %c0_i32_2 = arith.constant 0 : i32
    return %c0_i32, %c0_i32_0, %c0_i32_1 : i32, i32, i32
  }
  func.func @transform_11(%arg0: i32) -> (i32, i32) {
    %c0_i32 = arith.constant 0 : i32
    %c0_i32_0 = arith.constant 0 : i32
    return %arg0, %c0_i32 : i32, i32
  }
}

</mosaic_0001>

<llo_original>
// kernel: mlp_forward.1
$region0: #{mlp_forward.1}
  #allocation0 [shape = 'u32[]', space=smem, size = 0x4, offset = 0x4, fixed_abs, tag = 'smem constant byte address 0x4 - core index']
  #allocation1 [shape = 'u32[144,128]{1,0:T(1,128)}', space=vmem, size = 0x12000, scoped, tag = 'internal scratch']
  %s0 = inlined_call_operand.vmem [shape: bf16[8,128], index: 0, kind: input, shape index: {}]
  %s1 = inlined_call_operand.hbm [shape: bf16[128,1024], index: 1, kind: input, shape index: {}]
  %s2 = inlined_call_operand.vmem [shape: f32[1,1024], index: 2, kind: input, shape index: {}]
  %s3 = inlined_call_operand.hbm [shape: bf16[1024,512], index: 3, kind: input, shape index: {}]
  %s4 = inlined_call_operand.vmem [shape: f32[1,512], index: 4, kind: input, shape index: {}]
  %s5 = inlined_call_operand.hbm [shape: bf16[512,256], index: 5, kind: input, shape index: {}]
  %s6 = inlined_call_operand.vmem [shape: f32[1,256], index: 6, kind: input, shape index: {}]
  %s7 = inlined_call_operand.hbm [shape: bf16[256,128], index: 7, kind: input, shape index: {}]
  %s8 = inlined_call_operand.vmem [shape: f32[1,128], index: 8, kind: input, shape index: {}]
  %s9 = inlined_call_operand.hbm [shape: bf16[5,128,128], index: 9, kind: input, shape index: {}]
  %s10 = inlined_call_operand.vmem [shape: f32[5,1,128], index: 10, kind: input, shape index: {}]
  %s11 = inlined_call_operand.hbm [shape: f32[8,128], index: 11, kind: output, shape index: {}]
  %s12 = sld [smem:[#allocation0]]
  $region74: #{mlp_forward.1} parent=0
    _
  %s14 = ssub.s32 1, %s12
  %s15 = scalar_select 0, %s14, %s12
  $region1: #{mlp_forward.1} parent=0
    #allocation2 [shape = 'u8[262144]{0}', space=vmem, size = 0x40000, scoped, tag = 'input window, operand 1, single buffered']
    #allocation3 [shape = 's32[1]{0}', space=sflag, size = 0x4, scoped, tag = 'scoped memory for mlp_forward.1']
    #allocation4 [shape = 's32[1]{0}', space=sflag, size = 0x4, scoped, tag = 'scoped memory for mlp_forward.1']
    #allocation5 [shape = 'u8[1048576]{0}', space=vmem, size = 0x100000, scoped, tag = 'input window, operand 3, single buffered']
    #allocation6 [shape = 's32[1]{0}', space=sflag, size = 0x4, scoped, tag = 'scoped memory for mlp_forward.1']
    #allocation7 [shape = 'u8[262144]{0}', space=vmem, size = 0x40000, scoped, tag = 'input window, operand 5, single buffered']
    #allocation8 [shape = 'u8[65536]{0}', space=vmem, size = 0x10000, scoped, tag = 'input window, operand 7, single buffered']
    #allocation9 [shape = 's32[1]{0}', space=sflag, size = 0x4, scoped, tag = 'scoped memory for mlp_forward.1']
    #allocation10 [shape = 'u8[163840]{0}', space=vmem, size = 0x28000, scoped, tag = 'input window, operand 9, single buffered']
    #allocation11 [shape = 'u8[4096]{0}', space=vmem, size = 0x1000, scoped, tag = 'output window, operand 0, single buffered']
    %16 = vsyncpa [#allocation3], 0
    %17 = vsyncpa [#allocation6], 0
    %18 = vsyncpa [#allocation9], 0
    %19 = vsyncpa [#allocation4], 0
    // Predicated region
    $region2: #{mlp_forward.1} parent=1 // pred_check
      _
    $region3: #{mlp_forward.1} parent=1 // pred_check_branch
      %21 = sbr.rel (0) target = $region5
    $region4: #{mlp_forward.1} parent=1 // pred_region
      _
    $region5: #{mlp_forward.1} parent=1 // pred_fallthru
      _
    // Predicated region
    $region6: #{mlp_forward.1} parent=1 // pred_check
      _
    $region7: #{mlp_forward.1} parent=1 // pred_check_branch
      %23 = sbr.rel (0) target = $region9
    $region8: #{mlp_forward.1} parent=1 // pred_region
      %s25 = ssub.s32 8192, 8192
      %26 = vsyncadd [#allocation3], %s25
      %s27 = sshll.u32 [#allocation2], 4
      %s28 = int_to_ptr.vmem [resolvable:$true] %s27
      %33 = dma.hbm_to_vmem [thread:$0]  %s1, 8192, %s28, [#allocation3], 512, 512, 32
    $region9: #{mlp_forward.1} parent=1 // pred_fallthru
      _
    // Predicated region
    $region10: #{mlp_forward.1} parent=1 // pred_check
      _
    $region11: #{mlp_forward.1} parent=1 // pred_check_branch
      %35 = sbr.rel (0) target = $region13
    $region12: #{mlp_forward.1} parent=1 // pred_region
      _
    $region13: #{mlp_forward.1} parent=1 // pred_fallthru
      _
    // Predicated region
    $region14: #{mlp_forward.1} parent=1 // pred_check
      _
    $region15: #{mlp_forward.1} parent=1 // pred_check_branch
      %37 = sbr.rel (0) target = $region17
    $region16: #{mlp_forward.1} parent=1 // pred_region
      %s39 = ssub.s32 32768, 32768
      %40 = vsyncadd [#allocation6], %s39
      %s41 = sshll.u32 [#allocation5], 4
      %s42 = int_to_ptr.vmem [resolvable:$true] %s41
      %47 = dma.hbm_to_vmem [thread:$0]  %s3, 32768, %s42, [#allocation6], 256, 256, 16
    $region17: #{mlp_forward.1} parent=1 // pred_fallthru
      _
    // Predicated region
    $region18: #{mlp_forward.1} parent=1 // pred_check
      _
    $region19: #{mlp_forward.1} parent=1 // pred_check_branch
      %49 = sbr.rel (0) target = $region21
    $region20: #{mlp_forward.1} parent=1 // pred_region
      _
    $region21: #{mlp_forward.1} parent=1 // pred_fallthru
      _
    // Predicated region
    $region22: #{mlp_forward.1} parent=1 // pred_check
      _
    $region23: #{mlp_forward.1} parent=1 // pred_check_branch
      %51 = sbr.rel (0) target = $region25
    $region24: #{mlp_forward.1} parent=1 // pred_region
      %s53 = ssub.s32 8192, 8192
      %54 = vsyncadd [#allocation6], %s53
      %s55 = sshll.u32 [#allocation7], 4
      %s56 = int_to_ptr.vmem [resolvable:$true] %s55
      %61 = dma.hbm_to_vmem [thread:$0]  %s5, 8192, %s56, [#allocation6], 128, 128, 8
    $region25: #{mlp_forward.1} parent=1 // pred_fallthru
      _
    // Predicated region
    $region26: #{mlp_forward.1} parent=1 // pred_check
      _
    $region27: #{mlp_forward.1} parent=1 // pred_check_branch
      %63 = sbr.rel (0) target = $region29
    $region28: #{mlp_forward.1} parent=1 // pred_region
      _
    $region29: #{mlp_forward.1} parent=1 // pred_fallthru
      _
    // Predicated region
    $region30: #{mlp_forward.1} parent=1 // pred_check
      _
    $region31: #{mlp_forward.1} parent=1 // pred_check_branch
      %65 = sbr.rel (0) target = $region33
    $region32: #{mlp_forward.1} parent=1 // pred_region
      %s67 = ssub.s32 2048, 2048
      %68 = vsyncadd [#allocation9], %s67
      %s69 = sshll.u32 [#allocation8], 4
      %s70 = int_to_ptr.vmem [resolvable:$true] %s69
      %75 = dma.hbm_to_vmem [thread:$0]  %s7, 2048, %s70, [#allocation9], 64, 64, 4
    $region33: #{mlp_forward.1} parent=1 // pred_fallthru
      _
    // Predicated region
    $region34: #{mlp_forward.1} parent=1 // pred_check
      _
    $region35: #{mlp_forward.1} parent=1 // pred_check_branch
      %77 = sbr.rel (0) target = $region37
    $region36: #{mlp_forward.1} parent=1 // pred_region
      _
    $region37: #{mlp_forward.1} parent=1 // pred_fallthru
      _
    // Predicated region
    $region38: #{mlp_forward.1} parent=1 // pred_check
      _
    $region39: #{mlp_forward.1} parent=1 // pred_check_branch
      %79 = sbr.rel (0) target = $region41
    $region40: #{mlp_forward.1} parent=1 // pred_region
      %s81 = ssub.s32 5120, 5120
      %82 = vsyncadd [#allocation9], %s81
      %s83 = sshll.u32 [#allocation10], 4
      %s84 = int_to_ptr.vmem [resolvable:$true] %s83
      %89 = dma.hbm_to_vmem [thread:$0]  %s9, 5120, %s84, [#allocation9], 64, 64, 4
    $region41: #{mlp_forward.1} parent=1 // pred_fallthru
      _
    // Predicated region
    $region42: #{mlp_forward.1} parent=1 // pred_check
      _
    $region43: #{mlp_forward.1} parent=1 // pred_check_branch
      %91 = sbr.rel (0) target = $region45
    $region44: #{mlp_forward.1} parent=1 // pred_region
      _
    $region45: #{mlp_forward.1} parent=1 // pred_fallthru
      _
    // Predicated region
    $region46: #{mlp_forward.1} parent=1 // pred_check
      _
    $region47: #{mlp_forward.1} parent=1 // pred_check_branch
      %93 = sbr.rel (0) target = $region49
    $region48: #{mlp_forward.1} parent=1 // pred_region
      %94 = dma.done [#allocation3], 8192
    $region49: #{mlp_forward.1} parent=1 // pred_fallthru
      _
    // Predicated region
    $region50: #{mlp_forward.1} parent=1 // pred_check
      _
    $region51: #{mlp_forward.1} parent=1 // pred_check_branch
      %96 = sbr.rel (0) target = $region53
    $region52: #{mlp_forward.1} parent=1 // pred_region
      %97 = dma.done [#allocation6], 32768
    $region53: #{mlp_forward.1} parent=1 // pred_fallthru
      _
    // Predicated region
    $region54: #{mlp_forward.1} parent=1 // pred_check
      _
    $region55: #{mlp_forward.1} parent=1 // pred_check_branch
      %99 = sbr.rel (0) target = $region57
    $region56: #{mlp_forward.1} parent=1 // pred_region
      %100 = dma.done [#allocation6], 8192
    $region57: #{mlp_forward.1} parent=1 // pred_fallthru
      _
    // Predicated region
    $region58: #{mlp_forward.1} parent=1 // pred_check
      _
    $region59: #{mlp_forward.1} parent=1 // pred_check_branch
      %102 = sbr.rel (0) target = $region61
    $region60: #{mlp_forward.1} parent=1 // pred_region
      %103 = dma.done [#allocation9], 2048
    $region61: #{mlp_forward.1} parent=1 // pred_fallthru
      _
    // Predicated region
    $region62: #{mlp_forward.1} parent=1 // pred_check
      _
    $region63: #{mlp_forward.1} parent=1 // pred_check_branch
      %105 = sbr.rel (0) target = $region65
    $region64: #{mlp_forward.1} parent=1 // pred_region
      %106 = dma.done [#allocation9], 5120
    $region65: #{mlp_forward.1} parent=1 // pred_fallthru
      _
    %v108 = vld [vmem:[%s0] sm:$0xf]
    %v109 = vld [vmem:[#allocation2] sm:$0xff]
    %v110 = vld [vmem:[#allocation2 + $0x8] sm:$0xff]
    %v111 = vld [vmem:[#allocation2 + $0x10] sm:$0xff]
    %v112 = vld [vmem:[#allocation2 + $0x18] sm:$0xff]
    %v113 = vld [vmem:[#allocation2 + $0x20] sm:$0xff]
    %v114 = vld [vmem:[#allocation2 + $0x28] sm:$0xff]
    %v115 = vld [vmem:[#allocation2 + $0x30] sm:$0xff]
    %v116 = vld [vmem:[#allocation2 + $0x38] sm:$0xff]
    %v117 = vld [vmem:[#allocation2 + $0x40] sm:$0xff]
    %v118 = vld [vmem:[#allocation2 + $0x48] sm:$0xff]
    %v119 = vld [vmem:[#allocation2 + $0x50] sm:$0xff]
    %v120 = vld [vmem:[#allocation2 + $0x58] sm:$0xff]
    %v121 = vld [vmem:[#allocation2 + $0x60] sm:$0xff]
    %v122 = vld [vmem:[#allocation2 + $0x68] sm:$0xff]
    %v123 = vld [vmem:[#allocation2 + $0x70] sm:$0xff]
    %v124 = vld [vmem:[#allocation2 + $0x78] sm:$0xff]
    %v125 = vld [vmem:[#allocation2 + $0x80] sm:$0xff]
    %v126 = vld [vmem:[#allocation2 + $0x88] sm:$0xff]
    %v127 = vld [vmem:[#allocation2 + $0x90] sm:$0xff]
    %v128 = vld [vmem:[#allocation2 + $0x98] sm:$0xff]
    %v129 = vld [vmem:[#allocation2 + $0xa0] sm:$0xff]
    %v130 = vld [vmem:[#allocation2 + $0xa8] sm:$0xff]
    %v131 = vld [vmem:[#allocation2 + $0xb0] sm:$0xff]
    %v132 = vld [vmem:[#allocation2 + $0xb8] sm:$0xff]
    %v133 = vld [vmem:[#allocation2 + $0xc0] sm:$0xff]
    %v134 = vld [vmem:[#allocation2 + $0xc8] sm:$0xff]
    %v135 = vld [vmem:[#allocation2 + $0xd0] sm:$0xff]
    %v136 = vld [vmem:[#allocation2 + $0xd8] sm:$0xff]
    %v137 = vld [vmem:[#allocation2 + $0xe0] sm:$0xff]
    %v138 = vld [vmem:[#allocation2 + $0xe8] sm:$0xff]
    %v139 = vld [vmem:[#allocation2 + $0xf0] sm:$0xff]
    %v140 = vld [vmem:[#allocation2 + $0xf8] sm:$0xff]
    %v141 = vld [vmem:[#allocation2 + $0x100] sm:$0xff]
    %v142 = vld [vmem:[#allocation2 + $0x108] sm:$0xff]
    %v143 = vld [vmem:[#allocation2 + $0x110] sm:$0xff]
    %v144 = vld [vmem:[#allocation2 + $0x118] sm:$0xff]
    %v145 = vld [vmem:[#allocation2 + $0x120] sm:$0xff]
    %v146 = vld [vmem:[#allocation2 + $0x128] sm:$0xff]
    %v147 = vld [vmem:[#allocation2 + $0x130] sm:$0xff]
    %v148 = vld [vmem:[#allocation2 + $0x138] sm:$0xff]
    %v149 = vld [vmem:[#allocation2 + $0x140] sm:$0xff]
    %v150 = vld [vmem:[#allocation2 + $0x148] sm:$0xff]
    %v151 = vld [vmem:[#allocation2 + $0x150] sm:$0xff]
    %v152 = vld [vmem:[#allocation2 + $0x158] sm:$0xff]
    %v153 = vld [vmem:[#allocation2 + $0x160] sm:$0xff]
    %v154 = vld [vmem:[#allocation2 + $0x168] sm:$0xff]
    %v155 = vld [vmem:[#allocation2 + $0x170] sm:$0xff]
    %v156 = vld [vmem:[#allocation2 + $0x178] sm:$0xff]
    %v157 = vld [vmem:[#allocation2 + $0x180] sm:$0xff]
    %v158 = vld [vmem:[#allocation2 + $0x188] sm:$0xff]
    %v159 = vld [vmem:[#allocation2 + $0x190] sm:$0xff]
    %v160 = vld [vmem:[#allocation2 + $0x198] sm:$0xff]
    %v161 = vld [vmem:[#allocation2 + $0x1a0] sm:$0xff]
    %v162 = vld [vmem:[#allocation2 + $0x1a8] sm:$0xff]
    %v163 = vld [vmem:[#allocation2 + $0x1b0] sm:$0xff]
    %v164 = vld [vmem:[#allocation2 + $0x1b8] sm:$0xff]
    %v165 = vld [vmem:[#allocation2 + $0x1c0] sm:$0xff]
    %v166 = vld [vmem:[#allocation2 + $0x1c8] sm:$0xff]
    %v167 = vld [vmem:[#allocation2 + $0x1d0] sm:$0xff]
    %v168 = vld [vmem:[#allocation2 + $0x1d8] sm:$0xff]
    %v169 = vld [vmem:[#allocation2 + $0x1e0] sm:$0xff]
    %v170 = vld [vmem:[#allocation2 + $0x1e8] sm:$0xff]
    %v171 = vld [vmem:[#allocation2 + $0x1f0] sm:$0xff]
    %v172 = vld [vmem:[#allocation2 + $0x1f8] sm:$0xff]
    %v173 = vld [vmem:[%s2] sm:$0xff]
    %v175 = vlaneseq
    %v176 = vshrl.u32 %v175, 7
    %v177 = vsub.s32 0, %v176
    %v178 = vrot.slane %v173, %v177
    %v179 = vlaneseq
    %v180 = vshrl.u32 %v179, 7
    %v181 = vsub.s32 1, %v180
    %v182 = vrot.slane %v173, %v181
    %v183 = vlaneseq
    %v184 = vshrl.u32 %v183, 7
    %v185 = vsub.s32 2, %v184
    %v186 = vrot.slane %v173, %v185
    %v187 = vlaneseq
    %v188 = vshrl.u32 %v187, 7
    %v189 = vsub.s32 3, %v188
    %v190 = vrot.slane %v173, %v189
    %v191 = vlaneseq
    %v192 = vshrl.u32 %v191, 7
    %v193 = vsub.s32 4, %v192
    %v194 = vrot.slane %v173, %v193
    %v195 = vlaneseq
    %v196 = vshrl.u32 %v195, 7
    %v197 = vsub.s32 5, %v196
    %v198 = vrot.slane %v173, %v197
    %v199 = vlaneseq
    %v200 = vshrl.u32 %v199, 7
    %v201 = vsub.s32 6, %v200
    %v202 = vrot.slane %v173, %v201
    %v203 = vlaneseq
    %v204 = vshrl.u32 %v203, 7
    %v205 = vsub.s32 7, %v204
    %v206 = vrot.slane %v173, %v205
    %v279 = vunpack.c.l.b16 %v109
    %v280 = vunpack.c.h.b16 %v109
    %v281 = vunpack.c.l.b16 %v110
    %v282 = vunpack.c.h.b16 %v110
    %v283 = vunpack.c.l.b16 %v111
    %v284 = vunpack.c.h.b16 %v111
    %v285 = vunpack.c.l.b16 %v112
    %v286 = vunpack.c.h.b16 %v112
    %v287 = vunpack.c.l.b16 %v113
    %v288 = vunpack.c.h.b16 %v113
    %v289 = vunpack.c.l.b16 %v114
    %v290 = vunpack.c.h.b16 %v114
    %v291 = vunpack.c.l.b16 %v115
    %v292 = vunpack.c.h.b16 %v115
    %v293 = vunpack.c.l.b16 %v116
    %v294 = vunpack.c.h.b16 %v116
    %v295 = vunpack.c.l.b16 %v117
    %v296 = vunpack.c.h.b16 %v117
    %v297 = vunpack.c.l.b16 %v118
    %v298 = vunpack.c.h.b16 %v118
    %v299 = vunpack.c.l.b16 %v119
    %v300 = vunpack.c.h.b16 %v119
    %v301 = vunpack.c.l.b16 %v120
    %v302 = vunpack.c.h.b16 %v120
    %v303 = vunpack.c.l.b16 %v121
    %v304 = vunpack.c.h.b16 %v121
    %v305 = vunpack.c.l.b16 %v122
    %v306 = vunpack.c.h.b16 %v122
    %v307 = vunpack.c.l.b16 %v123
    %v308 = vunpack.c.h.b16 %v123
    %v309 = vunpack.c.l.b16 %v124
    %v310 = vunpack.c.h.b16 %v124
    %v311 = vunpack.c.l.b16 %v125
    %v312 = vunpack.c.h.b16 %v125
    %v313 = vunpack.c.l.b16 %v126
    %v314 = vunpack.c.h.b16 %v126
    %v315 = vunpack.c.l.b16 %v127
    %v316 = vunpack.c.h.b16 %v127
    %v317 = vunpack.c.l.b16 %v128
    %v318 = vunpack.c.h.b16 %v128
    %v319 = vunpack.c.l.b16 %v129
    %v320 = vunpack.c.h.b16 %v129
    %v321 = vunpack.c.l.b16 %v130
    %v322 = vunpack.c.h.b16 %v130
    %v323 = vunpack.c.l.b16 %v131
    %v324 = vunpack.c.h.b16 %v131
    %v325 = vunpack.c.l.b16 %v132
    %v326 = vunpack.c.h.b16 %v132
    %v327 = vunpack.c.l.b16 %v133
    %v328 = vunpack.c.h.b16 %v133
    %v329 = vunpack.c.l.b16 %v134
    %v330 = vunpack.c.h.b16 %v134
    %v331 = vunpack.c.l.b16 %v135
    %v332 = vunpack.c.h.b16 %v135
    %v333 = vunpack.c.l.b16 %v136
    %v334 = vunpack.c.h.b16 %v136
    %v335 = vunpack.c.l.b16 %v137
    %v336 = vunpack.c.h.b16 %v137
    %v337 = vunpack.c.l.b16 %v138
    %v338 = vunpack.c.h.b16 %v138
    %v339 = vunpack.c.l.b16 %v139
    %v340 = vunpack.c.h.b16 %v139
    %v341 = vunpack.c.l.b16 %v140
    %v342 = vunpack.c.h.b16 %v140
    %v343 = vunpack.c.l.b16 %v141
    %v344 = vunpack.c.h.b16 %v141
    %v345 = vunpack.c.l.b16 %v142
    %v346 = vunpack.c.h.b16 %v142
    %v347 = vunpack.c.l.b16 %v143
    %v348 = vunpack.c.h.b16 %v143
    %v349 = vunpack.c.l.b16 %v144
    %v350 = vunpack.c.h.b16 %v144
    %v351 = vunpack.c.l.b16 %v145
    %v352 = vunpack.c.h.b16 %v145
    %v353 = vunpack.c.l.b16 %v146
    %v354 = vunpack.c.h.b16 %v146
    %v355 = vunpack.c.l.b16 %v147
    %v356 = vunpack.c.h.b16 %v147
    %v357 = vunpack.c.l.b16 %v148
    %v358 = vunpack.c.h.b16 %v148
    %v359 = vunpack.c.l.b16 %v149
    %v360 = vunpack.c.h.b16 %v149
    %v361 = vunpack.c.l.b16 %v150
    %v362 = vunpack.c.h.b16 %v150
    %v363 = vunpack.c.l.b16 %v151
    %v364 = vunpack.c.h.b16 %v151
    %v365 = vunpack.c.l.b16 %v152
    %v366 = vunpack.c.h.b16 %v152
    %v367 = vunpack.c.l.b16 %v153
    %v368 = vunpack.c.h.b16 %v153
    %v369 = vunpack.c.l.b16 %v154
    %v370 = vunpack.c.h.b16 %v154
    %v371 = vunpack.c.l.b16 %v155
    %v372 = vunpack.c.h.b16 %v155
    %v373 = vunpack.c.l.b16 %v156
    %v374 = vunpack.c.h.b16 %v156
    %v375 = vunpack.c.l.b16 %v157
    %v376 = vunpack.c.h.b16 %v157
    %v377 = vunpack.c.l.b16 %v158
    %v378 = vunpack.c.h.b16 %v158
    %v379 = vunpack.c.l.b16 %v159
    %v380 = vunpack.c.h.b16 %v159
    %v381 = vunpack.c.l.b16 %v160
    %v382 = vunpack.c.h.b16 %v160
    %v383 = vunpack.c.l.b16 %v161
    %v384 = vunpack.c.h.b16 %v161
    %v385 = vunpack.c.l.b16 %v162
    %v386 = vunpack.c.h.b16 %v162
    %v387 = vunpack.c.l.b16 %v163
    %v388 = vunpack.c.h.b16 %v163
    %v389 = vunpack.c.l.b16 %v164
    %v390 = vunpack.c.h.b16 %v164
    %v391 = vunpack.c.l.b16 %v165
    %v392 = vunpack.c.h.b16 %v165
    %v393 = vunpack.c.l.b16 %v166
    %v394 = vunpack.c.h.b16 %v166
    %v395 = vunpack.c.l.b16 %v167
    %v396 = vunpack.c.h.b16 %v167
    %v397 = vunpack.c.l.b16 %v168
    %v398 = vunpack.c.h.b16 %v168
    %v399 = vunpack.c.l.b16 %v169
    %v400 = vunpack.c.h.b16 %v169
    %v401 = vunpack.c.l.b16 %v170
    %v402 = vunpack.c.h.b16 %v170
    %v403 = vunpack.c.l.b16 %v171
    %v404 = vunpack.c.h.b16 %v171
    %v405 = vunpack.c.l.b16 %v172
    %v406 = vunpack.c.h.b16 %v172
    %v407 = vpack.c.b16 %v287, %v279
    %v408 = vpack.c.b16 %v288, %v280
    %v409 = vpack.c.b16 %v289, %v281
    %v410 = vpack.c.b16 %v290, %v282
    %v411 = vpack.c.b16 %v291, %v283
    %v412 = vpack.c.b16 %v292, %v284
    %v413 = vpack.c.b16 %v293, %v285
    %v414 = vpack.c.b16 %v294, %v286
    %v415 = vpack.c.b16 %v303, %v295
    %v416 = vpack.c.b16 %v304, %v296
    %v417 = vpack.c.b16 %v305, %v297
    %v418 = vpack.c.b16 %v306, %v298
    %v419 = vpack.c.b16 %v307, %v299
    %v420 = vpack.c.b16 %v308, %v300
    %v421 = vpack.c.b16 %v309, %v301
    %v422 = vpack.c.b16 %v310, %v302
    %v423 = vpack.c.b16 %v319, %v311
    %v424 = vpack.c.b16 %v320, %v312
    %v425 = vpack.c.b16 %v321, %v313
    %v426 = vpack.c.b16 %v322, %v314
    %v427 = vpack.c.b16 %v323, %v315
    %v428 = vpack.c.b16 %v324, %v316
    %v429 = vpack.c.b16 %v325, %v317
    %v430 = vpack.c.b16 %v326, %v318
    %v431 = vpack.c.b16 %v335, %v327
    %v432 = vpack.c.b16 %v336, %v328
    %v433 = vpack.c.b16 %v337, %v329
    %v434 = vpack.c.b16 %v338, %v330
    %v435 = vpack.c.b16 %v339, %v331
    %v436 = vpack.c.b16 %v340, %v332
    %v437 = vpack.c.b16 %v341, %v333
    %v438 = vpack.c.b16 %v342, %v334
    %v439 = vpack.c.b16 %v351, %v343
    %v440 = vpack.c.b16 %v352, %v344
    %v441 = vpack.c.b16 %v353, %v345
    %v442 = vpack.c.b16 %v354, %v346
    %v443 = vpack.c.b16 %v355, %v347
    %v444 = vpack.c.b16 %v356, %v348
    %v445 = vpack.c.b16 %v357, %v349
    %v446 = vpack.c.b16 %v358, %v350
    %v447 = vpack.c.b16 %v367, %v359
    %v448 = vpack.c.b16 %v368, %v360
    %v449 = vpack.c.b16 %v369, %v361
    %v450 = vpack.c.b16 %v370, %v362
    %v451 = vpack.c.b16 %v371, %v363
    %v452 = vpack.c.b16 %v372, %v364
    %v453 = vpack.c.b16 %v373, %v365
    %v454 = vpack.c.b16 %v374, %v366
    %v455 = vpack.c.b16 %v383, %v375
    %v456 = vpack.c.b16 %v384, %v376
    %v457 = vpack.c.b16 %v385, %v377
    %v458 = vpack.c.b16 %v386, %v378
    %v459 = vpack.c.b16 %v387, %v379
    %v460 = vpack.c.b16 %v388, %v380
    %v461 = vpack.c.b16 %v389, %v381
    %v462 = vpack.c.b16 %v390, %v382
    %v463 = vpack.c.b16 %v399, %v391
    %v464 = vpack.c.b16 %v400, %v392
    %v465 = vpack.c.b16 %v401, %v393
    %v466 = vpack.c.b16 %v402, %v394
    %v467 = vpack.c.b16 %v403, %v395
    %v468 = vpack.c.b16 %v404, %v396
    %v469 = vpack.c.b16 %v405, %v397
    %v470 = vpack.c.b16 %v406, %v398
    %535 = vmatprep.subr.bf16.mxu0 %v408
    %536 = vmatpush1.bf16.msra.mxu0 %v407
    %537 = vmatprep.subr.bf16.mxu0 %v416
    %538 = vmatpush1.bf16.msra.mxu0 %v415
    %539 = vmatprep.subr.bf16.mxu0 %v424
    %540 = vmatpush1.bf16.msra.mxu0 %v423
    %541 = vmatprep.subr.bf16.mxu0 %v432
    %542 = vmatpush1.bf16.msra.mxu0 %v431
    %543 = vmatprep.subr.bf16.mxu0 %v440
    %544 = vmatpush1.bf16.msra.mxu0 %v439
    %545 = vmatprep.subr.bf16.mxu0 %v448
    %546 = vmatpush1.bf16.msra.mxu0 %v447
    %547 = vmatprep.subr.bf16.mxu0 %v456
    %548 = vmatpush1.bf16.msra.mxu0 %v455
    %549 = vmatprep.subr.bf16.mxu0 %v464
    %550 = vmatpush1.bf16.msra.mxu0 %v463
    %551 = vmatprep.subr.bf16.mxu0 0
    %552 = vmatpush1.bf16.msra.mxu0 0
    %553 = vmatprep.subr.bf16.mxu0 0
    %554 = vmatpush1.bf16.msra.mxu0 0
    %555 = vmatprep.subr.bf16.mxu0 0
    %556 = vmatpush1.bf16.msra.mxu0 0
    %557 = vmatprep.subr.bf16.mxu0 0
    %558 = vmatpush1.bf16.msra.mxu0 0
    %559 = vmatprep.subr.bf16.mxu0 0
    %560 = vmatpush1.bf16.msra.mxu0 0
    %561 = vmatprep.subr.bf16.mxu0 0
    %562 = vmatpush1.bf16.msra.mxu0 0
    %563 = vmatprep.subr.bf16.mxu0 0
    %564 = vmatpush1.bf16.msra.mxu0 0
    %565 = vmatprep.subr.bf16.mxu0 0
    %566 = vmatpush1.bf16.msra.mxu0 0
    %567 = vmatprep.mubr.bf16.mxu0 0
    %568 = vmatmul.mubr.bf16.gmra.mrb[0].mxu0 %v108
    %v569 = vpop.f32.mrb[0].mxu0
    %v570 = vadd.f32 %v178, %v569
    %v571 = vpop.f32.mrb[0].mxu0
    %v572 = vadd.f32 %v182, %v571
    %v573 = vpop.f32.mrb[0].mxu0
    %v574 = vpop.f32.mrb[0].mxu0
    %575 = vdwg.mxu0
    %576 = vmatprep.subr.bf16.mxu0 %v410
    %577 = vmatpush1.bf16.msra.mxu0 %v409
    %578 = vmatprep.subr.bf16.mxu0 %v418
    %579 = vmatpush1.bf16.msra.mxu0 %v417
    %580 = vmatprep.subr.bf16.mxu0 %v426
    %581 = vmatpush1.bf16.msra.mxu0 %v425
    %582 = vmatprep.subr.bf16.mxu0 %v434
    %583 = vmatpush1.bf16.msra.mxu0 %v433
    %584 = vmatprep.subr.bf16.mxu0 %v442
    %585 = vmatpush1.bf16.msra.mxu0 %v441
    %586 = vmatprep.subr.bf16.mxu0 %v450
    %587 = vmatpush1.bf16.msra.mxu0 %v449
    %588 = vmatprep.subr.bf16.mxu0 %v458
    %589 = vmatpush1.bf16.msra.mxu0 %v457
    %590 = vmatprep.subr.bf16.mxu0 %v466
    %591 = vmatpush1.bf16.msra.mxu0 %v465
    %592 = vmatprep.subr.bf16.mxu0 0
    %593 = vmatpush1.bf16.msra.mxu0 0
    %594 = vmatprep.subr.bf16.mxu0 0
    %595 = vmatpush1.bf16.msra.mxu0 0
    %596 = vmatprep.subr.bf16.mxu0 0
    %597 = vmatpush1.bf16.msra.mxu0 0
    %598 = vmatprep.subr.bf16.mxu0 0
    %599 = vmatpush1.bf16.msra.mxu0 0
    %600 = vmatprep.subr.bf16.mxu0 0
    %601 = vmatpush1.bf16.msra.mxu0 0
    %602 = vmatprep.subr.bf16.mxu0 0
    %603 = vmatpush1.bf16.msra.mxu0 0
    %604 = vmatprep.subr.bf16.mxu0 0
    %605 = vmatpush1.bf16.msra.mxu0 0
    %606 = vmatprep.subr.bf16.mxu0 0
    %607 = vmatpush1.bf16.msra.mxu0 0
    %608 = vmatprep.mubr.bf16.mxu0 0
    %609 = vmatmul.mubr.bf16.gmra.mrb[0].mxu0 %v108
    %v610 = vpop.f32.mrb[0].mxu0
    %v611 = vadd.f32 %v186, %v610
    %v612 = vpop.f32.mrb[0].mxu0
    %v613 = vadd.f32 %v190, %v612
    %v614 = vpop.f32.mrb[0].mxu0
    %v615 = vpop.f32.mrb[0].mxu0
    %616 = vdwg.mxu0
    %617 = vmatprep.subr.bf16.mxu0 %v412
    %618 = vmatpush1.bf16.msra.mxu0 %v411
    %619 = vmatprep.subr.bf16.mxu0 %v420
    %620 = vmatpush1.bf16.msra.mxu0 %v419
    %621 = vmatprep.subr.bf16.mxu0 %v428
    %622 = vmatpush1.bf16.msra.mxu0 %v427
    %623 = vmatprep.subr.bf16.mxu0 %v436
    %624 = vmatpush1.bf16.msra.mxu0 %v435
    %625 = vmatprep.subr.bf16.mxu0 %v444
    %626 = vmatpush1.bf16.msra.mxu0 %v443
    %627 = vmatprep.subr.bf16.mxu0 %v452
    %628 = vmatpush1.bf16.msra.mxu0 %v451
    %629 = vmatprep.subr.bf16.mxu0 %v460
    %630 = vmatpush1.bf16.msra.mxu0 %v459
    %631 = vmatprep.subr.bf16.mxu0 %v468
    %632 = vmatpush1.bf16.msra.mxu0 %v467
    %633 = vmatprep.subr.bf16.mxu0 0
    %634 = vmatpush1.bf16.msra.mxu0 0
    %635 = vmatprep.subr.bf16.mxu0 0
    %636 = vmatpush1.bf16.msra.mxu0 0
    %637 = vmatprep.subr.bf16.mxu0 0
    %638 = vmatpush1.bf16.msra.mxu0 0
    %639 = vmatprep.subr.bf16.mxu0 0
    %640 = vmatpush1.bf16.msra.mxu0 0
    %641 = vmatprep.subr.bf16.mxu0 0
    %642 = vmatpush1.bf16.msra.mxu0 0
    %643 = vmatprep.subr.bf16.mxu0 0
    %644 = vmatpush1.bf16.msra.mxu0 0
    %645 = vmatprep.subr.bf16.mxu0 0
    %646 = vmatpush1.bf16.msra.mxu0 0
    %647 = vmatprep.subr.bf16.mxu0 0
    %648 = vmatpush1.bf16.msra.mxu0 0
    %649 = vmatprep.mubr.bf16.mxu0 0
    %650 = vmatmul.mubr.bf16.gmra.mrb[0].mxu0 %v108
    %v651 = vpop.f32.mrb[0].mxu0
    %v652 = vadd.f32 %v194, %v651
    %v653 = vpop.f32.mrb[0].mxu0
    %v654 = vadd.f32 %v198, %v653
    %v655 = vpop.f32.mrb[0].mxu0
    %v656 = vpop.f32.mrb[0].mxu0
    %657 = vdwg.mxu0
    %658 = vmatprep.subr.bf16.mxu0 %v414
    %659 = vmatpush1.bf16.msra.mxu0 %v413
    %660 = vmatprep.subr.bf16.mxu0 %v422
    %661 = vmatpush1.bf16.msra.mxu0 %v421
    %662 = vmatprep.subr.bf16.mxu0 %v430
    %663 = vmatpush1.bf16.msra.mxu0 %v429
    %664 = vmatprep.subr.bf16.mxu0 %v438
    %665 = vmatpush1.bf16.msra.mxu0 %v437
    %666 = vmatprep.subr.bf16.mxu0 %v446
    %667 = vmatpush1.bf16.msra.mxu0 %v445
    %668 = vmatprep.subr.bf16.mxu0 %v454
    %669 = vmatpush1.bf16.msra.mxu0 %v453
    %670 = vmatprep.subr.bf16.mxu0 %v462
    %671 = vmatpush1.bf16.msra.mxu0 %v461
    %672 = vmatprep.subr.bf16.mxu0 %v470
    %673 = vmatpush1.bf16.msra.mxu0 %v469
    %674 = vmatprep.subr.bf16.mxu0 0
    %675 = vmatpush1.bf16.msra.mxu0 0
    %676 = vmatprep.subr.bf16.mxu0 0
    %677 = vmatpush1.bf16.msra.mxu0 0
    %678 = vmatprep.subr.bf16.mxu0 0
    %679 = vmatpush1.bf16.msra.mxu0 0
    %680 = vmatprep.subr.bf16.mxu0 0
    %681 = vmatpush1.bf16.msra.mxu0 0
    %682 = vmatprep.subr.bf16.mxu0 0
    %683 = vmatpush1.bf16.msra.mxu0 0
    %684 = vmatprep.subr.bf16.mxu0 0
    %685 = vmatpush1.bf16.msra.mxu0 0
    %686 = vmatprep.subr.bf16.mxu0 0
    %687 = vmatpush1.bf16.msra.mxu0 0
    %688 = vmatprep.subr.bf16.mxu0 0
    %689 = vmatpush1.bf16.msra.mxu0 0
    %690 = vmatprep.mubr.bf16.mxu0 0
    %691 = vmatmul.mubr.bf16.gmra.mrb[0].mxu0 %v108
    %v692 = vpop.f32.mrb[0].mxu0
    %v693 = vadd.f32 %v202, %v692
    %v694 = vpop.f32.mrb[0].mxu0
    %v695 = vadd.f32 %v206, %v694
    %v696 = vpop.f32.mrb[0].mxu0
    %v697 = vpop.f32.mrb[0].mxu0
    %698 = vdwg.mxu0
    %v699 = vmax.f32 %v570, 0.0
    %v700 = vmax.f32 %v572, 0.0
    %v701 = vmax.f32 %v611, 0.0
    %v702 = vmax.f32 %v613, 0.0
    %v703 = vmax.f32 %v652, 0.0
    %v704 = vmax.f32 %v654, 0.0
    %v705 = vmax.f32 %v693, 0.0
    %v706 = vmax.f32 %v695, 0.0
    %v707 = vpack.c.bf16 %v699, %v699
    %v708 = vpack.c.bf16 %v700, %v700
    %v709 = vpack.c.bf16 %v701, %v701
    %v710 = vpack.c.bf16 %v702, %v702
    %v711 = vpack.c.bf16 %v703, %v703
    %v712 = vpack.c.bf16 %v704, %v704
    %v713 = vpack.c.bf16 %v705, %v705
    %v714 = vpack.c.bf16 %v706, %v706
    %v715 = vld [vmem:[#allocation5] sm:$0xff]
    %v716 = vld [vmem:[#allocation5 + $0x8] sm:$0xff]
    %v717 = vld [vmem:[#allocation5 + $0x10] sm:$0xff]
    %v718 = vld [vmem:[#allocation5 + $0x18] sm:$0xff]
    %v719 = vld [vmem:[#allocation5 + $0x20] sm:$0xff]
    %v720 = vld [vmem:[#allocation5 + $0x28] sm:$0xff]
    %v721 = vld [vmem:[#allocation5 + $0x30] sm:$0xff]
    %v722 = vld [vmem:[#allocation5 + $0x38] sm:$0xff]
    %v723 = vld [vmem:[#allocation5 + $0x40] sm:$0xff]
    %v724 = vld [vmem:[#allocation5 + $0x48] sm:$0xff]
    %v725 = vld [vmem:[#allocation5 + $0x50] sm:$0xff]
    %v726 = vld [vmem:[#allocation5 + $0x58] sm:$0xff]
    %v727 = vld [vmem:[#allocation5 + $0x60] sm:$0xff]
    %v728 = vld [vmem:[#allocation5 + $0x68] sm:$0xff]
    %v729 = vld [vmem:[#allocation5 + $0x70] sm:$0xff]
    %v730 = vld [vmem:[#allocation5 + $0x78] sm:$0xff]
    %v731 = vld [vmem:[#allocation5 + $0x80] sm:$0xff]
    %v732 = vld [vmem:[#allocation5 + $0x88] sm:$0xff]
    %v733 = vld [vmem:[#allocation5 + $0x90] sm:$0xff]
    %v734 = vld [vmem:[#allocation5 + $0x98] sm:$0xff]
    %v735 = vld [vmem:[#allocation5 + $0xa0] sm:$0xff]
    %v736 = vld [vmem:[#allocation5 + $0xa8] sm:$0xff]
    %v737 = vld [vmem:[#allocation5 + $0xb0] sm:$0xff]
    %v738 = vld [vmem:[#allocation5 + $0xb8] sm:$0xff]
    %v739 = vld [vmem:[#allocation5 + $0xc0] sm:$0xff]
    %v740 = vld [vmem:[#allocation5 + $0xc8] sm:$0xff]
    %v741 = vld [vmem:[#allocation5 + $0xd0] sm:$0xff]
    %v742 = vld [vmem:[#allocation5 + $0xd8] sm:$0xff]
    %v743 = vld [vmem:[#allocation5 + $0xe0] sm:$0xff]
    %v744 = vld [vmem:[#allocation5 + $0xe8] sm:$0xff]
    %v745 = vld [vmem:[#allocation5 + $0xf0] sm:$0xff]
    %v746 = vld [vmem:[#allocation5 + $0xf8] sm:$0xff]
    %v747 = vld [vmem:[#allocation5 + $0x100] sm:$0xff]
    %v748 = vld [vmem:[#allocation5 + $0x108] sm:$0xff]
    %v749 = vld [vmem:[#allocation5 + $0x110] sm:$0xff]
    %v750 = vld [vmem:[#allocation5 + $0x118] sm:$0xff]
    %v751 = vld [vmem:[#allocation5 + $0x120] sm:$0xff]
    %v752 = vld [vmem:[#allocation5 + $0x128] sm:$0xff]
    %v753 = vld [vmem:[#allocation5 + $0x130] sm:$0xff]
    %v754 = vld [vmem:[#allocation5 + $0x138] sm:$0xff]
    %v755 = vld [vmem:[#allocation5 + $0x140] sm:$0xff]
    %v756 = vld [vmem:[#allocation5 + $0x148] sm:$0xff]
    %v757 = vld [vmem:[#allocation5 + $0x150] sm:$0xff]
    %v758 = vld [vmem:[#allocation5 + $0x158] sm:$0xff]
    %v759 = vld [vmem:[#allocation5 + $0x160] sm:$0xff]
    %v760 = vld [vmem:[#allocation5 + $0x168] sm:$0xff]
    %v761 = vld [vmem:[#allocation5 + $0x170] sm:$0xff]
    %v762 = vld [vmem:[#allocation5 + $0x178] sm:$0xff]
    %v763 = vld [vmem:[#allocation5 + $0x180] sm:$0xff]
    %v764 = vld [vmem:[#allocation5 + $0x188] sm:$0xff]
    %v765 = vld [vmem:[#allocation5 + $0x190] sm:$0xff]
    %v766 = vld [vmem:[#allocation5 + $0x198] sm:$0xff]
    %v767 = vld [vmem:[#allocation5 + $0x1a0] sm:$0xff]
    %v768 = vld [vmem:[#allocation5 + $0x1a8] sm:$0xff]
    %v769 = vld [vmem:[#allocation5 + $0x1b0] sm:$0xff]
    %v770 = vld [vmem:[#allocation5 + $0x1b8] sm:$0xff]
    %v771 = vld [vmem:[#allocation5 + $0x1c0] sm:$0xff]
    %v772 = vld [vmem:[#allocation5 + $0x1c8] sm:$0xff]
    %v773 = vld [vmem:[#allocation5 + $0x1d0] sm:$0xff]
    %v774 = vld [vmem:[#allocation5 + $0x1d8] sm:$0xff]
    %v775 = vld [vmem:[#allocation5 + $0x1e0] sm:$0xff]
    %v776 = vld [vmem:[#allocation5 + $0x1e8] sm:$0xff]
    %v777 = vld [vmem:[#allocation5 + $0x1f0] sm:$0xff]
    %v778 = vld [vmem:[#allocation5 + $0x1f8] sm:$0xff]
    %v779 = vld [vmem:[#allocation5 + $0x200] sm:$0xff]
    %v780 = vld [vmem:[#allocation5 + $0x208] sm:$0xff]
    %v781 = vld [vmem:[#allocation5 + $0x210] sm:$0xff]
    %v782 = vld [vmem:[#allocation5 + $0x218] sm:$0xff]
    %v783 = vld [vmem:[#allocation5 + $0x220] sm:$0xff]
    %v784 = vld [vmem:[#allocation5 + $0x228] sm:$0xff]
    %v785 = vld [vmem:[#allocation5 + $0x230] sm:$0xff]
    %v786 = vld [vmem:[#allocation5 + $0x238] sm:$0xff]
    %v787 = vld [vmem:[#allocation5 + $0x240] sm:$0xff]
    %v788 = vld [vmem:[#allocation5 + $0x248] sm:$0xff]
    %v789 = vld [vmem:[#allocation5 + $0x250] sm:$0xff]
    %v790 = vld [vmem:[#allocation5 + $0x258] sm:$0xff]
    %v791 = vld [vmem:[#allocation5 + $0x260] sm:$0xff]
    %v792 = vld [vmem:[#allocation5 + $0x268] sm:$0xff]
    %v793 = vld [vmem:[#allocation5 + $0x270] sm:$0xff]
    %v794 = vld [vmem:[#allocation5 + $0x278] sm:$0xff]
    %v795 = vld [vmem:[#allocation5 + $0x280] sm:$0xff]
    %v796 = vld [vmem:[#allocation5 + $0x288] sm:$0xff]
    %v797 = vld [vmem:[#allocation5 + $0x290] sm:$0xff]
    %v798 = vld [vmem:[#allocation5 + $0x298] sm:$0xff]
    %v799 = vld [vmem:[#allocation5 + $0x2a0] sm:$0xff]
    %v800 = vld [vmem:[#allocation5 + $0x2a8] sm:$0xff]
    %v801 = vld [vmem:[#allocation5 + $0x2b0] sm:$0xff]
    %v802 = vld [vmem:[#allocation5 + $0x2b8] sm:$0xff]
    %v803 = vld [vmem:[#allocation5 + $0x2c0] sm:$0xff]
    %v804 = vld [vmem:[#allocation5 + $0x2c8] sm:$0xff]
    %v805 = vld [vmem:[#allocation5 + $0x2d0] sm:$0xff]
    %v806 = vld [vmem:[#allocation5 + $0x2d8] sm:$0xff]
    %v807 = vld [vmem:[#allocation5 + $0x2e0] sm:$0xff]
    %v808 = vld [vmem:[#allocation5 + $0x2e8] sm:$0xff]
    %v809 = vld [vmem:[#allocation5 + $0x2f0] sm:$0xff]
    %v810 = vld [vmem:[#allocation5 + $0x2f8] sm:$0xff]
    %v811 = vld [vmem:[#allocation5 + $0x300] sm:$0xff]
    %v812 = vld [vmem:[#allocation5 + $0x308] sm:$0xff]
    %v813 = vld [vmem:[#allocation5 + $0x310] sm:$0xff]
    %v814 = vld [vmem:[#allocation5 + $0x318] sm:$0xff]
    %v815 = vld [vmem:[#allocation5 + $0x320] sm:$0xff]
    %v816 = vld [vmem:[#allocation5 + $0x328] sm:$0xff]
    %v817 = vld [vmem:[#allocation5 + $0x330] sm:$0xff]
    %v818 = vld [vmem:[#allocation5 + $0x338] sm:$0xff]
    %v819 = vld [vmem:[#allocation5 + $0x340] sm:$0xff]
    %v820 = vld [vmem:[#allocation5 + $0x348] sm:$0xff]
    %v821 = vld [vmem:[#allocation5 + $0x350] sm:$0xff]
    %v822 = vld [vmem:[#allocation5 + $0x358] sm:$0xff]
    %v823 = vld [vmem:[#allocation5 + $0x360] sm:$0xff]
    %v824 = vld [vmem:[#allocation5 + $0x368] sm:$0xff]
    %v825 = vld [vmem:[#allocation5 + $0x370] sm:$0xff]
    %v826 = vld [vmem:[#allocation5 + $0x378] sm:$0xff]
    %v827 = vld [vmem:[#allocation5 + $0x380] sm:$0xff]
    %v828 = vld [vmem:[#allocation5 + $0x388] sm:$0xff]
    %v829 = vld [vmem:[#allocation5 + $0x390] sm:$0xff]
    %v830 = vld [vmem:[#allocation5 + $0x398] sm:$0xff]
    %v831 = vld [vmem:[#allocation5 + $0x3a0] sm:$0xff]
    %v832 = vld [vmem:[#allocation5 + $0x3a8] sm:$0xff]
    %v833 = vld [vmem:[#allocation5 + $0x3b0] sm:$0xff]
    %v834 = vld [vmem:[#allocation5 + $0x3b8] sm:$0xff]
    %v835 = vld [vmem:[#allocation5 + $0x3c0] sm:$0xff]
    %v836 = vld [vmem:[#allocation5 + $0x3c8] sm:$0xff]
    %v837 = vld [vmem:[#allocation5 + $0x3d0] sm:$0xff]
    %v838 = vld [vmem:[#allocation5 + $0x3d8] sm:$0xff]
    %v839 = vld [vmem:[#allocation5 + $0x3e0] sm:$0xff]
    %v840 = vld [vmem:[#allocation5 + $0x3e8] sm:$0xff]
    %v841 = vld [vmem:[#allocation5 + $0x3f0] sm:$0xff]
    %v842 = vld [vmem:[#allocation5 + $0x3f8] sm:$0xff]
    %v843 = vld [vmem:[#allocation5 + $0x400] sm:$0xff]
    %v844 = vld [vmem:[#allocation5 + $0x408] sm:$0xff]
    %v845 = vld [vmem:[#allocation5 + $0x410] sm:$0xff]
    %v846 = vld [vmem:[#allocation5 + $0x418] sm:$0xff]
    %v847 = vld [vmem:[#allocation5 + $0x420] sm:$0xff]
    %v848 = vld [vmem:[#allocation5 + $0x428] sm:$0xff]
    %v849 = vld [vmem:[#allocation5 + $0x430] sm:$0xff]
    %v850 = vld [vmem:[#allocation5 + $0x438] sm:$0xff]
    %v851 = vld [vmem:[#allocation5 + $0x440] sm:$0xff]
    %v852 = vld [vmem:[#allocation5 + $0x448] sm:$0xff]
    %v853 = vld [vmem:[#allocation5 + $0x450] sm:$0xff]
    %v854 = vld [vmem:[#allocation5 + $0x458] sm:$0xff]
    %v855 = vld [vmem:[#allocation5 + $0x460] sm:$0xff]
    %v856 = vld [vmem:[#allocation5 + $0x468] sm:$0xff]
    %v857 = vld [vmem:[#allocation5 + $0x470] sm:$0xff]
    %v858 = vld [vmem:[#allocation5 + $0x478] sm:$0xff]
    %v859 = vld [vmem:[#allocation5 + $0x480] sm:$0xff]
    %v860 = vld [vmem:[#allocation5 + $0x488] sm:$0xff]
    %v861 = vld [vmem:[#allocation5 + $0x490] sm:$0xff]
    %v862 = vld [vmem:[#allocation5 + $0x498] sm:$0xff]
    %v863 = vld [vmem:[#allocation5 + $0x4a0] sm:$0xff]
    %v864 = vld [vmem:[#allocation5 + $0x4a8] sm:$0xff]
    %v865 = vld [vmem:[#allocation5 + $0x4b0] sm:$0xff]
    %v866 = vld [vmem:[#allocation5 + $0x4b8] sm:$0xff]
    %v867 = vld [vmem:[#allocation5 + $0x4c0] sm:$0xff]
    %v868 = vld [vmem:[#allocation5 + $0x4c8] sm:$0xff]
    %v869 = vld [vmem:[#allocation5 + $0x4d0] sm:$0xff]
    %v870 = vld [vmem:[#allocation5 + $0x4d8] sm:$0xff]
    %v871 = vld [vmem:[#allocation5 + $0x4e0] sm:$0xff]
    %v872 = vld [vmem:[#allocation5 + $0x4e8] sm:$0xff]
    %v873 = vld [vmem:[#allocation5 + $0x4f0] sm:$0xff]
    %v874 = vld [vmem:[#allocation5 + $0x4f8] sm:$0xff]
    %v875 = vld [vmem:[#allocation5 + $0x500] sm:$0xff]
    %v876 = vld [vmem:[#allocation5 + $0x508] sm:$0xff]
    %v877 = vld [vmem:[#allocation5 + $0x510] sm:$0xff]
    %v878 = vld [vmem:[#allocation5 + $0x518] sm:$0xff]
    %v879 = vld [vmem:[#allocation5 + $0x520] sm:$0xff]
    %v880 = vld [vmem:[#allocation5 + $0x528] sm:$0xff]
    %v881 = vld [vmem:[#allocation5 + $0x530] sm:$0xff]
    %v882 = vld [vmem:[#allocation5 + $0x538] sm:$0xff]
    %v883 = vld [vmem:[#allocation5 + $0x540] sm:$0xff]
    %v884 = vld [vmem:[#allocation5 + $0x548] sm:$0xff]
    %v885 = vld [vmem:[#allocation5 + $0x550] sm:$0xff]
    %v886 = vld [vmem:[#allocation5 + $0x558] sm:$0xff]
    %v887 = vld [vmem:[#allocation5 + $0x560] sm:$0xff]
    %v888 = vld [vmem:[#allocation5 + $0x568] sm:$0xff]
    %v889 = vld [vmem:[#allocation5 + $0x570] sm:$0xff]
    %v890 = vld [vmem:[#allocation5 + $0x578] sm:$0xff]
    %v891 = vld [vmem:[#allocation5 + $0x580] sm:$0xff]
    %v892 = vld [vmem:[#allocation5 + $0x588] sm:$0xff]
    %v893 = vld [vmem:[#allocation5 + $0x590] sm:$0xff]
    %v894 = vld [vmem:[#allocation5 + $0x598] sm:$0xff]
    %v895 = vld [vmem:[#allocation5 + $0x5a0] sm:$0xff]
    %v896 = vld [vmem:[#allocation5 + $0x5a8] sm:$0xff]
    %v897 = vld [vmem:[#allocation5 + $0x5b0] sm:$0xff]
    %v898 = vld [vmem:[#allocation5 + $0x5b8] sm:$0xff]
    %v899 = vld [vmem:[#allocation5 + $0x5c0] sm:$0xff]
    %v900 = vld [vmem:[#allocation5 + $0x5c8] sm:$0xff]
    %v901 = vld [vmem:[#allocation5 + $0x5d0] sm:$0xff]
    %v902 = vld [vmem:[#allocation5 + $0x5d8] sm:$0xff]
    %v903 = vld [vmem:[#allocation5 + $0x5e0] sm:$0xff]
    %v904 = vld [vmem:[#allocation5 + $0x5e8] sm:$0xff]
    %v905 = vld [vmem:[#allocation5 + $0x5f0] sm:$0xff]
    %v906 = vld [vmem:[#allocation5 + $0x5f8] sm:$0xff]
    %v907 = vld [vmem:[#allocation5 + $0x600] sm:$0xff]
    %v908 = vld [vmem:[#allocation5 + $0x608] sm:$0xff]
    %v909 = vld [vmem:[#allocation5 + $0x610] sm:$0xff]
    %v910 = vld [vmem:[#allocation5 + $0x618] sm:$0xff]
    %v911 = vld [vmem:[#allocation5 + $0x620] sm:$0xff]
    %v912 = vld [vmem:[#allocation5 + $0x628] sm:$0xff]
    %v913 = vld [vmem:[#allocation5 + $0x630] sm:$0xff]
    %v914 = vld [vmem:[#allocation5 + $0x638] sm:$0xff]
    %v915 = vld [vmem:[#allocation5 + $0x640] sm:$0xff]
    %v916 = vld [vmem:[#allocation5 + $0x648] sm:$0xff]
    %v917 = vld [vmem:[#allocation5 + $0x650] sm:$0xff]
    %v918 = vld [vmem:[#allocation5 + $0x658] sm:$0xff]
    %v919 = vld [vmem:[#allocation5 + $0x660] sm:$0xff]
    %v920 = vld [vmem:[#allocation5 + $0x668] sm:$0xff]
    %v921 = vld [vmem:[#allocation5 + $0x670] sm:$0xff]
    %v922 = vld [vmem:[#allocation5 + $0x678] sm:$0xff]
    %v923 = vld [vmem:[#allocation5 + $0x680] sm:$0xff]
    %v924 = vld [vmem:[#allocation5 + $0x688] sm:$0xff]
    %v925 = vld [vmem:[#allocation5 + $0x690] sm:$0xff]
    %v926 = vld [vmem:[#allocation5 + $0x698] sm:$0xff]
    %v927 = vld [vmem:[#allocation5 + $0x6a0] sm:$0xff]
    %v928 = vld [vmem:[#allocation5 + $0x6a8] sm:$0xff]
    %v929 = vld [vmem:[#allocation5 + $0x6b0] sm:$0xff]
    %v930 = vld [vmem:[#allocation5 + $0x6b8] sm:$0xff]
    %v931 = vld [vmem:[#allocation5 + $0x6c0] sm:$0xff]
    %v932 = vld [vmem:[#allocation5 + $0x6c8] sm:$0xff]
    %v933 = vld [vmem:[#allocation5 + $0x6d0] sm:$0xff]
    %v934 = vld [vmem:[#allocation5 + $0x6d8] sm:$0xff]
    %v935 = vld [vmem:[#allocation5 + $0x6e0] sm:$0xff]
    %v936 = vld [vmem:[#allocation5 + $0x6e8] sm:$0xff]
    %v937 = vld [vmem:[#allocation5 + $0x6f0] sm:$0xff]
    %v938 = vld [vmem:[#allocation5 + $0x6f8] sm:$0xff]
    %v939 = vld [vmem:[#allocation5 + $0x700] sm:$0xff]
    %v940 = vld [vmem:[#allocation5 + $0x708] sm:$0xff]
    %v941 = vld [vmem:[#allocation5 + $0x710] sm:$0xff]
    %v942 = vld [vmem:[#allocation5 + $0x718] sm:$0xff]
    %v943 = vld [vmem:[#allocation5 + $0x720] sm:$0xff]
    %v944 = vld [vmem:[#allocation5 + $0x728] sm:$0xff]
    %v945 = vld [vmem:[#allocation5 + $0x730] sm:$0xff]
    %v946 = vld [vmem:[#allocation5 + $0x738] sm:$0xff]
    %v947 = vld [vmem:[#allocation5 + $0x740] sm:$0xff]
    %v948 = vld [vmem:[#allocation5 + $0x748] sm:$0xff]
    %v949 = vld [vmem:[#allocation5 + $0x750] sm:$0xff]
    %v950 = vld [vmem:[#allocation5 + $0x758] sm:$0xff]
    %v951 = vld [vmem:[#allocation5 + $0x760] sm:$0xff]
    %v952 = vld [vmem:[#allocation5 + $0x768] sm:$0xff]
    %v953 = vld [vmem:[#allocation5 + $0x770] sm:$0xff]
    %v954 = vld [vmem:[#allocation5 + $0x778] sm:$0xff]
    %v955 = vld [vmem:[#allocation5 + $0x780] sm:$0xff]
    %v956 = vld [vmem:[#allocation5 + $0x788] sm:$0xff]
    %v957 = vld [vmem:[#allocation5 + $0x790] sm:$0xff]
    %v958 = vld [vmem:[#allocation5 + $0x798] sm:$0xff]
    %v959 = vld [vmem:[#allocation5 + $0x7a0] sm:$0xff]
    %v960 = vld [vmem:[#allocation5 + $0x7a8] sm:$0xff]
    %v961 = vld [vmem:[#allocation5 + $0x7b0] sm:$0xff]
    %v962 = vld [vmem:[#allocation5 + $0x7b8] sm:$0xff]
    %v963 = vld [vmem:[#allocation5 + $0x7c0] sm:$0xff]
    %v964 = vld [vmem:[#allocation5 + $0x7c8] sm:$0xff]
    %v965 = vld [vmem:[#allocation5 + $0x7d0] sm:$0xff]
    %v966 = vld [vmem:[#allocation5 + $0x7d8] sm:$0xff]
    %v967 = vld [vmem:[#allocation5 + $0x7e0] sm:$0xff]
    %v968 = vld [vmem:[#allocation5 + $0x7e8] sm:$0xff]
    %v969 = vld [vmem:[#allocation5 + $0x7f0] sm:$0xff]
    %v970 = vld [vmem:[#allocation5 + $0x7f8] sm:$0xff]
    %v971 = vld [vmem:[%s4] sm:$0xf]
    %v973 = vlaneseq
    %v974 = vshrl.u32 %v973, 7
    %v975 = vsub.s32 0, %v974
    %v976 = vrot.slane %v971, %v975
    %v977 = vlaneseq
    %v978 = vshrl.u32 %v977, 7
    %v979 = vsub.s32 1, %v978
    %v980 = vrot.slane %v971, %v979
    %v981 = vlaneseq
    %v982 = vshrl.u32 %v981, 7
    %v983 = vsub.s32 2, %v982
    %v984 = vrot.slane %v971, %v983
    %v985 = vlaneseq
    %v986 = vshrl.u32 %v985, 7
    %v987 = vsub.s32 3, %v986
    %v988 = vrot.slane %v971, %v987
    %v1249 = vunpack.c.l.b16 %v715
    %v1250 = vunpack.c.h.b16 %v715
    %v1251 = vunpack.c.l.b16 %v716
    %v1252 = vunpack.c.h.b16 %v716
    %v1253 = vunpack.c.l.b16 %v717
    %v1254 = vunpack.c.h.b16 %v717
    %v1255 = vunpack.c.l.b16 %v718
    %v1256 = vunpack.c.h.b16 %v718
    %v1257 = vunpack.c.l.b16 %v719
    %v1258 = vunpack.c.h.b16 %v719
    %v1259 = vunpack.c.l.b16 %v720
    %v1260 = vunpack.c.h.b16 %v720
    %v1261 = vunpack.c.l.b16 %v721
    %v1262 = vunpack.c.h.b16 %v721
    %v1263 = vunpack.c.l.b16 %v722
    %v1264 = vunpack.c.h.b16 %v722
    %v1265 = vunpack.c.l.b16 %v723
    %v1266 = vunpack.c.h.b16 %v723
    %v1267 = vunpack.c.l.b16 %v724
    %v1268 = vunpack.c.h.b16 %v724
    %v1269 = vunpack.c.l.b16 %v725
    %v1270 = vunpack.c.h.b16 %v725
    %v1271 = vunpack.c.l.b16 %v726
    %v1272 = vunpack.c.h.b16 %v726
    %v1273 = vunpack.c.l.b16 %v727
    %v1274 = vunpack.c.h.b16 %v727
    %v1275 = vunpack.c.l.b16 %v728
    %v1276 = vunpack.c.h.b16 %v728
    %v1277 = vunpack.c.l.b16 %v729
    %v1278 = vunpack.c.h.b16 %v729
    %v1279 = vunpack.c.l.b16 %v730
    %v1280 = vunpack.c.h.b16 %v730
    %v1281 = vunpack.c.l.b16 %v731
    %v1282 = vunpack.c.h.b16 %v731
    %v1283 = vunpack.c.l.b16 %v732
    %v1284 = vunpack.c.h.b16 %v732
    %v1285 = vunpack.c.l.b16 %v733
    %v1286 = vunpack.c.h.b16 %v733
    %v1287 = vunpack.c.l.b16 %v734
    %v1288 = vunpack.c.h.b16 %v734
    %v1289 = vunpack.c.l.b16 %v735
    %v1290 = vunpack.c.h.b16 %v735
    %v1291 = vunpack.c.l.b16 %v736
    %v1292 = vunpack.c.h.b16 %v736
    %v1293 = vunpack.c.l.b16 %v737
    %v1294 = vunpack.c.h.b16 %v737
    %v1295 = vunpack.c.l.b16 %v738
    %v1296 = vunpack.c.h.b16 %v738
    %v1297 = vunpack.c.l.b16 %v739
    %v1298 = vunpack.c.h.b16 %v739
    %v1299 = vunpack.c.l.b16 %v740
    %v1300 = vunpack.c.h.b16 %v740
    %v1301 = vunpack.c.l.b16 %v741
    %v1302 = vunpack.c.h.b16 %v741
    %v1303 = vunpack.c.l.b16 %v742
    %v1304 = vunpack.c.h.b16 %v742
    %v1305 = vunpack.c.l.b16 %v743
    %v1306 = vunpack.c.h.b16 %v743
    %v1307 = vunpack.c.l.b16 %v744
    %v1308 = vunpack.c.h.b16 %v744
    %v1309 = vunpack.c.l.b16 %v745
    %v1310 = vunpack.c.h.b16 %v745
    %v1311 = vunpack.c.l.b16 %v746
    %v1312 = vunpack.c.h.b16 %v746
    %v1313 = vunpack.c.l.b16 %v747
    %v1314 = vunpack.c.h.b16 %v747
    %v1315 = vunpack.c.l.b16 %v748
    %v1316 = vunpack.c.h.b16 %v748
    %v1317 = vunpack.c.l.b16 %v749
    %v1318 = vunpack.c.h.b16 %v749
    %v1319 = vunpack.c.l.b16 %v750
    %v1320 = vunpack.c.h.b16 %v750
    %v1321 = vunpack.c.l.b16 %v751
    %v1322 = vunpack.c.h.b16 %v751
    %v1323 = vunpack.c.l.b16 %v752
    %v1324 = vunpack.c.h.b16 %v752
    %v1325 = vunpack.c.l.b16 %v753
    %v1326 = vunpack.c.h.b16 %v753
    %v1327 = vunpack.c.l.b16 %v754
    %v1328 = vunpack.c.h.b16 %v754
    %v1329 = vunpack.c.l.b16 %v755
    %v1330 = vunpack.c.h.b16 %v755
    %v1331 = vunpack.c.l.b16 %v756
    %v1332 = vunpack.c.h.b16 %v756
    %v1333 = vunpack.c.l.b16 %v757
    %v1334 = vunpack.c.h.b16 %v757
    %v1335 = vunpack.c.l.b16 %v758
    %v1336 = vunpack.c.h.b16 %v758
    %v1337 = vunpack.c.l.b16 %v759
    %v1338 = vunpack.c.h.b16 %v759
    %v1339 = vunpack.c.l.b16 %v760
    %v1340 = vunpack.c.h.b16 %v760
    %v1341 = vunpack.c.l.b16 %v761
    %v1342 = vunpack.c.h.b16 %v761
    %v1343 = vunpack.c.l.b16 %v762
    %v1344 = vunpack.c.h.b16 %v762
    %v1345 = vunpack.c.l.b16 %v763
    %v1346 = vunpack.c.h.b16 %v763
    %v1347 = vunpack.c.l.b16 %v764
    %v1348 = vunpack.c.h.b16 %v764
    %v1349 = vunpack.c.l.b16 %v765
    %v1350 = vunpack.c.h.b16 %v765
    %v1351 = vunpack.c.l.b16 %v766
    %v1352 = vunpack.c.h.b16 %v766
    %v1353 = vunpack.c.l.b16 %v767
    %v1354 = vunpack.c.h.b16 %v767
    %v1355 = vunpack.c.l.b16 %v768
    %v1356 = vunpack.c.h.b16 %v768
    %v1357 = vunpack.c.l.b16 %v769
    %v1358 = vunpack.c.h.b16 %v769
    %v1359 = vunpack.c.l.b16 %v770
    %v1360 = vunpack.c.h.b16 %v770
    %v1361 = vunpack.c.l.b16 %v771
    %v1362 = vunpack.c.h.b16 %v771
    %v1363 = vunpack.c.l.b16 %v772
    %v1364 = vunpack.c.h.b16 %v772
    %v1365 = vunpack.c.l.b16 %v773
    %v1366 = vunpack.c.h.b16 %v773
    %v1367 = vunpack.c.l.b16 %v774
    %v1368 = vunpack.c.h.b16 %v774
    %v1369 = vunpack.c.l.b16 %v775
    %v1370 = vunpack.c.h.b16 %v775
    %v1371 = vunpack.c.l.b16 %v776
    %v1372 = vunpack.c.h.b16 %v776
    %v1373 = vunpack.c.l.b16 %v777
    %v1374 = vunpack.c.h.b16 %v777
    %v1375 = vunpack.c.l.b16 %v778
    %v1376 = vunpack.c.h.b16 %v778
    %v1377 = vunpack.c.l.b16 %v779
    %v1378 = vunpack.c.h.b16 %v779
    %v1379 = vunpack.c.l.b16 %v780
    %v1380 = vunpack.c.h.b16 %v780
    %v1381 = vunpack.c.l.b16 %v781
    %v1382 = vunpack.c.h.b16 %v781
    %v1383 = vunpack.c.l.b16 %v782
    %v1384 = vunpack.c.h.b16 %v782
    %v1385 = vunpack.c.l.b16 %v783
    %v1386 = vunpack.c.h.b16 %v783
    %v1387 = vunpack.c.l.b16 %v784
    %v1388 = vunpack.c.h.b16 %v784
    %v1389 = vunpack.c.l.b16 %v785
    %v1390 = vunpack.c.h.b16 %v785
    %v1391 = vunpack.c.l.b16 %v786
    %v1392 = vunpack.c.h.b16 %v786
    %v1393 = vunpack.c.l.b16 %v787
    %v1394 = vunpack.c.h.b16 %v787
    %v1395 = vunpack.c.l.b16 %v788
    %v1396 = vunpack.c.h.b16 %v788
    %v1397 = vunpack.c.l.b16 %v789
    %v1398 = vunpack.c.h.b16 %v789
    %v1399 = vunpack.c.l.b16 %v790
    %v1400 = vunpack.c.h.b16 %v790
    %v1401 = vunpack.c.l.b16 %v791
    %v1402 = vunpack.c.h.b16 %v791
    %v1403 = vunpack.c.l.b16 %v792
    %v1404 = vunpack.c.h.b16 %v792
    %v1405 = vunpack.c.l.b16 %v793
    %v1406 = vunpack.c.h.b16 %v793
    %v1407 = vunpack.c.l.b16 %v794
    %v1408 = vunpack.c.h.b16 %v794
    %v1409 = vunpack.c.l.b16 %v795
    %v1410 = vunpack.c.h.b16 %v795
    %v1411 = vunpack.c.l.b16 %v796
    %v1412 = vunpack.c.h.b16 %v796
    %v1413 = vunpack.c.l.b16 %v797
    %v1414 = vunpack.c.h.b16 %v797
    %v1415 = vunpack.c.l.b16 %v798
    %v1416 = vunpack.c.h.b16 %v798
    %v1417 = vunpack.c.l.b16 %v799
    %v1418 = vunpack.c.h.b16 %v799
    %v1419 = vunpack.c.l.b16 %v800
    %v1420 = vunpack.c.h.b16 %v800
    %v1421 = vunpack.c.l.b16 %v801
    %v1422 = vunpack.c.h.b16 %v801
    %v1423 = vunpack.c.l.b16 %v802
    %v1424 = vunpack.c.h.b16 %v802
    %v1425 = vunpack.c.l.b16 %v803
    %v1426 = vunpack.c.h.b16 %v803
    %v1427 = vunpack.c.l.b16 %v804
    %v1428 = vunpack.c.h.b16 %v804
    %v1429 = vunpack.c.l.b16 %v805
    %v1430 = vunpack.c.h.b16 %v805
    %v1431 = vunpack.c.l.b16 %v806
    %v1432 = vunpack.c.h.b16 %v806
    %v1433 = vunpack.c.l.b16 %v807
    %v1434 = vunpack.c.h.b16 %v807
    %v1435 = vunpack.c.l.b16 %v808
    %v1436 = vunpack.c.h.b16 %v808
    %v1437 = vunpack.c.l.b16 %v809
    %v1438 = vunpack.c.h.b16 %v809
    %v1439 = vunpack.c.l.b16 %v810
    %v1440 = vunpack.c.h.b16 %v810
    %v1441 = vunpack.c.l.b16 %v811
    %v1442 = vunpack.c.h.b16 %v811
    %v1443 = vunpack.c.l.b16 %v812
    %v1444 = vunpack.c.h.b16 %v812
    %v1445 = vunpack.c.l.b16 %v813
    %v1446 = vunpack.c.h.b16 %v813
    %v1447 = vunpack.c.l.b16 %v814
    %v1448 = vunpack.c.h.b16 %v814
    %v1449 = vunpack.c.l.b16 %v815
    %v1450 = vunpack.c.h.b16 %v815
    %v1451 = vunpack.c.l.b16 %v816
    %v1452 = vunpack.c.h.b16 %v816
    %v1453 = vunpack.c.l.b16 %v817
    %v1454 = vunpack.c.h.b16 %v817
    %v1455 = vunpack.c.l.b16 %v818
    %v1456 = vunpack.c.h.b16 %v818
    %v1457 = vunpack.c.l.b16 %v819
    %v1458 = vunpack.c.h.b16 %v819
    %v1459 = vunpack.c.l.b16 %v820
    %v1460 = vunpack.c.h.b16 %v820
    %v1461 = vunpack.c.l.b16 %v821
    %v1462 = vunpack.c.h.b16 %v821
    %v1463 = vunpack.c.l.b16 %v822
    %v1464 = vunpack.c.h.b16 %v822
    %v1465 = vunpack.c.l.b16 %v823
    %v1466 = vunpack.c.h.b16 %v823
    %v1467 = vunpack.c.l.b16 %v824
    %v1468 = vunpack.c.h.b16 %v824
    %v1469 = vunpack.c.l.b16 %v825
    %v1470 = vunpack.c.h.b16 %v825
    %v1471 = vunpack.c.l.b16 %v826
    %v1472 = vunpack.c.h.b16 %v826
    %v1473 = vunpack.c.l.b16 %v827
    %v1474 = vunpack.c.h.b16 %v827
    %v1475 = vunpack.c.l.b16 %v828
    %v1476 = vunpack.c.h.b16 %v828
    %v1477 = vunpack.c.l.b16 %v829
    %v1478 = vunpack.c.h.b16 %v829
    %v1479 = vunpack.c.l.b16 %v830
    %v1480 = vunpack.c.h.b16 %v830
    %v1481 = vunpack.c.l.b16 %v831
    %v1482 = vunpack.c.h.b16 %v831
    %v1483 = vunpack.c.l.b16 %v832
    %v1484 = vunpack.c.h.b16 %v832
    %v1485 = vunpack.c.l.b16 %v833
    %v1486 = vunpack.c.h.b16 %v833
    %v1487 = vunpack.c.l.b16 %v834
    %v1488 = vunpack.c.h.b16 %v834
    %v1489 = vunpack.c.l.b16 %v835
    %v1490 = vunpack.c.h.b16 %v835
    %v1491 = vunpack.c.l.b16 %v836
    %v1492 = vunpack.c.h.b16 %v836
    %v1493 = vunpack.c.l.b16 %v837
    %v1494 = vunpack.c.h.b16 %v837
    %v1495 = vunpack.c.l.b16 %v838
    %v1496 = vunpack.c.h.b16 %v838
    %v1497 = vunpack.c.l.b16 %v839
    %v1498 = vunpack.c.h.b16 %v839
    %v1499 = vunpack.c.l.b16 %v840
    %v1500 = vunpack.c.h.b16 %v840
    %v1501 = vunpack.c.l.b16 %v841
    %v1502 = vunpack.c.h.b16 %v841
    %v1503 = vunpack.c.l.b16 %v842
    %v1504 = vunpack.c.h.b16 %v842
    %v1505 = vunpack.c.l.b16 %v843
    %v1506 = vunpack.c.h.b16 %v843
    %v1507 = vunpack.c.l.b16 %v844
    %v1508 = vunpack.c.h.b16 %v844
    %v1509 = vunpack.c.l.b16 %v845
    %v1510 = vunpack.c.h.b16 %v845
    %v1511 = vunpack.c.l.b16 %v846
    %v1512 = vunpack.c.h.b16 %v846
    %v1513 = vunpack.c.l.b16 %v847
    %v1514 = vunpack.c.h.b16 %v847
    %v1515 = vunpack.c.l.b16 %v848
    %v1516 = vunpack.c.h.b16 %v848
    %v1517 = vunpack.c.l.b16 %v849
    %v1518 = vunpack.c.h.b16 %v849
    %v1519 = vunpack.c.l.b16 %v850
    %v1520 = vunpack.c.h.b16 %v850
    %v1521 = vunpack.c.l.b16 %v851
    %v1522 = vunpack.c.h.b16 %v851
    %v1523 = vunpack.c.l.b16 %v852
    %v1524 = vunpack.c.h.b16 %v852
    %v1525 = vunpack.c.l.b16 %v853
    %v1526 = vunpack.c.h.b16 %v853
    %v1527 = vunpack.c.l.b16 %v854
    %v1528 = vunpack.c.h.b16 %v854
    %v1529 = vunpack.c.l.b16 %v855
    %v1530 = vunpack.c.h.b16 %v855
    %v1531 = vunpack.c.l.b16 %v856
    %v1532 = vunpack.c.h.b16 %v856
    %v1533 = vunpack.c.l.b16 %v857
    %v1534 = vunpack.c.h.b16 %v857
    %v1535 = vunpack.c.l.b16 %v858
    %v1536 = vunpack.c.h.b16 %v858
    %v1537 = vunpack.c.l.b16 %v859
    %v1538 = vunpack.c.h.b16 %v859
    %v1539 = vunpack.c.l.b16 %v860
    %v1540 = vunpack.c.h.b16 %v860
    %v1541 = vunpack.c.l.b16 %v861
    %v1542 = vunpack.c.h.b16 %v861
    %v1543 = vunpack.c.l.b16 %v862
    %v1544 = vunpack.c.h.b16 %v862
    %v1545 = vunpack.c.l.b16 %v863
    %v1546 = vunpack.c.h.b16 %v863
    %v1547 = vunpack.c.l.b16 %v864
    %v1548 = vunpack.c.h.b16 %v864
    %v1549 = vunpack.c.l.b16 %v865
    %v1550 = vunpack.c.h.b16 %v865
    %v1551 = vunpack.c.l.b16 %v866
    %v1552 = vunpack.c.h.b16 %v866
    %v1553 = vunpack.c.l.b16 %v867
    %v1554 = vunpack.c.h.b16 %v867
    %v1555 = vunpack.c.l.b16 %v868
    %v1556 = vunpack.c.h.b16 %v868
    %v1557 = vunpack.c.l.b16 %v869
    %v1558 = vunpack.c.h.b16 %v869
    %v1559 = vunpack.c.l.b16 %v870
    %v1560 = vunpack.c.h.b16 %v870
    %v1561 = vunpack.c.l.b16 %v871
    %v1562 = vunpack.c.h.b16 %v871
    %v1563 = vunpack.c.l.b16 %v872
    %v1564 = vunpack.c.h.b16 %v872
    %v1565 = vunpack.c.l.b16 %v873
    %v1566 = vunpack.c.h.b16 %v873
    %v1567 = vunpack.c.l.b16 %v874
    %v1568 = vunpack.c.h.b16 %v874
    %v1569 = vunpack.c.l.b16 %v875
    %v1570 = vunpack.c.h.b16 %v875
    %v1571 = vunpack.c.l.b16 %v876
    %v1572 = vunpack.c.h.b16 %v876
    %v1573 = vunpack.c.l.b16 %v877
    %v1574 = vunpack.c.h.b16 %v877
    %v1575 = vunpack.c.l.b16 %v878
    %v1576 = vunpack.c.h.b16 %v878
    %v1577 = vunpack.c.l.b16 %v879
    %v1578 = vunpack.c.h.b16 %v879
    %v1579 = vunpack.c.l.b16 %v880
    %v1580 = vunpack.c.h.b16 %v880
    %v1581 = vunpack.c.l.b16 %v881
    %v1582 = vunpack.c.h.b16 %v881
    %v1583 = vunpack.c.l.b16 %v882
    %v1584 = vunpack.c.h.b16 %v882
    %v1585 = vunpack.c.l.b16 %v883
    %v1586 = vunpack.c.h.b16 %v883
    %v1587 = vunpack.c.l.b16 %v884
    %v1588 = vunpack.c.h.b16 %v884
    %v1589 = vunpack.c.l.b16 %v885
    %v1590 = vunpack.c.h.b16 %v885
    %v1591 = vunpack.c.l.b16 %v886
    %v1592 = vunpack.c.h.b16 %v886
    %v1593 = vunpack.c.l.b16 %v887
    %v1594 = vunpack.c.h.b16 %v887
    %v1595 = vunpack.c.l.b16 %v888
    %v1596 = vunpack.c.h.b16 %v888
    %v1597 = vunpack.c.l.b16 %v889
    %v1598 = vunpack.c.h.b16 %v889
    %v1599 = vunpack.c.l.b16 %v890
    %v1600 = vunpack.c.h.b16 %v890
    %v1601 = vunpack.c.l.b16 %v891
    %v1602 = vunpack.c.h.b16 %v891
    %v1603 = vunpack.c.l.b16 %v892
    %v1604 = vunpack.c.h.b16 %v892
    %v1605 = vunpack.c.l.b16 %v893
    %v1606 = vunpack.c.h.b16 %v893
    %v1607 = vunpack.c.l.b16 %v894
    %v1608 = vunpack.c.h.b16 %v894
    %v1609 = vunpack.c.l.b16 %v895
    %v1610 = vunpack.c.h.b16 %v895
    %v1611 = vunpack.c.l.b16 %v896
    %v1612 = vunpack.c.h.b16 %v896
    %v1613 = vunpack.c.l.b16 %v897
    %v1614 = vunpack.c.h.b16 %v897
    %v1615 = vunpack.c.l.b16 %v898
    %v1616 = vunpack.c.h.b16 %v898
    %v1617 = vunpack.c.l.b16 %v899
    %v1618 = vunpack.c.h.b16 %v899
    %v1619 = vunpack.c.l.b16 %v900
    %v1620 = vunpack.c.h.b16 %v900
    %v1621 = vunpack.c.l.b16 %v901
    %v1622 = vunpack.c.h.b16 %v901
    %v1623 = vunpack.c.l.b16 %v902
    %v1624 = vunpack.c.h.b16 %v902
    %v1625 = vunpack.c.l.b16 %v903
    %v1626 = vunpack.c.h.b16 %v903
    %v1627 = vunpack.c.l.b16 %v904
    %v1628 = vunpack.c.h.b16 %v904
    %v1629 = vunpack.c.l.b16 %v905
    %v1630 = vunpack.c.h.b16 %v905
    %v1631 = vunpack.c.l.b16 %v906
    %v1632 = vunpack.c.h.b16 %v906
    %v1633 = vunpack.c.l.b16 %v907
    %v1634 = vunpack.c.h.b16 %v907
    %v1635 = vunpack.c.l.b16 %v908
    %v1636 = vunpack.c.h.b16 %v908
    %v1637 = vunpack.c.l.b16 %v909
    %v1638 = vunpack.c.h.b16 %v909
    %v1639 = vunpack.c.l.b16 %v910
    %v1640 = vunpack.c.h.b16 %v910
    %v1641 = vunpack.c.l.b16 %v911
    %v1642 = vunpack.c.h.b16 %v911
    %v1643 = vunpack.c.l.b16 %v912
    %v1644 = vunpack.c.h.b16 %v912
    %v1645 = vunpack.c.l.b16 %v913
    %v1646 = vunpack.c.h.b16 %v913
    %v1647 = vunpack.c.l.b16 %v914
    %v1648 = vunpack.c.h.b16 %v914
    %v1649 = vunpack.c.l.b16 %v915
    %v1650 = vunpack.c.h.b16 %v915
    %v1651 = vunpack.c.l.b16 %v916
    %v1652 = vunpack.c.h.b16 %v916
    %v1653 = vunpack.c.l.b16 %v917
    %v1654 = vunpack.c.h.b16 %v917
    %v1655 = vunpack.c.l.b16 %v918
    %v1656 = vunpack.c.h.b16 %v918
    %v1657 = vunpack.c.l.b16 %v919
    %v1658 = vunpack.c.h.b16 %v919
    %v1659 = vunpack.c.l.b16 %v920
    %v1660 = vunpack.c.h.b16 %v920
    %v1661 = vunpack.c.l.b16 %v921
    %v1662 = vunpack.c.h.b16 %v921
    %v1663 = vunpack.c.l.b16 %v922
    %v1664 = vunpack.c.h.b16 %v922
    %v1665 = vunpack.c.l.b16 %v923
    %v1666 = vunpack.c.h.b16 %v923
    %v1667 = vunpack.c.l.b16 %v924
    %v1668 = vunpack.c.h.b16 %v924
    %v1669 = vunpack.c.l.b16 %v925
    %v1670 = vunpack.c.h.b16 %v925
    %v1671 = vunpack.c.l.b16 %v926
    %v1672 = vunpack.c.h.b16 %v926
    %v1673 = vunpack.c.l.b16 %v927
    %v1674 = vunpack.c.h.b16 %v927
    %v1675 = vunpack.c.l.b16 %v928
    %v1676 = vunpack.c.h.b16 %v928
    %v1677 = vunpack.c.l.b16 %v929
    %v1678 = vunpack.c.h.b16 %v929
    %v1679 = vunpack.c.l.b16 %v930
    %v1680 = vunpack.c.h.b16 %v930
    %v1681 = vunpack.c.l.b16 %v931
    %v1682 = vunpack.c.h.b16 %v931
    %v1683 = vunpack.c.l.b16 %v932
    %v1684 = vunpack.c.h.b16 %v932
    %v1685 = vunpack.c.l.b16 %v933
    %v1686 = vunpack.c.h.b16 %v933
    %v1687 = vunpack.c.l.b16 %v934
    %v1688 = vunpack.c.h.b16 %v934
    %v1689 = vunpack.c.l.b16 %v935
    %v1690 = vunpack.c.h.b16 %v935
    %v1691 = vunpack.c.l.b16 %v936
    %v1692 = vunpack.c.h.b16 %v936
    %v1693 = vunpack.c.l.b16 %v937
    %v1694 = vunpack.c.h.b16 %v937
    %v1695 = vunpack.c.l.b16 %v938
    %v1696 = vunpack.c.h.b16 %v938
    %v1697 = vunpack.c.l.b16 %v939
    %v1698 = vunpack.c.h.b16 %v939
    %v1699 = vunpack.c.l.b16 %v940
    %v1700 = vunpack.c.h.b16 %v940
    %v1701 = vunpack.c.l.b16 %v941
    %v1702 = vunpack.c.h.b16 %v941
    %v1703 = vunpack.c.l.b16 %v942
    %v1704 = vunpack.c.h.b16 %v942
    %v1705 = vunpack.c.l.b16 %v943
    %v1706 = vunpack.c.h.b16 %v943
    %v1707 = vunpack.c.l.b16 %v944
    %v1708 = vunpack.c.h.b16 %v944
    %v1709 = vunpack.c.l.b16 %v945
    %v1710 = vunpack.c.h.b16 %v945
    %v1711 = vunpack.c.l.b16 %v946
    %v1712 = vunpack.c.h.b16 %v946
    %v1713 = vunpack.c.l.b16 %v947
    %v1714 = vunpack.c.h.b16 %v947
    %v1715 = vunpack.c.l.b16 %v948
    %v1716 = vunpack.c.h.b16 %v948
    %v1717 = vunpack.c.l.b16 %v949
    %v1718 = vunpack.c.h.b16 %v949
    %v1719 = vunpack.c.l.b16 %v950
    %v1720 = vunpack.c.h.b16 %v950
    %v1721 = vunpack.c.l.b16 %v951
    %v1722 = vunpack.c.h.b16 %v951
    %v1723 = vunpack.c.l.b16 %v952
    %v1724 = vunpack.c.h.b16 %v952
    %v1725 = vunpack.c.l.b16 %v953
    %v1726 = vunpack.c.h.b16 %v953
    %v1727 = vunpack.c.l.b16 %v954
    %v1728 = vunpack.c.h.b16 %v954
    %v1729 = vunpack.c.l.b16 %v955
    %v1730 = vunpack.c.h.b16 %v955
    %v1731 = vunpack.c.l.b16 %v956
    %v1732 = vunpack.c.h.b16 %v956
    %v1733 = vunpack.c.l.b16 %v957
    %v1734 = vunpack.c.h.b16 %v957
    %v1735 = vunpack.c.l.b16 %v958
    %v1736 = vunpack.c.h.b16 %v958
    %v1737 = vunpack.c.l.b16 %v959
    %v1738 = vunpack.c.h.b16 %v959
    %v1739 = vunpack.c.l.b16 %v960
    %v1740 = vunpack.c.h.b16 %v960
    %v1741 = vunpack.c.l.b16 %v961
    %v1742 = vunpack.c.h.b16 %v961
    %v1743 = vunpack.c.l.b16 %v962
    %v1744 = vunpack.c.h.b16 %v962
    %v1745 = vunpack.c.l.b16 %v963
    %v1746 = vunpack.c.h.b16 %v963
    %v1747 = vunpack.c.l.b16 %v964
    %v1748 = vunpack.c.h.b16 %v964
    %v1749 = vunpack.c.l.b16 %v965
    %v1750 = vunpack.c.h.b16 %v965
    %v1751 = vunpack.c.l.b16 %v966
    %v1752 = vunpack.c.h.b16 %v966
    %v1753 = vunpack.c.l.b16 %v967
    %v1754 = vunpack.c.h.b16 %v967
    %v1755 = vunpack.c.l.b16 %v968
    %v1756 = vunpack.c.h.b16 %v968
    %v1757 = vunpack.c.l.b16 %v969
    %v1758 = vunpack.c.h.b16 %v969
    %v1759 = vunpack.c.l.b16 %v970
    %v1760 = vunpack.c.h.b16 %v970
    %v1761 = vpack.c.b16 %v1253, %v1249
    %v1762 = vpack.c.b16 %v1254, %v1250
    %v1763 = vpack.c.b16 %v1255, %v1251
    %v1764 = vpack.c.b16 %v1256, %v1252
    %v1765 = vpack.c.b16 %v1261, %v1257
    %v1766 = vpack.c.b16 %v1262, %v1258
    %v1767 = vpack.c.b16 %v1263, %v1259
    %v1768 = vpack.c.b16 %v1264, %v1260
    %v1769 = vpack.c.b16 %v1269, %v1265
    %v1770 = vpack.c.b16 %v1270, %v1266
    %v1771 = vpack.c.b16 %v1271, %v1267
    %v1772 = vpack.c.b16 %v1272, %v1268
    %v1773 = vpack.c.b16 %v1277, %v1273
    %v1774 = vpack.c.b16 %v1278, %v1274
    %v1775 = vpack.c.b16 %v1279, %v1275
    %v1776 = vpack.c.b16 %v1280, %v1276
    %v1777 = vpack.c.b16 %v1285, %v1281
    %v1778 = vpack.c.b16 %v1286, %v1282
    %v1779 = vpack.c.b16 %v1287, %v1283
    %v1780 = vpack.c.b16 %v1288, %v1284
    %v1781 = vpack.c.b16 %v1293, %v1289
    %v1782 = vpack.c.b16 %v1294, %v1290
    %v1783 = vpack.c.b16 %v1295, %v1291
    %v1784 = vpack.c.b16 %v1296, %v1292
    %v1785 = vpack.c.b16 %v1301, %v1297
    %v1786 = vpack.c.b16 %v1302, %v1298
    %v1787 = vpack.c.b16 %v1303, %v1299
    %v1788 = vpack.c.b16 %v1304, %v1300
    %v1789 = vpack.c.b16 %v1309, %v1305
    %v1790 = vpack.c.b16 %v1310, %v1306
    %v1791 = vpack.c.b16 %v1311, %v1307
    %v1792 = vpack.c.b16 %v1312, %v1308
    %v1793 = vpack.c.b16 %v1317, %v1313
    %v1794 = vpack.c.b16 %v1318, %v1314
    %v1795 = vpack.c.b16 %v1319, %v1315
    %v1796 = vpack.c.b16 %v1320, %v1316
    %v1797 = vpack.c.b16 %v1325, %v1321
    %v1798 = vpack.c.b16 %v1326, %v1322
    %v1799 = vpack.c.b16 %v1327, %v1323
    %v1800 = vpack.c.b16 %v1328, %v1324
    %v1801 = vpack.c.b16 %v1333, %v1329
    %v1802 = vpack.c.b16 %v1334, %v1330
    %v1803 = vpack.c.b16 %v1335, %v1331
    %v1804 = vpack.c.b16 %v1336, %v1332
    %v1805 = vpack.c.b16 %v1341, %v1337
    %v1806 = vpack.c.b16 %v1342, %v1338
    %v1807 = vpack.c.b16 %v1343, %v1339
    %v1808 = vpack.c.b16 %v1344, %v1340
    %v1809 = vpack.c.b16 %v1349, %v1345
    %v1810 = vpack.c.b16 %v1350, %v1346
    %v1811 = vpack.c.b16 %v1351, %v1347
    %v1812 = vpack.c.b16 %v1352, %v1348
    %v1813 = vpack.c.b16 %v1357, %v1353
    %v1814 = vpack.c.b16 %v1358, %v1354
    %v1815 = vpack.c.b16 %v1359, %v1355
    %v1816 = vpack.c.b16 %v1360, %v1356
    %v1817 = vpack.c.b16 %v1365, %v1361
    %v1818 = vpack.c.b16 %v1366, %v1362
    %v1819 = vpack.c.b16 %v1367, %v1363
    %v1820 = vpack.c.b16 %v1368, %v1364
    %v1821 = vpack.c.b16 %v1373, %v1369
    %v1822 = vpack.c.b16 %v1374, %v1370
    %v1823 = vpack.c.b16 %v1375, %v1371
    %v1824 = vpack.c.b16 %v1376, %v1372
    %v1825 = vpack.c.b16 %v1381, %v1377
    %v1826 = vpack.c.b16 %v1382, %v1378
    %v1827 = vpack.c.b16 %v1383, %v1379
    %v1828 = vpack.c.b16 %v1384, %v1380
    %v1829 = vpack.c.b16 %v1389, %v1385
    %v1830 = vpack.c.b16 %v1390, %v1386
    %v1831 = vpack.c.b16 %v1391, %v1387
    %v1832 = vpack.c.b16 %v1392, %v1388
    %v1833 = vpack.c.b16 %v1397, %v1393
    %v1834 = vpack.c.b16 %v1398, %v1394
    %v1835 = vpack.c.b16 %v1399, %v1395
    %v1836 = vpack.c.b16 %v1400, %v1396
    %v1837 = vpack.c.b16 %v1405, %v1401
    %v1838 = vpack.c.b16 %v1406, %v1402
    %v1839 = vpack.c.b16 %v1407, %v1403
    %v1840 = vpack.c.b16 %v1408, %v1404
    %v1841 = vpack.c.b16 %v1413, %v1409
    %v1842 = vpack.c.b16 %v1414, %v1410
    %v1843 = vpack.c.b16 %v1415, %v1411
    %v1844 = vpack.c.b16 %v1416, %v1412
    %v1845 = vpack.c.b16 %v1421, %v1417
    %v1846 = vpack.c.b16 %v1422, %v1418
    %v1847 = vpack.c.b16 %v1423, %v1419
    %v1848 = vpack.c.b16 %v1424, %v1420
    %v1849 = vpack.c.b16 %v1429, %v1425
    %v1850 = vpack.c.b16 %v1430, %v1426
    %v1851 = vpack.c.b16 %v1431, %v1427
    %v1852 = vpack.c.b16 %v1432, %v1428
    %v1853 = vpack.c.b16 %v1437, %v1433
    %v1854 = vpack.c.b16 %v1438, %v1434
    %v1855 = vpack.c.b16 %v1439, %v1435
    %v1856 = vpack.c.b16 %v1440, %v1436
    %v1857 = vpack.c.b16 %v1445, %v1441
    %v1858 = vpack.c.b16 %v1446, %v1442
    %v1859 = vpack.c.b16 %v1447, %v1443
    %v1860 = vpack.c.b16 %v1448, %v1444
    %v1861 = vpack.c.b16 %v1453, %v1449
    %v1862 = vpack.c.b16 %v1454, %v1450
    %v1863 = vpack.c.b16 %v1455, %v1451
    %v1864 = vpack.c.b16 %v1456, %v1452
    %v1865 = vpack.c.b16 %v1461, %v1457
    %v1866 = vpack.c.b16 %v1462, %v1458
    %v1867 = vpack.c.b16 %v1463, %v1459
    %v1868 = vpack.c.b16 %v1464, %v1460
    %v1869 = vpack.c.b16 %v1469, %v1465
    %v1870 = vpack.c.b16 %v1470, %v1466
    %v1871 = vpack.c.b16 %v1471, %v1467
    %v1872 = vpack.c.b16 %v1472, %v1468
    %v1873 = vpack.c.b16 %v1477, %v1473
    %v1874 = vpack.c.b16 %v1478, %v1474
    %v1875 = vpack.c.b16 %v1479, %v1475
    %v1876 = vpack.c.b16 %v1480, %v1476
    %v1877 = vpack.c.b16 %v1485, %v1481
    %v1878 = vpack.c.b16 %v1486, %v1482
    %v1879 = vpack.c.b16 %v1487, %v1483
    %v1880 = vpack.c.b16 %v1488, %v1484
    %v1881 = vpack.c.b16 %v1493, %v1489
    %v1882 = vpack.c.b16 %v1494, %v1490
    %v1883 = vpack.c.b16 %v1495, %v1491
    %v1884 = vpack.c.b16 %v1496, %v1492
    %v1885 = vpack.c.b16 %v1501, %v1497
    %v1886 = vpack.c.b16 %v1502, %v1498
    %v1887 = vpack.c.b16 %v1503, %v1499
    %v1888 = vpack.c.b16 %v1504, %v1500
    %v1889 = vpack.c.b16 %v1509, %v1505
    %v1890 = vpack.c.b16 %v1510, %v1506
    %v1891 = vpack.c.b16 %v1511, %v1507
    %v1892 = vpack.c.b16 %v1512, %v1508
    %v1893 = vpack.c.b16 %v1517, %v1513
    %v1894 = vpack.c.b16 %v1518, %v1514
    %v1895 = vpack.c.b16 %v1519, %v1515
    %v1896 = vpack.c.b16 %v1520, %v1516
    %v1897 = vpack.c.b16 %v1525, %v1521
    %v1898 = vpack.c.b16 %v1526, %v1522
    %v1899 = vpack.c.b16 %v1527, %v1523
    %v1900 = vpack.c.b16 %v1528, %v1524
    %v1901 = vpack.c.b16 %v1533, %v1529
    %v1902 = vpack.c.b16 %v1534, %v1530
    %v1903 = vpack.c.b16 %v1535, %v1531
    %v1904 = vpack.c.b16 %v1536, %v1532
    %v1905 = vpack.c.b16 %v1541, %v1537
    %v1906 = vpack.c.b16 %v1542, %v1538
    %v1907 = vpack.c.b16 %v1543, %v1539
    %v1908 = vpack.c.b16 %v1544, %v1540
    %v1909 = vpack.c.b16 %v1549, %v1545
    %v1910 = vpack.c.b16 %v1550, %v1546
    %v1911 = vpack.c.b16 %v1551, %v1547
    %v1912 = vpack.c.b16 %v1552, %v1548
    %v1913 = vpack.c.b16 %v1557, %v1553
    %v1914 = vpack.c.b16 %v1558, %v1554
    %v1915 = vpack.c.b16 %v1559, %v1555
    %v1916 = vpack.c.b16 %v1560, %v1556
    %v1917 = vpack.c.b16 %v1565, %v1561
    %v1918 = vpack.c.b16 %v1566, %v1562
    %v1919 = vpack.c.b16 %v1567, %v1563
    %v1920 = vpack.c.b16 %v1568, %v1564
    %v1921 = vpack.c.b16 %v1573, %v1569
    %v1922 = vpack.c.b16 %v1574, %v1570
    %v1923 = vpack.c.b16 %v1575, %v1571
    %v1924 = vpack.c.b16 %v1576, %v1572
    %v1925 = vpack.c.b16 %v1581, %v1577
    %v1926 = vpack.c.b16 %v1582, %v1578
    %v1927 = vpack.c.b16 %v1583, %v1579
    %v1928 = vpack.c.b16 %v1584, %v1580
    %v1929 = vpack.c.b16 %v1589, %v1585
    %v1930 = vpack.c.b16 %v1590, %v1586
    %v1931 = vpack.c.b16 %v1591, %v1587
    %v1932 = vpack.c.b16 %v1592, %v1588
    %v1933 = vpack.c.b16 %v1597, %v1593
    %v1934 = vpack.c.b16 %v1598, %v1594
    %v1935 = vpack.c.b16 %v1599, %v1595
    %v1936 = vpack.c.b16 %v1600, %v1596
    %v1937 = vpack.c.b16 %v1605, %v1601
    %v1938 = vpack.c.b16 %v1606, %v1602
    %v1939 = vpack.c.b16 %v1607, %v1603
    %v1940 = vpack.c.b16 %v1608, %v1604
    %v1941 = vpack.c.b16 %v1613, %v1609
    %v1942 = vpack.c.b16 %v1614, %v1610
    %v1943 = vpack.c.b16 %v1615, %v1611
    %v1944 = vpack.c.b16 %v1616, %v1612
    %v1945 = vpack.c.b16 %v1621, %v1617
    %v1946 = vpack.c.b16 %v1622, %v1618
    %v1947 = vpack.c.b16 %v1623, %v1619
    %v1948 = vpack.c.b16 %v1624, %v1620
    %v1949 = vpack.c.b16 %v1629, %v1625
    %v1950 = vpack.c.b16 %v1630, %v1626
    %v1951 = vpack.c.b16 %v1631, %v1627
    %v1952 = vpack.c.b16 %v1632, %v1628
    %v1953 = vpack.c.b16 %v1637, %v1633
    %v1954 = vpack.c.b16 %v1638, %v1634
    %v1955 = vpack.c.b16 %v1639, %v1635
    %v1956 = vpack.c.b16 %v1640, %v1636
    %v1957 = vpack.c.b16 %v1645, %v1641
    %v1958 = vpack.c.b16 %v1646, %v1642
    %v1959 = vpack.c.b16 %v1647, %v1643
    %v1960 = vpack.c.b16 %v1648, %v1644
    %v1961 = vpack.c.b16 %v1653, %v1649
    %v1962 = vpack.c.b16 %v1654, %v1650
    %v1963 = vpack.c.b16 %v1655, %v1651
    %v1964 = vpack.c.b16 %v1656, %v1652
    %v1965 = vpack.c.b16 %v1661, %v1657
    %v1966 = vpack.c.b16 %v1662, %v1658
    %v1967 = vpack.c.b16 %v1663, %v1659
    %v1968 = vpack.c.b16 %v1664, %v1660
    %v1969 = vpack.c.b16 %v1669, %v1665
    %v1970 = vpack.c.b16 %v1670, %v1666
    %v1971 = vpack.c.b16 %v1671, %v1667
    %v1972 = vpack.c.b16 %v1672, %v1668
    %v1973 = vpack.c.b16 %v1677, %v1673
    %v1974 = vpack.c.b16 %v1678, %v1674
    %v1975 = vpack.c.b16 %v1679, %v1675
    %v1976 = vpack.c.b16 %v1680, %v1676
    %v1977 = vpack.c.b16 %v1685, %v1681
    %v1978 = vpack.c.b16 %v1686, %v1682
    %v1979 = vpack.c.b16 %v1687, %v1683
    %v1980 = vpack.c.b16 %v1688, %v1684
    %v1981 = vpack.c.b16 %v1693, %v1689
    %v1982 = vpack.c.b16 %v1694, %v1690
    %v1983 = vpack.c.b16 %v1695, %v1691
    %v1984 = vpack.c.b16 %v1696, %v1692
    %v1985 = vpack.c.b16 %v1701, %v1697
    %v1986 = vpack.c.b16 %v1702, %v1698
    %v1987 = vpack.c.b16 %v1703, %v1699
    %v1988 = vpack.c.b16 %v1704, %v1700
    %v1989 = vpack.c.b16 %v1709, %v1705
    %v1990 = vpack.c.b16 %v1710, %v1706
    %v1991 = vpack.c.b16 %v1711, %v1707
    %v1992 = vpack.c.b16 %v1712, %v1708
    %v1993 = vpack.c.b16 %v1717, %v1713
    %v1994 = vpack.c.b16 %v1718, %v1714
    %v1995 = vpack.c.b16 %v1719, %v1715
    %v1996 = vpack.c.b16 %v1720, %v1716
    %v1997 = vpack.c.b16 %v1725, %v1721
    %v1998 = vpack.c.b16 %v1726, %v1722
    %v1999 = vpack.c.b16 %v1727, %v1723
    %v2000 = vpack.c.b16 %v1728, %v1724
    %v2001 = vpack.c.b16 %v1733, %v1729
    %v2002 = vpack.c.b16 %v1734, %v1730
    %v2003 = vpack.c.b16 %v1735, %v1731
    %v2004 = vpack.c.b16 %v1736, %v1732
    %v2005 = vpack.c.b16 %v1741, %v1737
    %v2006 = vpack.c.b16 %v1742, %v1738
    %v2007 = vpack.c.b16 %v1743, %v1739
    %v2008 = vpack.c.b16 %v1744, %v1740
    %v2009 = vpack.c.b16 %v1749, %v1745
    %v2010 = vpack.c.b16 %v1750, %v1746
    %v2011 = vpack.c.b16 %v1751, %v1747
    %v2012 = vpack.c.b16 %v1752, %v1748
    %v2013 = vpack.c.b16 %v1757, %v1753
    %v2014 = vpack.c.b16 %v1758, %v1754
    %v2015 = vpack.c.b16 %v1759, %v1755
    %v2016 = vpack.c.b16 %v1760, %v1756
    %2273 = vmatprep.subr.bf16.mxu0 %v1762
    %2274 = vmatpush1.bf16.msra.mxu0 %v1761
    %2275 = vmatprep.subr.bf16.mxu0 %v1766
    %2276 = vmatpush1.bf16.msra.mxu0 %v1765
    %2277 = vmatprep.subr.bf16.mxu0 %v1770
    %2278 = vmatpush1.bf16.msra.mxu0 %v1769
    %2279 = vmatprep.subr.bf16.mxu0 %v1774
    %2280 = vmatpush1.bf16.msra.mxu0 %v1773
    %2281 = vmatprep.subr.bf16.mxu0 %v1778
    %2282 = vmatpush1.bf16.msra.mxu0 %v1777
    %2283 = vmatprep.subr.bf16.mxu0 %v1782
    %2284 = vmatpush1.bf16.msra.mxu0 %v1781
    %2285 = vmatprep.subr.bf16.mxu0 %v1786
    %2286 = vmatpush1.bf16.msra.mxu0 %v1785
    %2287 = vmatprep.subr.bf16.mxu0 %v1790
    %2288 = vmatpush1.bf16.msra.mxu0 %v1789
    %2289 = vmatprep.subr.bf16.mxu0 %v1794
    %2290 = vmatpush1.bf16.msra.mxu0 %v1793
    %2291 = vmatprep.subr.bf16.mxu0 %v1798
    %2292 = vmatpush1.bf16.msra.mxu0 %v1797
    %2293 = vmatprep.subr.bf16.mxu0 %v1802
    %2294 = vmatpush1.bf16.msra.mxu0 %v1801
    %2295 = vmatprep.subr.bf16.mxu0 %v1806
    %2296 = vmatpush1.bf16.msra.mxu0 %v1805
    %2297 = vmatprep.subr.bf16.mxu0 %v1810
    %2298 = vmatpush1.bf16.msra.mxu0 %v1809
    %2299 = vmatprep.subr.bf16.mxu0 %v1814
    %2300 = vmatpush1.bf16.msra.mxu0 %v1813
    %2301 = vmatprep.subr.bf16.mxu0 %v1818
    %2302 = vmatpush1.bf16.msra.mxu0 %v1817
    %2303 = vmatprep.subr.bf16.mxu0 %v1822
    %2304 = vmatpush1.bf16.msra.mxu0 %v1821
    %2305 = vmatprep.mubr.bf16.mxu0 %v708
    %2306 = vmatmul.mubr.bf16.gmra.mrb[0].mxu0 %v707
    %v2307 = vpop.f32.mrb[0].mxu0
    %v2308 = vadd.f32 %v976, %v2307
    %v2309 = vpop.f32.mrb[0].mxu0
    %v2310 = vadd.f32 %v980, %v2309
    %v2311 = vpop.f32.mrb[0].mxu0
    %v2312 = vpop.f32.mrb[0].mxu0
    %2313 = vdwg.mxu0
    %2314 = vmatprep.subr.bf16.mxu0 %v1826
    %2315 = vmatpush1.bf16.msra.mxu0 %v1825
    %2316 = vmatprep.subr.bf16.mxu0 %v1830
    %2317 = vmatpush1.bf16.msra.mxu0 %v1829
    %2318 = vmatprep.subr.bf16.mxu0 %v1834
    %2319 = vmatpush1.bf16.msra.mxu0 %v1833
    %2320 = vmatprep.subr.bf16.mxu0 %v1838
    %2321 = vmatpush1.bf16.msra.mxu0 %v1837
    %2322 = vmatprep.subr.bf16.mxu0 %v1842
    %2323 = vmatpush1.bf16.msra.mxu0 %v1841
    %2324 = vmatprep.subr.bf16.mxu0 %v1846
    %2325 = vmatpush1.bf16.msra.mxu0 %v1845
    %2326 = vmatprep.subr.bf16.mxu0 %v1850
    %2327 = vmatpush1.bf16.msra.mxu0 %v1849
    %2328 = vmatprep.subr.bf16.mxu0 %v1854
    %2329 = vmatpush1.bf16.msra.mxu0 %v1853
    %2330 = vmatprep.subr.bf16.mxu0 %v1858
    %2331 = vmatpush1.bf16.msra.mxu0 %v1857
    %2332 = vmatprep.subr.bf16.mxu0 %v1862
    %2333 = vmatpush1.bf16.msra.mxu0 %v1861
    %2334 = vmatprep.subr.bf16.mxu0 %v1866
    %2335 = vmatpush1.bf16.msra.mxu0 %v1865
    %2336 = vmatprep.subr.bf16.mxu0 %v1870
    %2337 = vmatpush1.bf16.msra.mxu0 %v1869
    %2338 = vmatprep.subr.bf16.mxu0 %v1874
    %2339 = vmatpush1.bf16.msra.mxu0 %v1873
    %2340 = vmatprep.subr.bf16.mxu0 %v1878
    %2341 = vmatpush1.bf16.msra.mxu0 %v1877
    %2342 = vmatprep.subr.bf16.mxu0 %v1882
    %2343 = vmatpush1.bf16.msra.mxu0 %v1881
    %2344 = vmatprep.subr.bf16.mxu0 %v1886
    %2345 = vmatpush1.bf16.msra.mxu0 %v1885
    %2346 = vmatprep.mubr.bf16.mxu0 %v710
    %2347 = vmatmul.mubr.bf16.gmra.mrb[0].mxu0 %v709
    %v2348 = vpop.f32.mrb[0].mxu0
    %v2349 = vadd.f32 %v2308, %v2348
    %v2350 = vpop.f32.mrb[0].mxu0
    %v2351 = vadd.f32 %v2310, %v2350
    %v2352 = vpop.f32.mrb[0].mxu0
    %v2353 = vpop.f32.mrb[0].mxu0
    %2354 = vdwg.mxu0
    %2355 = vmatprep.subr.bf16.mxu0 %v1890
    %2356 = vmatpush1.bf16.msra.mxu0 %v1889
    %2357 = vmatprep.subr.bf16.mxu0 %v1894
    %2358 = vmatpush1.bf16.msra.mxu0 %v1893
    %2359 = vmatprep.subr.bf16.mxu0 %v1898
    %2360 = vmatpush1.bf16.msra.mxu0 %v1897
    %2361 = vmatprep.subr.bf16.mxu0 %v1902
    %2362 = vmatpush1.bf16.msra.mxu0 %v1901
    %2363 = vmatprep.subr.bf16.mxu0 %v1906
    %2364 = vmatpush1.bf16.msra.mxu0 %v1905
    %2365 = vmatprep.subr.bf16.mxu0 %v1910
    %2366 = vmatpush1.bf16.msra.mxu0 %v1909
    %2367 = vmatprep.subr.bf16.mxu0 %v1914
    %2368 = vmatpush1.bf16.msra.mxu0 %v1913
    %2369 = vmatprep.subr.bf16.mxu0 %v1918
    %2370 = vmatpush1.bf16.msra.mxu0 %v1917
    %2371 = vmatprep.subr.bf16.mxu0 %v1922
    %2372 = vmatpush1.bf16.msra.mxu0 %v1921
    %2373 = vmatprep.subr.bf16.mxu0 %v1926
    %2374 = vmatpush1.bf16.msra.mxu0 %v1925
    %2375 = vmatprep.subr.bf16.mxu0 %v1930
    %2376 = vmatpush1.bf16.msra.mxu0 %v1929
    %2377 = vmatprep.subr.bf16.mxu0 %v1934
    %2378 = vmatpush1.bf16.msra.mxu0 %v1933
    %2379 = vmatprep.subr.bf16.mxu0 %v1938
    %2380 = vmatpush1.bf16.msra.mxu0 %v1937
    %2381 = vmatprep.subr.bf16.mxu0 %v1942
    %2382 = vmatpush1.bf16.msra.mxu0 %v1941
    %2383 = vmatprep.subr.bf16.mxu0 %v1946
    %2384 = vmatpush1.bf16.msra.mxu0 %v1945
    %2385 = vmatprep.subr.bf16.mxu0 %v1950
    %2386 = vmatpush1.bf16.msra.mxu0 %v1949
    %2387 = vmatprep.mubr.bf16.mxu0 %v712
    %2388 = vmatmul.mubr.bf16.gmra.mrb[0].mxu0 %v711
    %v2389 = vpop.f32.mrb[0].mxu0
    %v2390 = vadd.f32 %v2349, %v2389
    %v2391 = vpop.f32.mrb[0].mxu0
    %v2392 = vadd.f32 %v2351, %v2391
    %v2393 = vpop.f32.mrb[0].mxu0
    %v2394 = vpop.f32.mrb[0].mxu0
    %2395 = vdwg.mxu0
    %2396 = vmatprep.subr.bf16.mxu0 %v1954
    %2397 = vmatpush1.bf16.msra.mxu0 %v1953
    %2398 = vmatprep.subr.bf16.mxu0 %v1958
    %2399 = vmatpush1.bf16.msra.mxu0 %v1957
    %2400 = vmatprep.subr.bf16.mxu0 %v1962
    %2401 = vmatpush1.bf16.msra.mxu0 %v1961
    %2402 = vmatprep.subr.bf16.mxu0 %v1966
    %2403 = vmatpush1.bf16.msra.mxu0 %v1965
    %2404 = vmatprep.subr.bf16.mxu0 %v1970
    %2405 = vmatpush1.bf16.msra.mxu0 %v1969
    %2406 = vmatprep.subr.bf16.mxu0 %v1974
    %2407 = vmatpush1.bf16.msra.mxu0 %v1973
    %2408 = vmatprep.subr.bf16.mxu0 %v1978
    %2409 = vmatpush1.bf16.msra.mxu0 %v1977
    %2410 = vmatprep.subr.bf16.mxu0 %v1982
    %2411 = vmatpush1.bf16.msra.mxu0 %v1981
    %2412 = vmatprep.subr.bf16.mxu0 %v1986
    %2413 = vmatpush1.bf16.msra.mxu0 %v1985
    %2414 = vmatprep.subr.bf16.mxu0 %v1990
    %2415 = vmatpush1.bf16.msra.mxu0 %v1989
    %2416 = vmatprep.subr.bf16.mxu0 %v1994
    %2417 = vmatpush1.bf16.msra.mxu0 %v1993
    %2418 = vmatprep.subr.bf16.mxu0 %v1998
    %2419 = vmatpush1.bf16.msra.mxu0 %v1997
    %2420 = vmatprep.subr.bf16.mxu0 %v2002
    %2421 = vmatpush1.bf16.msra.mxu0 %v2001
    %2422 = vmatprep.subr.bf16.mxu0 %v2006
    %2423 = vmatpush1.bf16.msra.mxu0 %v2005
    %2424 = vmatprep.subr.bf16.mxu0 %v2010
    %2425 = vmatpush1.bf16.msra.mxu0 %v2009
    %2426 = vmatprep.subr.bf16.mxu0 %v2014
    %2427 = vmatpush1.bf16.msra.mxu0 %v2013
    %2428 = vmatprep.mubr.bf16.mxu0 %v714
    %2429 = vmatmul.mubr.bf16.gmra.mrb[0].mxu0 %v713
    %v2430 = vpop.f32.mrb[0].mxu0
    %v2431 = vadd.f32 %v2390, %v2430
    %v2432 = vpop.f32.mrb[0].mxu0
    %v2433 = vadd.f32 %v2392, %v2432
    %v2434 = vpop.f32.mrb[0].mxu0
    %v2435 = vpop.f32.mrb[0].mxu0
    %2436 = vdwg.mxu0
    %2437 = vmatprep.subr.bf16.mxu0 %v1764
    %2438 = vmatpush1.bf16.msra.mxu0 %v1763
    %2439 = vmatprep.subr.bf16.mxu0 %v1768
    %2440 = vmatpush1.bf16.msra.mxu0 %v1767
    %2441 = vmatprep.subr.bf16.mxu0 %v1772
    %2442 = vmatpush1.bf16.msra.mxu0 %v1771
    %2443 = vmatprep.subr.bf16.mxu0 %v1776
    %2444 = vmatpush1.bf16.msra.mxu0 %v1775
    %2445 = vmatprep.subr.bf16.mxu0 %v1780
    %2446 = vmatpush1.bf16.msra.mxu0 %v1779
    %2447 = vmatprep.subr.bf16.mxu0 %v1784
    %2448 = vmatpush1.bf16.msra.mxu0 %v1783
    %2449 = vmatprep.subr.bf16.mxu0 %v1788
    %2450 = vmatpush1.bf16.msra.mxu0 %v1787
    %2451 = vmatprep.subr.bf16.mxu0 %v1792
    %2452 = vmatpush1.bf16.msra.mxu0 %v1791
    %2453 = vmatprep.subr.bf16.mxu0 %v1796
    %2454 = vmatpush1.bf16.msra.mxu0 %v1795
    %2455 = vmatprep.subr.bf16.mxu0 %v1800
    %2456 = vmatpush1.bf16.msra.mxu0 %v1799
    %2457 = vmatprep.subr.bf16.mxu0 %v1804
    %2458 = vmatpush1.bf16.msra.mxu0 %v1803
    %2459 = vmatprep.subr.bf16.mxu0 %v1808
    %2460 = vmatpush1.bf16.msra.mxu0 %v1807
    %2461 = vmatprep.subr.bf16.mxu0 %v1812
    %2462 = vmatpush1.bf16.msra.mxu0 %v1811
    %2463 = vmatprep.subr.bf16.mxu0 %v1816
    %2464 = vmatpush1.bf16.msra.mxu0 %v1815
    %2465 = vmatprep.subr.bf16.mxu0 %v1820
    %2466 = vmatpush1.bf16.msra.mxu0 %v1819
    %2467 = vmatprep.subr.bf16.mxu0 %v1824
    %2468 = vmatpush1.bf16.msra.mxu0 %v1823
    %2469 = vmatprep.mubr.bf16.mxu0 %v708
    %2470 = vmatmul.mubr.bf16.gmra.mrb[0].mxu0 %v707
    %v2471 = vpop.f32.mrb[0].mxu0
    %v2472 = vadd.f32 %v984, %v2471
    %v2473 = vpop.f32.mrb[0].mxu0
    %v2474 = vadd.f32 %v988, %v2473
    %v2475 = vpop.f32.mrb[0].mxu0
    %v2476 = vpop.f32.mrb[0].mxu0
    %2477 = vdwg.mxu0
    %2478 = vmatprep.subr.bf16.mxu0 %v1828
    %2479 = vmatpush1.bf16.msra.mxu0 %v1827
    %2480 = vmatprep.subr.bf16.mxu0 %v1832
    %2481 = vmatpush1.bf16.msra.mxu0 %v1831
    %2482 = vmatprep.subr.bf16.mxu0 %v1836
    %2483 = vmatpush1.bf16.msra.mxu0 %v1835
    %2484 = vmatprep.subr.bf16.mxu0 %v1840
    %2485 = vmatpush1.bf16.msra.mxu0 %v1839
    %2486 = vmatprep.subr.bf16.mxu0 %v1844
    %2487 = vmatpush1.bf16.msra.mxu0 %v1843
    %2488 = vmatprep.subr.bf16.mxu0 %v1848
    %2489 = vmatpush1.bf16.msra.mxu0 %v1847
    %2490 = vmatprep.subr.bf16.mxu0 %v1852
    %2491 = vmatpush1.bf16.msra.mxu0 %v1851
    %2492 = vmatprep.subr.bf16.mxu0 %v1856
    %2493 = vmatpush1.bf16.msra.mxu0 %v1855
    %2494 = vmatprep.subr.bf16.mxu0 %v1860
    %2495 = vmatpush1.bf16.msra.mxu0 %v1859
    %2496 = vmatprep.subr.bf16.mxu0 %v1864
    %2497 = vmatpush1.bf16.msra.mxu0 %v1863
    %2498 = vmatprep.subr.bf16.mxu0 %v1868
    %2499 = vmatpush1.bf16.msra.mxu0 %v1867
    %2500 = vmatprep.subr.bf16.mxu0 %v1872
    %2501 = vmatpush1.bf16.msra.mxu0 %v1871
    %2502 = vmatprep.subr.bf16.mxu0 %v1876
    %2503 = vmatpush1.bf16.msra.mxu0 %v1875
    %2504 = vmatprep.subr.bf16.mxu0 %v1880
    %2505 = vmatpush1.bf16.msra.mxu0 %v1879
    %2506 = vmatprep.subr.bf16.mxu0 %v1884
    %2507 = vmatpush1.bf16.msra.mxu0 %v1883
    %2508 = vmatprep.subr.bf16.mxu0 %v1888
    %2509 = vmatpush1.bf16.msra.mxu0 %v1887
    %2510 = vmatprep.mubr.bf16.mxu0 %v710
    %2511 = vmatmul.mubr.bf16.gmra.mrb[0].mxu0 %v709
    %v2512 = vpop.f32.mrb[0].mxu0
    %v2513 = vadd.f32 %v2472, %v2512
    %v2514 = vpop.f32.mrb[0].mxu0
    %v2515 = vadd.f32 %v2474, %v2514
    %v2516 = vpop.f32.mrb[0].mxu0
    %v2517 = vpop.f32.mrb[0].mxu0
    %2518 = vdwg.mxu0
    %2519 = vmatprep.subr.bf16.mxu0 %v1892
    %2520 = vmatpush1.bf16.msra.mxu0 %v1891
    %2521 = vmatprep.subr.bf16.mxu0 %v1896
    %2522 = vmatpush1.bf16.msra.mxu0 %v1895
    %2523 = vmatprep.subr.bf16.mxu0 %v1900
    %2524 = vmatpush1.bf16.msra.mxu0 %v1899
    %2525 = vmatprep.subr.bf16.mxu0 %v1904
    %2526 = vmatpush1.bf16.msra.mxu0 %v1903
    %2527 = vmatprep.subr.bf16.mxu0 %v1908
    %2528 = vmatpush1.bf16.msra.mxu0 %v1907
    %2529 = vmatprep.subr.bf16.mxu0 %v1912
    %2530 = vmatpush1.bf16.msra.mxu0 %v1911
    %2531 = vmatprep.subr.bf16.mxu0 %v1916
    %2532 = vmatpush1.bf16.msra.mxu0 %v1915
    %2533 = vmatprep.subr.bf16.mxu0 %v1920
    %2534 = vmatpush1.bf16.msra.mxu0 %v1919
    %2535 = vmatprep.subr.bf16.mxu0 %v1924
    %2536 = vmatpush1.bf16.msra.mxu0 %v1923
    %2537 = vmatprep.subr.bf16.mxu0 %v1928
    %2538 = vmatpush1.bf16.msra.mxu0 %v1927
    %2539 = vmatprep.subr.bf16.mxu0 %v1932
    %2540 = vmatpush1.bf16.msra.mxu0 %v1931
    %2541 = vmatprep.subr.bf16.mxu0 %v1936
    %2542 = vmatpush1.bf16.msra.mxu0 %v1935
    %2543 = vmatprep.subr.bf16.mxu0 %v1940
    %2544 = vmatpush1.bf16.msra.mxu0 %v1939
    %2545 = vmatprep.subr.bf16.mxu0 %v1944
    %2546 = vmatpush1.bf16.msra.mxu0 %v1943
    %2547 = vmatprep.subr.bf16.mxu0 %v1948
    %2548 = vmatpush1.bf16.msra.mxu0 %v1947
    %2549 = vmatprep.subr.bf16.mxu0 %v1952
    %2550 = vmatpush1.bf16.msra.mxu0 %v1951
    %2551 = vmatprep.mubr.bf16.mxu0 %v712
    %2552 = vmatmul.mubr.bf16.gmra.mrb[0].mxu0 %v711
    %v2553 = vpop.f32.mrb[0].mxu0
    %v2554 = vadd.f32 %v2513, %v2553
    %v2555 = vpop.f32.mrb[0].mxu0
    %v2556 = vadd.f32 %v2515, %v2555
    %v2557 = vpop.f32.mrb[0].mxu0
    %v2558 = vpop.f32.mrb[0].mxu0
    %2559 = vdwg.mxu0
    %2560 = vmatprep.subr.bf16.mxu0 %v1956
    %2561 = vmatpush1.bf16.msra.mxu0 %v1955
    %2562 = vmatprep.subr.bf16.mxu0 %v1960
    %2563 = vmatpush1.bf16.msra.mxu0 %v1959
    %2564 = vmatprep.subr.bf16.mxu0 %v1964
    %2565 = vmatpush1.bf16.msra.mxu0 %v1963
    %2566 = vmatprep.subr.bf16.mxu0 %v1968
    %2567 = vmatpush1.bf16.msra.mxu0 %v1967
    %2568 = vmatprep.subr.bf16.mxu0 %v1972
    %2569 = vmatpush1.bf16.msra.mxu0 %v1971
    %2570 = vmatprep.subr.bf16.mxu0 %v1976
    %2571 = vmatpush1.bf16.msra.mxu0 %v1975
    %2572 = vmatprep.subr.bf16.mxu0 %v1980
    %2573 = vmatpush1.bf16.msra.mxu0 %v1979
    %2574 = vmatprep.subr.bf16.mxu0 %v1984
    %2575 = vmatpush1.bf16.msra.mxu0 %v1983
    %2576 = vmatprep.subr.bf16.mxu0 %v1988
    %2577 = vmatpush1.bf16.msra.mxu0 %v1987
    %2578 = vmatprep.subr.bf16.mxu0 %v1992
    %2579 = vmatpush1.bf16.msra.mxu0 %v1991
    %2580 = vmatprep.subr.bf16.mxu0 %v1996
    %2581 = vmatpush1.bf16.msra.mxu0 %v1995
    %2582 = vmatprep.subr.bf16.mxu0 %v2000
    %2583 = vmatpush1.bf16.msra.mxu0 %v1999
    %2584 = vmatprep.subr.bf16.mxu0 %v2004
    %2585 = vmatpush1.bf16.msra.mxu0 %v2003
    %2586 = vmatprep.subr.bf16.mxu0 %v2008
    %2587 = vmatpush1.bf16.msra.mxu0 %v2007
    %2588 = vmatprep.subr.bf16.mxu0 %v2012
    %2589 = vmatpush1.bf16.msra.mxu0 %v2011
    %2590 = vmatprep.subr.bf16.mxu0 %v2016
    %2591 = vmatpush1.bf16.msra.mxu0 %v2015
    %2592 = vmatprep.mubr.bf16.mxu0 %v714
    %2593 = vmatmul.mubr.bf16.gmra.mrb[0].mxu0 %v713
    %v2594 = vpop.f32.mrb[0].mxu0
    %v2595 = vadd.f32 %v2554, %v2594
    %v2596 = vpop.f32.mrb[0].mxu0
    %v2597 = vadd.f32 %v2556, %v2596
    %v2598 = vpop.f32.mrb[0].mxu0
    %v2599 = vpop.f32.mrb[0].mxu0
    %2600 = vdwg.mxu0
    %v2601 = vmax.f32 %v2431, 0.0
    %v2602 = vmax.f32 %v2433, 0.0
    %v2603 = vmax.f32 %v2595, 0.0
    %v2604 = vmax.f32 %v2597, 0.0
    %v2605 = vpack.c.bf16 %v2601, %v2601
    %v2606 = vpack.c.bf16 %v2602, %v2602
    %v2607 = vpack.c.bf16 %v2603, %v2603
    %v2608 = vpack.c.bf16 %v2604, %v2604
    %v2609 = vld [vmem:[#allocation7] sm:$0xff]
    %v2610 = vld [vmem:[#allocation7 + $0x8] sm:$0xff]
    %v2611 = vld [vmem:[#allocation7 + $0x10] sm:$0xff]
    %v2612 = vld [vmem:[#allocation7 + $0x18] sm:$0xff]
    %v2613 = vld [vmem:[#allocation7 + $0x20] sm:$0xff]
    %v2614 = vld [vmem:[#allocation7 + $0x28] sm:$0xff]
    %v2615 = vld [vmem:[#allocation7 + $0x30] sm:$0xff]
    %v2616 = vld [vmem:[#allocation7 + $0x38] sm:$0xff]
    %v2617 = vld [vmem:[#allocation7 + $0x40] sm:$0xff]
    %v2618 = vld [vmem:[#allocation7 + $0x48] sm:$0xff]
    %v2619 = vld [vmem:[#allocation7 + $0x50] sm:$0xff]
    %v2620 = vld [vmem:[#allocation7 + $0x58] sm:$0xff]
    %v2621 = vld [vmem:[#allocation7 + $0x60] sm:$0xff]
    %v2622 = vld [vmem:[#allocation7 + $0x68] sm:$0xff]
    %v2623 = vld [vmem:[#allocation7 + $0x70] sm:$0xff]
    %v2624 = vld [vmem:[#allocation7 + $0x78] sm:$0xff]
    %v2625 = vld [vmem:[#allocation7 + $0x80] sm:$0xff]
    %v2626 = vld [vmem:[#allocation7 + $0x88] sm:$0xff]
    %v2627 = vld [vmem:[#allocation7 + $0x90] sm:$0xff]
    %v2628 = vld [vmem:[#allocation7 + $0x98] sm:$0xff]
    %v2629 = vld [vmem:[#allocation7 + $0xa0] sm:$0xff]
    %v2630 = vld [vmem:[#allocation7 + $0xa8] sm:$0xff]
    %v2631 = vld [vmem:[#allocation7 + $0xb0] sm:$0xff]
    %v2632 = vld [vmem:[#allocation7 + $0xb8] sm:$0xff]
    %v2633 = vld [vmem:[#allocation7 + $0xc0] sm:$0xff]
    %v2634 = vld [vmem:[#allocation7 + $0xc8] sm:$0xff]
    %v2635 = vld [vmem:[#allocation7 + $0xd0] sm:$0xff]
    %v2636 = vld [vmem:[#allocation7 + $0xd8] sm:$0xff]
    %v2637 = vld [vmem:[#allocation7 + $0xe0] sm:$0xff]
    %v2638 = vld [vmem:[#allocation7 + $0xe8] sm:$0xff]
    %v2639 = vld [vmem:[#allocation7 + $0xf0] sm:$0xff]
    %v2640 = vld [vmem:[#allocation7 + $0xf8] sm:$0xff]
    %v2641 = vld [vmem:[#allocation7 + $0x100] sm:$0xff]
    %v2642 = vld [vmem:[#allocation7 + $0x108] sm:$0xff]
    %v2643 = vld [vmem:[#allocation7 + $0x110] sm:$0xff]
    %v2644 = vld [vmem:[#allocation7 + $0x118] sm:$0xff]
    %v2645 = vld [vmem:[#allocation7 + $0x120] sm:$0xff]
    %v2646 = vld [vmem:[#allocation7 + $0x128] sm:$0xff]
    %v2647 = vld [vmem:[#allocation7 + $0x130] sm:$0xff]
    %v2648 = vld [vmem:[#allocation7 + $0x138] sm:$0xff]
    %v2649 = vld [vmem:[#allocation7 + $0x140] sm:$0xff]
    %v2650 = vld [vmem:[#allocation7 + $0x148] sm:$0xff]
    %v2651 = vld [vmem:[#allocation7 + $0x150] sm:$0xff]
    %v2652 = vld [vmem:[#allocation7 + $0x158] sm:$0xff]
    %v2653 = vld [vmem:[#allocation7 + $0x160] sm:$0xff]
    %v2654 = vld [vmem:[#allocation7 + $0x168] sm:$0xff]
    %v2655 = vld [vmem:[#allocation7 + $0x170] sm:$0xff]
    %v2656 = vld [vmem:[#allocation7 + $0x178] sm:$0xff]
    %v2657 = vld [vmem:[#allocation7 + $0x180] sm:$0xff]
    %v2658 = vld [vmem:[#allocation7 + $0x188] sm:$0xff]
    %v2659 = vld [vmem:[#allocation7 + $0x190] sm:$0xff]
    %v2660 = vld [vmem:[#allocation7 + $0x198] sm:$0xff]
    %v2661 = vld [vmem:[#allocation7 + $0x1a0] sm:$0xff]
    %v2662 = vld [vmem:[#allocation7 + $0x1a8] sm:$0xff]
    %v2663 = vld [vmem:[#allocation7 + $0x1b0] sm:$0xff]
    %v2664 = vld [vmem:[#allocation7 + $0x1b8] sm:$0xff]
    %v2665 = vld [vmem:[#allocation7 + $0x1c0] sm:$0xff]
    %v2666 = vld [vmem:[#allocation7 + $0x1c8] sm:$0xff]
    %v2667 = vld [vmem:[#allocation7 + $0x1d0] sm:$0xff]
    %v2668 = vld [vmem:[#allocation7 + $0x1d8] sm:$0xff]
    %v2669 = vld [vmem:[#allocation7 + $0x1e0] sm:$0xff]
    %v2670 = vld [vmem:[#allocation7 + $0x1e8] sm:$0xff]
    %v2671 = vld [vmem:[#allocation7 + $0x1f0] sm:$0xff]
    %v2672 = vld [vmem:[#allocation7 + $0x1f8] sm:$0xff]
    %v2673 = vld [vmem:[%s6] sm:$0x3]
    %v2675 = vlaneseq
    %v2676 = vshrl.u32 %v2675, 7
    %v2677 = vsub.s32 0, %v2676
    %v2678 = vrot.slane %v2673, %v2677
    %v2679 = vlaneseq
    %v2680 = vshrl.u32 %v2679, 7
    %v2681 = vsub.s32 1, %v2680
    %v2682 = vrot.slane %v2673, %v2681
    %v2749 = vunpack.c.l.b16 %v2609
    %v2750 = vunpack.c.h.b16 %v2609
    %v2751 = vunpack.c.l.b16 %v2610
    %v2752 = vunpack.c.h.b16 %v2610
    %v2753 = vunpack.c.l.b16 %v2611
    %v2754 = vunpack.c.h.b16 %v2611
    %v2755 = vunpack.c.l.b16 %v2612
    %v2756 = vunpack.c.h.b16 %v2612
    %v2757 = vunpack.c.l.b16 %v2613
    %v2758 = vunpack.c.h.b16 %v2613
    %v2759 = vunpack.c.l.b16 %v2614
    %v2760 = vunpack.c.h.b16 %v2614
    %v2761 = vunpack.c.l.b16 %v2615
    %v2762 = vunpack.c.h.b16 %v2615
    %v2763 = vunpack.c.l.b16 %v2616
    %v2764 = vunpack.c.h.b16 %v2616
    %v2765 = vunpack.c.l.b16 %v2617
    %v2766 = vunpack.c.h.b16 %v2617
    %v2767 = vunpack.c.l.b16 %v2618
    %v2768 = vunpack.c.h.b16 %v2618
    %v2769 = vunpack.c.l.b16 %v2619
    %v2770 = vunpack.c.h.b16 %v2619
    %v2771 = vunpack.c.l.b16 %v2620
    %v2772 = vunpack.c.h.b16 %v2620
    %v2773 = vunpack.c.l.b16 %v2621
    %v2774 = vunpack.c.h.b16 %v2621
    %v2775 = vunpack.c.l.b16 %v2622
    %v2776 = vunpack.c.h.b16 %v2622
    %v2777 = vunpack.c.l.b16 %v2623
    %v2778 = vunpack.c.h.b16 %v2623
    %v2779 = vunpack.c.l.b16 %v2624
    %v2780 = vunpack.c.h.b16 %v2624
    %v2781 = vunpack.c.l.b16 %v2625
    %v2782 = vunpack.c.h.b16 %v2625
    %v2783 = vunpack.c.l.b16 %v2626
    %v2784 = vunpack.c.h.b16 %v2626
    %v2785 = vunpack.c.l.b16 %v2627
    %v2786 = vunpack.c.h.b16 %v2627
    %v2787 = vunpack.c.l.b16 %v2628
    %v2788 = vunpack.c.h.b16 %v2628
    %v2789 = vunpack.c.l.b16 %v2629
    %v2790 = vunpack.c.h.b16 %v2629
    %v2791 = vunpack.c.l.b16 %v2630
    %v2792 = vunpack.c.h.b16 %v2630
    %v2793 = vunpack.c.l.b16 %v2631
    %v2794 = vunpack.c.h.b16 %v2631
    %v2795 = vunpack.c.l.b16 %v2632
    %v2796 = vunpack.c.h.b16 %v2632
    %v2797 = vunpack.c.l.b16 %v2633
    %v2798 = vunpack.c.h.b16 %v2633
    %v2799 = vunpack.c.l.b16 %v2634
    %v2800 = vunpack.c.h.b16 %v2634
    %v2801 = vunpack.c.l.b16 %v2635
    %v2802 = vunpack.c.h.b16 %v2635
    %v2803 = vunpack.c.l.b16 %v2636
    %v2804 = vunpack.c.h.b16 %v2636
    %v2805 = vunpack.c.l.b16 %v2637
    %v2806 = vunpack.c.h.b16 %v2637
    %v2807 = vunpack.c.l.b16 %v2638
    %v2808 = vunpack.c.h.b16 %v2638
    %v2809 = vunpack.c.l.b16 %v2639
    %v2810 = vunpack.c.h.b16 %v2639
    %v2811 = vunpack.c.l.b16 %v2640
    %v2812 = vunpack.c.h.b16 %v2640
    %v2813 = vunpack.c.l.b16 %v2641
    %v2814 = vunpack.c.h.b16 %v2641
    %v2815 = vunpack.c.l.b16 %v2642
    %v2816 = vunpack.c.h.b16 %v2642
    %v2817 = vunpack.c.l.b16 %v2643
    %v2818 = vunpack.c.h.b16 %v2643
    %v2819 = vunpack.c.l.b16 %v2644
    %v2820 = vunpack.c.h.b16 %v2644
    %v2821 = vunpack.c.l.b16 %v2645
    %v2822 = vunpack.c.h.b16 %v2645
    %v2823 = vunpack.c.l.b16 %v2646
    %v2824 = vunpack.c.h.b16 %v2646
    %v2825 = vunpack.c.l.b16 %v2647
    %v2826 = vunpack.c.h.b16 %v2647
    %v2827 = vunpack.c.l.b16 %v2648
    %v2828 = vunpack.c.h.b16 %v2648
    %v2829 = vunpack.c.l.b16 %v2649
    %v2830 = vunpack.c.h.b16 %v2649
    %v2831 = vunpack.c.l.b16 %v2650
    %v2832 = vunpack.c.h.b16 %v2650
    %v2833 = vunpack.c.l.b16 %v2651
    %v2834 = vunpack.c.h.b16 %v2651
    %v2835 = vunpack.c.l.b16 %v2652
    %v2836 = vunpack.c.h.b16 %v2652
    %v2837 = vunpack.c.l.b16 %v2653
    %v2838 = vunpack.c.h.b16 %v2653
    %v2839 = vunpack.c.l.b16 %v2654
    %v2840 = vunpack.c.h.b16 %v2654
    %v2841 = vunpack.c.l.b16 %v2655
    %v2842 = vunpack.c.h.b16 %v2655
    %v2843 = vunpack.c.l.b16 %v2656
    %v2844 = vunpack.c.h.b16 %v2656
    %v2845 = vunpack.c.l.b16 %v2657
    %v2846 = vunpack.c.h.b16 %v2657
    %v2847 = vunpack.c.l.b16 %v2658
    %v2848 = vunpack.c.h.b16 %v2658
    %v2849 = vunpack.c.l.b16 %v2659
    %v2850 = vunpack.c.h.b16 %v2659
    %v2851 = vunpack.c.l.b16 %v2660
    %v2852 = vunpack.c.h.b16 %v2660
    %v2853 = vunpack.c.l.b16 %v2661
    %v2854 = vunpack.c.h.b16 %v2661
    %v2855 = vunpack.c.l.b16 %v2662
    %v2856 = vunpack.c.h.b16 %v2662
    %v2857 = vunpack.c.l.b16 %v2663
    %v2858 = vunpack.c.h.b16 %v2663
    %v2859 = vunpack.c.l.b16 %v2664
    %v2860 = vunpack.c.h.b16 %v2664
    %v2861 = vunpack.c.l.b16 %v2665
    %v2862 = vunpack.c.h.b16 %v2665
    %v2863 = vunpack.c.l.b16 %v2666
    %v2864 = vunpack.c.h.b16 %v2666
    %v2865 = vunpack.c.l.b16 %v2667
    %v2866 = vunpack.c.h.b16 %v2667
    %v2867 = vunpack.c.l.b16 %v2668
    %v2868 = vunpack.c.h.b16 %v2668
    %v2869 = vunpack.c.l.b16 %v2669
    %v2870 = vunpack.c.h.b16 %v2669
    %v2871 = vunpack.c.l.b16 %v2670
    %v2872 = vunpack.c.h.b16 %v2670
    %v2873 = vunpack.c.l.b16 %v2671
    %v2874 = vunpack.c.h.b16 %v2671
    %v2875 = vunpack.c.l.b16 %v2672
    %v2876 = vunpack.c.h.b16 %v2672
    %v2877 = vpack.c.b16 %v2751, %v2749
    %v2878 = vpack.c.b16 %v2752, %v2750
    %v2879 = vpack.c.b16 %v2755, %v2753
    %v2880 = vpack.c.b16 %v2756, %v2754
    %v2881 = vpack.c.b16 %v2759, %v2757
    %v2882 = vpack.c.b16 %v2760, %v2758
    %v2883 = vpack.c.b16 %v2763, %v2761
    %v2884 = vpack.c.b16 %v2764, %v2762
    %v2885 = vpack.c.b16 %v2767, %v2765
    %v2886 = vpack.c.b16 %v2768, %v2766
    %v2887 = vpack.c.b16 %v2771, %v2769
    %v2888 = vpack.c.b16 %v2772, %v2770
    %v2889 = vpack.c.b16 %v2775, %v2773
    %v2890 = vpack.c.b16 %v2776, %v2774
    %v2891 = vpack.c.b16 %v2779, %v2777
    %v2892 = vpack.c.b16 %v2780, %v2778
    %v2893 = vpack.c.b16 %v2783, %v2781
    %v2894 = vpack.c.b16 %v2784, %v2782
    %v2895 = vpack.c.b16 %v2787, %v2785
    %v2896 = vpack.c.b16 %v2788, %v2786
    %v2897 = vpack.c.b16 %v2791, %v2789
    %v2898 = vpack.c.b16 %v2792, %v2790
    %v2899 = vpack.c.b16 %v2795, %v2793
    %v2900 = vpack.c.b16 %v2796, %v2794
    %v2901 = vpack.c.b16 %v2799, %v2797
    %v2902 = vpack.c.b16 %v2800, %v2798
    %v2903 = vpack.c.b16 %v2803, %v2801
    %v2904 = vpack.c.b16 %v2804, %v2802
    %v2905 = vpack.c.b16 %v2807, %v2805
    %v2906 = vpack.c.b16 %v2808, %v2806
    %v2907 = vpack.c.b16 %v2811, %v2809
    %v2908 = vpack.c.b16 %v2812, %v2810
    %v2909 = vpack.c.b16 %v2815, %v2813
    %v2910 = vpack.c.b16 %v2816, %v2814
    %v2911 = vpack.c.b16 %v2819, %v2817
    %v2912 = vpack.c.b16 %v2820, %v2818
    %v2913 = vpack.c.b16 %v2823, %v2821
    %v2914 = vpack.c.b16 %v2824, %v2822
    %v2915 = vpack.c.b16 %v2827, %v2825
    %v2916 = vpack.c.b16 %v2828, %v2826
    %v2917 = vpack.c.b16 %v2831, %v2829
    %v2918 = vpack.c.b16 %v2832, %v2830
    %v2919 = vpack.c.b16 %v2835, %v2833
    %v2920 = vpack.c.b16 %v2836, %v2834
    %v2921 = vpack.c.b16 %v2839, %v2837
    %v2922 = vpack.c.b16 %v2840, %v2838
    %v2923 = vpack.c.b16 %v2843, %v2841
    %v2924 = vpack.c.b16 %v2844, %v2842
    %v2925 = vpack.c.b16 %v2847, %v2845
    %v2926 = vpack.c.b16 %v2848, %v2846
    %v2927 = vpack.c.b16 %v2851, %v2849
    %v2928 = vpack.c.b16 %v2852, %v2850
    %v2929 = vpack.c.b16 %v2855, %v2853
    %v2930 = vpack.c.b16 %v2856, %v2854
    %v2931 = vpack.c.b16 %v2859, %v2857
    %v2932 = vpack.c.b16 %v2860, %v2858
    %v2933 = vpack.c.b16 %v2863, %v2861
    %v2934 = vpack.c.b16 %v2864, %v2862
    %v2935 = vpack.c.b16 %v2867, %v2865
    %v2936 = vpack.c.b16 %v2868, %v2866
    %v2937 = vpack.c.b16 %v2871, %v2869
    %v2938 = vpack.c.b16 %v2872, %v2870
    %v2939 = vpack.c.b16 %v2875, %v2873
    %v2940 = vpack.c.b16 %v2876, %v2874
    %3005 = vmatprep.subr.bf16.mxu0 %v2878
    %3006 = vmatpush1.bf16.msra.mxu0 %v2877
    %3007 = vmatprep.subr.bf16.mxu0 %v2880
    %3008 = vmatpush1.bf16.msra.mxu0 %v2879
    %3009 = vmatprep.subr.bf16.mxu0 %v2882
    %3010 = vmatpush1.bf16.msra.mxu0 %v2881
    %3011 = vmatprep.subr.bf16.mxu0 %v2884
    %3012 = vmatpush1.bf16.msra.mxu0 %v2883
    %3013 = vmatprep.subr.bf16.mxu0 %v2886
    %3014 = vmatpush1.bf16.msra.mxu0 %v2885
    %3015 = vmatprep.subr.bf16.mxu0 %v2888
    %3016 = vmatpush1.bf16.msra.mxu0 %v2887
    %3017 = vmatprep.subr.bf16.mxu0 %v2890
    %3018 = vmatpush1.bf16.msra.mxu0 %v2889
    %3019 = vmatprep.subr.bf16.mxu0 %v2892
    %3020 = vmatpush1.bf16.msra.mxu0 %v2891
    %3021 = vmatprep.subr.bf16.mxu0 %v2894
    %3022 = vmatpush1.bf16.msra.mxu0 %v2893
    %3023 = vmatprep.subr.bf16.mxu0 %v2896
    %3024 = vmatpush1.bf16.msra.mxu0 %v2895
    %3025 = vmatprep.subr.bf16.mxu0 %v2898
    %3026 = vmatpush1.bf16.msra.mxu0 %v2897
    %3027 = vmatprep.subr.bf16.mxu0 %v2900
    %3028 = vmatpush1.bf16.msra.mxu0 %v2899
    %3029 = vmatprep.subr.bf16.mxu0 %v2902
    %3030 = vmatpush1.bf16.msra.mxu0 %v2901
    %3031 = vmatprep.subr.bf16.mxu0 %v2904
    %3032 = vmatpush1.bf16.msra.mxu0 %v2903
    %3033 = vmatprep.subr.bf16.mxu0 %v2906
    %3034 = vmatpush1.bf16.msra.mxu0 %v2905
    %3035 = vmatprep.subr.bf16.mxu0 %v2908
    %3036 = vmatpush1.bf16.msra.mxu0 %v2907
    %3037 = vmatprep.mubr.bf16.mxu0 %v2606
    %3038 = vmatmul.mubr.bf16.gmra.mrb[0].mxu0 %v2605
    %v3039 = vpop.f32.mrb[0].mxu0
    %v3040 = vadd.f32 %v2678, %v3039
    %v3041 = vpop.f32.mrb[0].mxu0
    %v3042 = vadd.f32 %v2682, %v3041
    %v3043 = vpop.f32.mrb[0].mxu0
    %v3044 = vpop.f32.mrb[0].mxu0
    %3045 = vdwg.mxu0
    %3046 = vmatprep.subr.bf16.mxu0 %v2910
    %3047 = vmatpush1.bf16.msra.mxu0 %v2909
    %3048 = vmatprep.subr.bf16.mxu0 %v2912
    %3049 = vmatpush1.bf16.msra.mxu0 %v2911
    %3050 = vmatprep.subr.bf16.mxu0 %v2914
    %3051 = vmatpush1.bf16.msra.mxu0 %v2913
    %3052 = vmatprep.subr.bf16.mxu0 %v2916
    %3053 = vmatpush1.bf16.msra.mxu0 %v2915
    %3054 = vmatprep.subr.bf16.mxu0 %v2918
    %3055 = vmatpush1.bf16.msra.mxu0 %v2917
    %3056 = vmatprep.subr.bf16.mxu0 %v2920
    %3057 = vmatpush1.bf16.msra.mxu0 %v2919
    %3058 = vmatprep.subr.bf16.mxu0 %v2922
    %3059 = vmatpush1.bf16.msra.mxu0 %v2921
    %3060 = vmatprep.subr.bf16.mxu0 %v2924
    %3061 = vmatpush1.bf16.msra.mxu0 %v2923
    %3062 = vmatprep.subr.bf16.mxu0 %v2926
    %3063 = vmatpush1.bf16.msra.mxu0 %v2925
    %3064 = vmatprep.subr.bf16.mxu0 %v2928
    %3065 = vmatpush1.bf16.msra.mxu0 %v2927
    %3066 = vmatprep.subr.bf16.mxu0 %v2930
    %3067 = vmatpush1.bf16.msra.mxu0 %v2929
    %3068 = vmatprep.subr.bf16.mxu0 %v2932
    %3069 = vmatpush1.bf16.msra.mxu0 %v2931
    %3070 = vmatprep.subr.bf16.mxu0 %v2934
    %3071 = vmatpush1.bf16.msra.mxu0 %v2933
    %3072 = vmatprep.subr.bf16.mxu0 %v2936
    %3073 = vmatpush1.bf16.msra.mxu0 %v2935
    %3074 = vmatprep.subr.bf16.mxu0 %v2938
    %3075 = vmatpush1.bf16.msra.mxu0 %v2937
    %3076 = vmatprep.subr.bf16.mxu0 %v2940
    %3077 = vmatpush1.bf16.msra.mxu0 %v2939
    %3078 = vmatprep.mubr.bf16.mxu0 %v2608
    %3079 = vmatmul.mubr.bf16.gmra.mrb[0].mxu0 %v2607
    %v3080 = vpop.f32.mrb[0].mxu0
    %v3081 = vadd.f32 %v3040, %v3080
    %v3082 = vpop.f32.mrb[0].mxu0
    %v3083 = vadd.f32 %v3042, %v3082
    %v3084 = vpop.f32.mrb[0].mxu0
    %v3085 = vpop.f32.mrb[0].mxu0
    %3086 = vdwg.mxu0
    %v3087 = vmax.f32 %v3081, 0.0
    %v3088 = vmax.f32 %v3083, 0.0
    %v3089 = vpack.c.bf16 %v3087, %v3087
    %v3090 = vpack.c.bf16 %v3088, %v3088
    %v3091 = vld [vmem:[#allocation8] sm:$0xf]
    %v3092 = vld [vmem:[#allocation8 + $0x4] sm:$0xf]
    %v3093 = vld [vmem:[#allocation8 + $0x8] sm:$0xf]
    %v3094 = vld [vmem:[#allocation8 + $0xc] sm:$0xf]
    %v3095 = vld [vmem:[#allocation8 + $0x10] sm:$0xf]
    %v3096 = vld [vmem:[#allocation8 + $0x14] sm:$0xf]
    %v3097 = vld [vmem:[#allocation8 + $0x18] sm:$0xf]
    %v3098 = vld [vmem:[#allocation8 + $0x1c] sm:$0xf]
    %v3099 = vld [vmem:[#allocation8 + $0x20] sm:$0xf]
    %v3100 = vld [vmem:[#allocation8 + $0x24] sm:$0xf]
    %v3101 = vld [vmem:[#allocation8 + $0x28] sm:$0xf]
    %v3102 = vld [vmem:[#allocation8 + $0x2c] sm:$0xf]
    %v3103 = vld [vmem:[#allocation8 + $0x30] sm:$0xf]
    %v3104 = vld [vmem:[#allocation8 + $0x34] sm:$0xf]
    %v3105 = vld [vmem:[#allocation8 + $0x38] sm:$0xf]
    %v3106 = vld [vmem:[#allocation8 + $0x3c] sm:$0xf]
    %v3107 = vld [vmem:[#allocation8 + $0x40] sm:$0xf]
    %v3108 = vld [vmem:[#allocation8 + $0x44] sm:$0xf]
    %v3109 = vld [vmem:[#allocation8 + $0x48] sm:$0xf]
    %v3110 = vld [vmem:[#allocation8 + $0x4c] sm:$0xf]
    %v3111 = vld [vmem:[#allocation8 + $0x50] sm:$0xf]
    %v3112 = vld [vmem:[#allocation8 + $0x54] sm:$0xf]
    %v3113 = vld [vmem:[#allocation8 + $0x58] sm:$0xf]
    %v3114 = vld [vmem:[#allocation8 + $0x5c] sm:$0xf]
    %v3115 = vld [vmem:[#allocation8 + $0x60] sm:$0xf]
    %v3116 = vld [vmem:[#allocation8 + $0x64] sm:$0xf]
    %v3117 = vld [vmem:[#allocation8 + $0x68] sm:$0xf]
    %v3118 = vld [vmem:[#allocation8 + $0x6c] sm:$0xf]
    %v3119 = vld [vmem:[#allocation8 + $0x70] sm:$0xf]
    %v3120 = vld [vmem:[#allocation8 + $0x74] sm:$0xf]
    %v3121 = vld [vmem:[#allocation8 + $0x78] sm:$0xf]
    %v3122 = vld [vmem:[#allocation8 + $0x7c] sm:$0xf]
    %v3123 = vld [vmem:[%s8] sm:$0x1]
    %v3125 = vlaneseq
    %v3126 = vshrl.u32 %v3125, 7
    %v3127 = vsub.s32 0, %v3126
    %v3128 = vrot.slane %v3123, %v3127
    %v3162 = vunpack.c.l.b16 %v3091
    %v3163 = vunpack.c.l.b16 %v3092
    %v3164 = vunpack.c.l.b16 %v3093
    %v3165 = vunpack.c.l.b16 %v3094
    %v3166 = vunpack.c.l.b16 %v3095
    %v3167 = vunpack.c.l.b16 %v3096
    %v3168 = vunpack.c.l.b16 %v3097
    %v3169 = vunpack.c.l.b16 %v3098
    %v3170 = vunpack.c.l.b16 %v3099
    %v3171 = vunpack.c.l.b16 %v3100
    %v3172 = vunpack.c.l.b16 %v3101
    %v3173 = vunpack.c.l.b16 %v3102
    %v3174 = vunpack.c.l.b16 %v3103
    %v3175 = vunpack.c.l.b16 %v3104
    %v3176 = vunpack.c.l.b16 %v3105
    %v3177 = vunpack.c.l.b16 %v3106
    %v3178 = vunpack.c.l.b16 %v3107
    %v3179 = vunpack.c.l.b16 %v3108
    %v3180 = vunpack.c.l.b16 %v3109
    %v3181 = vunpack.c.l.b16 %v3110
    %v3182 = vunpack.c.l.b16 %v3111
    %v3183 = vunpack.c.l.b16 %v3112
    %v3184 = vunpack.c.l.b16 %v3113
    %v3185 = vunpack.c.l.b16 %v3114
    %v3186 = vunpack.c.l.b16 %v3115
    %v3187 = vunpack.c.l.b16 %v3116
    %v3188 = vunpack.c.l.b16 %v3117
    %v3189 = vunpack.c.l.b16 %v3118
    %v3190 = vunpack.c.l.b16 %v3119
    %v3191 = vunpack.c.l.b16 %v3120
    %v3192 = vunpack.c.l.b16 %v3121
    %v3193 = vunpack.c.l.b16 %v3122
    %v3194 = vpack.c.b16 %v3163, %v3162
    %v3195 = vpack.c.b16 %v3165, %v3164
    %v3196 = vpack.c.b16 %v3167, %v3166
    %v3197 = vpack.c.b16 %v3169, %v3168
    %v3198 = vpack.c.b16 %v3171, %v3170
    %v3199 = vpack.c.b16 %v3173, %v3172
    %v3200 = vpack.c.b16 %v3175, %v3174
    %v3201 = vpack.c.b16 %v3177, %v3176
    %v3202 = vpack.c.b16 %v3179, %v3178
    %v3203 = vpack.c.b16 %v3181, %v3180
    %v3204 = vpack.c.b16 %v3183, %v3182
    %v3205 = vpack.c.b16 %v3185, %v3184
    %v3206 = vpack.c.b16 %v3187, %v3186
    %v3207 = vpack.c.b16 %v3189, %v3188
    %v3208 = vpack.c.b16 %v3191, %v3190
    %v3209 = vpack.c.b16 %v3193, %v3192
    %3226 = vmatprep.subr.bf16.mxu0 0
    %3227 = vmatpush1.bf16.msra.mxu0 %v3194
    %3228 = vmatprep.subr.bf16.mxu0 0
    %3229 = vmatpush1.bf16.msra.mxu0 %v3195
    %3230 = vmatprep.subr.bf16.mxu0 0
    %3231 = vmatpush1.bf16.msra.mxu0 %v3196
    %3232 = vmatprep.subr.bf16.mxu0 0
    %3233 = vmatpush1.bf16.msra.mxu0 %v3197
    %3234 = vmatprep.subr.bf16.mxu0 0
    %3235 = vmatpush1.bf16.msra.mxu0 %v3198
    %3236 = vmatprep.subr.bf16.mxu0 0
    %3237 = vmatpush1.bf16.msra.mxu0 %v3199
    %3238 = vmatprep.subr.bf16.mxu0 0
    %3239 = vmatpush1.bf16.msra.mxu0 %v3200
    %3240 = vmatprep.subr.bf16.mxu0 0
    %3241 = vmatpush1.bf16.msra.mxu0 %v3201
    %3242 = vmatprep.subr.bf16.mxu0 0
    %3243 = vmatpush1.bf16.msra.mxu0 %v3202
    %3244 = vmatprep.subr.bf16.mxu0 0
    %3245 = vmatpush1.bf16.msra.mxu0 %v3203
    %3246 = vmatprep.subr.bf16.mxu0 0
    %3247 = vmatpush1.bf16.msra.mxu0 %v3204
    %3248 = vmatprep.subr.bf16.mxu0 0
    %3249 = vmatpush1.bf16.msra.mxu0 %v3205
    %3250 = vmatprep.subr.bf16.mxu0 0
    %3251 = vmatpush1.bf16.msra.mxu0 %v3206
    %3252 = vmatprep.subr.bf16.mxu0 0
    %3253 = vmatpush1.bf16.msra.mxu0 %v3207
    %3254 = vmatprep.subr.bf16.mxu0 0
    %3255 = vmatpush1.bf16.msra.mxu0 %v3208
    %3256 = vmatprep.subr.bf16.mxu0 0
    %3257 = vmatpush1.bf16.msra.mxu0 %v3209
    %3258 = vmatprep.mubr.bf16.mxu0 %v3090
    %3259 = vmatmul.mubr.bf16.gmra.mrb[0].mxu0 %v3089
    %v3260 = vpop.f32.mrb[0].mxu0
    %v3261 = vadd.f32 %v3128, %v3260
    %v3262 = vpop.f32.mrb[0].mxu0
    %v3263 = vpop.f32.mrb[0].mxu0
    %v3264 = vpop.f32.mrb[0].mxu0
    %3265 = vdwg.mxu0
    %v3266 = vmax.f32 %v3261, 0.0
    %v3267 = vpack.c.bf16 %v3266, %v3266
    %v3268 = vld [vmem:[#allocation10] sm:$0xf]
    %v3269 = vld [vmem:[#allocation10 + $0x4] sm:$0xf]
    %v3270 = vld [vmem:[#allocation10 + $0x8] sm:$0xf]
    %v3271 = vld [vmem:[#allocation10 + $0xc] sm:$0xf]
    %v3272 = vld [vmem:[#allocation10 + $0x10] sm:$0xf]
    %v3273 = vld [vmem:[#allocation10 + $0x14] sm:$0xf]
    %v3274 = vld [vmem:[#allocation10 + $0x18] sm:$0xf]
    %v3275 = vld [vmem:[#allocation10 + $0x1c] sm:$0xf]
    %v3276 = vld [vmem:[#allocation10 + $0x20] sm:$0xf]
    %v3277 = vld [vmem:[#allocation10 + $0x24] sm:$0xf]
    %v3278 = vld [vmem:[#allocation10 + $0x28] sm:$0xf]
    %v3279 = vld [vmem:[#allocation10 + $0x2c] sm:$0xf]
    %v3280 = vld [vmem:[#allocation10 + $0x30] sm:$0xf]
    %v3281 = vld [vmem:[#allocation10 + $0x34] sm:$0xf]
    %v3282 = vld [vmem:[#allocation10 + $0x38] sm:$0xf]
    %v3283 = vld [vmem:[#allocation10 + $0x3c] sm:$0xf]
    %v3284 = vld [vmem:[%s10] sm:$0x1]
    %v3286 = vlaneseq
    %v3287 = vshrl.u32 %v3286, 7
    %v3288 = vsub.s32 0, %v3287
    %v3289 = vrot.slane %v3284, %v3288
    %v3307 = vunpack.c.l.b16 %v3268
    %v3308 = vunpack.c.l.b16 %v3269
    %v3309 = vunpack.c.l.b16 %v3270
    %v3310 = vunpack.c.l.b16 %v3271
    %v3311 = vunpack.c.l.b16 %v3272
    %v3312 = vunpack.c.l.b16 %v3273
    %v3313 = vunpack.c.l.b16 %v3274
    %v3314 = vunpack.c.l.b16 %v3275
    %v3315 = vunpack.c.l.b16 %v3276
    %v3316 = vunpack.c.l.b16 %v3277
    %v3317 = vunpack.c.l.b16 %v3278
    %v3318 = vunpack.c.l.b16 %v3279
    %v3319 = vunpack.c.l.b16 %v3280
    %v3320 = vunpack.c.l.b16 %v3281
    %v3321 = vunpack.c.l.b16 %v3282
    %v3322 = vunpack.c.l.b16 %v3283
    %v3323 = vpack.c.b16 %v3308, %v3307
    %v3324 = vpack.c.b16 %v3310, %v3309
    %v3325 = vpack.c.b16 %v3312, %v3311
    %v3326 = vpack.c.b16 %v3314, %v3313
    %v3327 = vpack.c.b16 %v3316, %v3315
    %v3328 = vpack.c.b16 %v3318, %v3317
    %v3329 = vpack.c.b16 %v3320, %v3319
    %v3330 = vpack.c.b16 %v3322, %v3321
    %3339 = vmatprep.subr.bf16.mxu0 0
    %3340 = vmatpush1.bf16.msra.mxu0 %v3323
    %3341 = vmatprep.subr.bf16.mxu0 0
    %3342 = vmatpush1.bf16.msra.mxu0 %v3324
    %3343 = vmatprep.subr.bf16.mxu0 0
    %3344 = vmatpush1.bf16.msra.mxu0 %v3325
    %3345 = vmatprep.subr.bf16.mxu0 0
    %3346 = vmatpush1.bf16.msra.mxu0 %v3326
    %3347 = vmatprep.subr.bf16.mxu0 0
    %3348 = vmatpush1.bf16.msra.mxu0 %v3327
    %3349 = vmatprep.subr.bf16.mxu0 0
    %3350 = vmatpush1.bf16.msra.mxu0 %v3328
    %3351 = vmatprep.subr.bf16.mxu0 0
    %3352 = vmatpush1.bf16.msra.mxu0 %v3329
    %3353 = vmatprep.subr.bf16.mxu0 0
    %3354 = vmatpush1.bf16.msra.mxu0 %v3330
    %3355 = vmatprep.subr.bf16.mxu0 0
    %3356 = vmatpush1.bf16.msra.mxu0 0
    %3357 = vmatprep.subr.bf16.mxu0 0
    %3358 = vmatpush1.bf16.msra.mxu0 0
    %3359 = vmatprep.subr.bf16.mxu0 0
    %3360 = vmatpush1.bf16.msra.mxu0 0
    %3361 = vmatprep.subr.bf16.mxu0 0
    %3362 = vmatpush1.bf16.msra.mxu0 0
    %3363 = vmatprep.subr.bf16.mxu0 0
    %3364 = vmatpush1.bf16.msra.mxu0 0
    %3365 = vmatprep.subr.bf16.mxu0 0
    %3366 = vmatpush1.bf16.msra.mxu0 0
    %3367 = vmatprep.subr.bf16.mxu0 0
    %3368 = vmatpush1.bf16.msra.mxu0 0
    %3369 = vmatprep.subr.bf16.mxu0 0
    %3370 = vmatpush1.bf16.msra.mxu0 0
    %3371 = vmatprep.mubr.bf16.mxu0 0
    %3372 = vmatmul.mubr.bf16.gmra.mrb[0].mxu0 %v3267
    %v3373 = vpop.f32.mrb[0].mxu0
    %v3374 = vadd.f32 %v3289, %v3373
    %v3375 = vpop.f32.mrb[0].mxu0
    %v3376 = vpop.f32.mrb[0].mxu0
    %v3377 = vpop.f32.mrb[0].mxu0
    %3378 = vdwg.mxu0
    %v3379 = vmax.f32 %v3374, 0.0
    %v3380 = vpack.c.bf16 %v3379, %v3379
    %s3381 = scalar_lea.vmem [#allocation10], 64
    %v3382 = vld [vmem:[%s3381] sm:$0xf]
    %v3383 = vld [vmem:[%s3381 + $0x4] sm:$0xf]
    %v3384 = vld [vmem:[%s3381 + $0x8] sm:$0xf]
    %v3385 = vld [vmem:[%s3381 + $0xc] sm:$0xf]
    %v3386 = vld [vmem:[%s3381 + $0x10] sm:$0xf]
    %v3387 = vld [vmem:[%s3381 + $0x14] sm:$0xf]
    %v3388 = vld [vmem:[%s3381 + $0x18] sm:$0xf]
    %v3389 = vld [vmem:[%s3381 + $0x1c] sm:$0xf]
    %v3390 = vld [vmem:[%s3381 + $0x20] sm:$0xf]
    %v3391 = vld [vmem:[%s3381 + $0x24] sm:$0xf]
    %v3392 = vld [vmem:[%s3381 + $0x28] sm:$0xf]
    %v3393 = vld [vmem:[%s3381 + $0x2c] sm:$0xf]
    %v3394 = vld [vmem:[%s3381 + $0x30] sm:$0xf]
    %v3395 = vld [vmem:[%s3381 + $0x34] sm:$0xf]
    %v3396 = vld [vmem:[%s3381 + $0x38] sm:$0xf]
    %v3397 = vld [vmem:[%s3381 + $0x3c] sm:$0xf]
    %s3398 = scalar_lea.vmem %s10, 1
    %v3399 = vld [vmem:[%s3398] sm:$0x1]
    %v3401 = vlaneseq
    %v3402 = vshrl.u32 %v3401, 7
    %v3403 = vsub.s32 0, %v3402
    %v3404 = vrot.slane %v3399, %v3403
    %v3422 = vunpack.c.l.b16 %v3382
    %v3423 = vunpack.c.l.b16 %v3383
    %v3424 = vunpack.c.l.b16 %v3384
    %v3425 = vunpack.c.l.b16 %v3385
    %v3426 = vunpack.c.l.b16 %v3386
    %v3427 = vunpack.c.l.b16 %v3387
    %v3428 = vunpack.c.l.b16 %v3388
    %v3429 = vunpack.c.l.b16 %v3389
    %v3430 = vunpack.c.l.b16 %v3390
    %v3431 = vunpack.c.l.b16 %v3391
    %v3432 = vunpack.c.l.b16 %v3392
    %v3433 = vunpack.c.l.b16 %v3393
    %v3434 = vunpack.c.l.b16 %v3394
    %v3435 = vunpack.c.l.b16 %v3395
    %v3436 = vunpack.c.l.b16 %v3396
    %v3437 = vunpack.c.l.b16 %v3397
    %v3438 = vpack.c.b16 %v3423, %v3422
    %v3439 = vpack.c.b16 %v3425, %v3424
    %v3440 = vpack.c.b16 %v3427, %v3426
    %v3441 = vpack.c.b16 %v3429, %v3428
    %v3442 = vpack.c.b16 %v3431, %v3430
    %v3443 = vpack.c.b16 %v3433, %v3432
    %v3444 = vpack.c.b16 %v3435, %v3434
    %v3445 = vpack.c.b16 %v3437, %v3436
    %3454 = vmatprep.subr.bf16.mxu0 0
    %3455 = vmatpush1.bf16.msra.mxu0 %v3438
    %3456 = vmatprep.subr.bf16.mxu0 0
    %3457 = vmatpush1.bf16.msra.mxu0 %v3439
    %3458 = vmatprep.subr.bf16.mxu0 0
    %3459 = vmatpush1.bf16.msra.mxu0 %v3440
    %3460 = vmatprep.subr.bf16.mxu0 0
    %3461 = vmatpush1.bf16.msra.mxu0 %v3441
    %3462 = vmatprep.subr.bf16.mxu0 0
    %3463 = vmatpush1.bf16.msra.mxu0 %v3442
    %3464 = vmatprep.subr.bf16.mxu0 0
    %3465 = vmatpush1.bf16.msra.mxu0 %v3443
    %3466 = vmatprep.subr.bf16.mxu0 0
    %3467 = vmatpush1.bf16.msra.mxu0 %v3444
    %3468 = vmatprep.subr.bf16.mxu0 0
    %3469 = vmatpush1.bf16.msra.mxu0 %v3445
    %3470 = vmatprep.subr.bf16.mxu0 0
    %3471 = vmatpush1.bf16.msra.mxu0 0
    %3472 = vmatprep.subr.bf16.mxu0 0
    %3473 = vmatpush1.bf16.msra.mxu0 0
    %3474 = vmatprep.subr.bf16.mxu0 0
    %3475 = vmatpush1.bf16.msra.mxu0 0
    %3476 = vmatprep.subr.bf16.mxu0 0
    %3477 = vmatpush1.bf16.msra.mxu0 0
    %3478 = vmatprep.subr.bf16.mxu0 0
    %3479 = vmatpush1.bf16.msra.mxu0 0
    %3480 = vmatprep.subr.bf16.mxu0 0
    %3481 = vmatpush1.bf16.msra.mxu0 0
    %3482 = vmatprep.subr.bf16.mxu0 0
    %3483 = vmatpush1.bf16.msra.mxu0 0
    %3484 = vmatprep.subr.bf16.mxu0 0
    %3485 = vmatpush1.bf16.msra.mxu0 0
    %3486 = vmatprep.mubr.bf16.mxu0 0
    %3487 = vmatmul.mubr.bf16.gmra.mrb[0].mxu0 %v3380
    %v3488 = vpop.f32.mrb[0].mxu0
    %v3489 = vadd.f32 %v3404, %v3488
    %v3490 = vpop.f32.mrb[0].mxu0
    %v3491 = vpop.f32.mrb[0].mxu0
    %v3492 = vpop.f32.mrb[0].mxu0
    %3493 = vdwg.mxu0
    %v3494 = vmax.f32 %v3489, 0.0
    %v3495 = vpack.c.bf16 %v3494, %v3494
    %s3496 = scalar_lea.vmem [#allocation10], 128
    %v3497 = vld [vmem:[%s3496] sm:$0xf]
    %v3498 = vld [vmem:[%s3496 + $0x4] sm:$0xf]
    %v3499 = vld [vmem:[%s3496 + $0x8] sm:$0xf]
    %v3500 = vld [vmem:[%s3496 + $0xc] sm:$0xf]
    %v3501 = vld [vmem:[%s3496 + $0x10] sm:$0xf]
    %v3502 = vld [vmem:[%s3496 + $0x14] sm:$0xf]
    %v3503 = vld [vmem:[%s3496 + $0x18] sm:$0xf]
    %v3504 = vld [vmem:[%s3496 + $0x1c] sm:$0xf]
    %v3505 = vld [vmem:[%s3496 + $0x20] sm:$0xf]
    %v3506 = vld [vmem:[%s3496 + $0x24] sm:$0xf]
    %v3507 = vld [vmem:[%s3496 + $0x28] sm:$0xf]
    %v3508 = vld [vmem:[%s3496 + $0x2c] sm:$0xf]
    %v3509 = vld [vmem:[%s3496 + $0x30] sm:$0xf]
    %v3510 = vld [vmem:[%s3496 + $0x34] sm:$0xf]
    %v3511 = vld [vmem:[%s3496 + $0x38] sm:$0xf]
    %v3512 = vld [vmem:[%s3496 + $0x3c] sm:$0xf]
    %s3513 = scalar_lea.vmem %s10, 2
    %v3514 = vld [vmem:[%s3513] sm:$0x1]
    %v3516 = vlaneseq
    %v3517 = vshrl.u32 %v3516, 7
    %v3518 = vsub.s32 0, %v3517
    %v3519 = vrot.slane %v3514, %v3518
    %v3537 = vunpack.c.l.b16 %v3497
    %v3538 = vunpack.c.l.b16 %v3498
    %v3539 = vunpack.c.l.b16 %v3499
    %v3540 = vunpack.c.l.b16 %v3500
    %v3541 = vunpack.c.l.b16 %v3501
    %v3542 = vunpack.c.l.b16 %v3502
    %v3543 = vunpack.c.l.b16 %v3503
    %v3544 = vunpack.c.l.b16 %v3504
    %v3545 = vunpack.c.l.b16 %v3505
    %v3546 = vunpack.c.l.b16 %v3506
    %v3547 = vunpack.c.l.b16 %v3507
    %v3548 = vunpack.c.l.b16 %v3508
    %v3549 = vunpack.c.l.b16 %v3509
    %v3550 = vunpack.c.l.b16 %v3510
    %v3551 = vunpack.c.l.b16 %v3511
    %v3552 = vunpack.c.l.b16 %v3512
    %v3553 = vpack.c.b16 %v3538, %v3537
    %v3554 = vpack.c.b16 %v3540, %v3539
    %v3555 = vpack.c.b16 %v3542, %v3541
    %v3556 = vpack.c.b16 %v3544, %v3543
    %v3557 = vpack.c.b16 %v3546, %v3545
    %v3558 = vpack.c.b16 %v3548, %v3547
    %v3559 = vpack.c.b16 %v3550, %v3549
    %v3560 = vpack.c.b16 %v3552, %v3551
    %3569 = vmatprep.subr.bf16.mxu0 0
    %3570 = vmatpush1.bf16.msra.mxu0 %v3553
    %3571 = vmatprep.subr.bf16.mxu0 0
    %3572 = vmatpush1.bf16.msra.mxu0 %v3554
    %3573 = vmatprep.subr.bf16.mxu0 0
    %3574 = vmatpush1.bf16.msra.mxu0 %v3555
    %3575 = vmatprep.subr.bf16.mxu0 0
    %3576 = vmatpush1.bf16.msra.mxu0 %v3556
    %3577 = vmatprep.subr.bf16.mxu0 0
    %3578 = vmatpush1.bf16.msra.mxu0 %v3557
    %3579 = vmatprep.subr.bf16.mxu0 0
    %3580 = vmatpush1.bf16.msra.mxu0 %v3558
    %3581 = vmatprep.subr.bf16.mxu0 0
    %3582 = vmatpush1.bf16.msra.mxu0 %v3559
    %3583 = vmatprep.subr.bf16.mxu0 0
    %3584 = vmatpush1.bf16.msra.mxu0 %v3560
    %3585 = vmatprep.subr.bf16.mxu0 0
    %3586 = vmatpush1.bf16.msra.mxu0 0
    %3587 = vmatprep.subr.bf16.mxu0 0
    %3588 = vmatpush1.bf16.msra.mxu0 0
    %3589 = vmatprep.subr.bf16.mxu0 0
    %3590 = vmatpush1.bf16.msra.mxu0 0
    %3591 = vmatprep.subr.bf16.mxu0 0
    %3592 = vmatpush1.bf16.msra.mxu0 0
    %3593 = vmatprep.subr.bf16.mxu0 0
    %3594 = vmatpush1.bf16.msra.mxu0 0
    %3595 = vmatprep.subr.bf16.mxu0 0
    %3596 = vmatpush1.bf16.msra.mxu0 0
    %3597 = vmatprep.subr.bf16.mxu0 0
    %3598 = vmatpush1.bf16.msra.mxu0 0
    %3599 = vmatprep.subr.bf16.mxu0 0
    %3600 = vmatpush1.bf16.msra.mxu0 0
    %3601 = vmatprep.mubr.bf16.mxu0 0
    %3602 = vmatmul.mubr.bf16.gmra.mrb[0].mxu0 %v3495
    %v3603 = vpop.f32.mrb[0].mxu0
    %v3604 = vadd.f32 %v3519, %v3603
    %v3605 = vpop.f32.mrb[0].mxu0
    %v3606 = vpop.f32.mrb[0].mxu0
    %v3607 = vpop.f32.mrb[0].mxu0
    %3608 = vdwg.mxu0
    %v3609 = vmax.f32 %v3604, 0.0
    %v3610 = vpack.c.bf16 %v3609, %v3609
    %s3611 = scalar_lea.vmem [#allocation10], 192
    %v3612 = vld [vmem:[%s3611] sm:$0xf]
    %v3613 = vld [vmem:[%s3611 + $0x4] sm:$0xf]
    %v3614 = vld [vmem:[%s3611 + $0x8] sm:$0xf]
    %v3615 = vld [vmem:[%s3611 + $0xc] sm:$0xf]
    %v3616 = vld [vmem:[%s3611 + $0x10] sm:$0xf]
    %v3617 = vld [vmem:[%s3611 + $0x14] sm:$0xf]
    %v3618 = vld [vmem:[%s3611 + $0x18] sm:$0xf]
    %v3619 = vld [vmem:[%s3611 + $0x1c] sm:$0xf]
    %v3620 = vld [vmem:[%s3611 + $0x20] sm:$0xf]
    %v3621 = vld [vmem:[%s3611 + $0x24] sm:$0xf]
    %v3622 = vld [vmem:[%s3611 + $0x28] sm:$0xf]
    %v3623 = vld [vmem:[%s3611 + $0x2c] sm:$0xf]
    %v3624 = vld [vmem:[%s3611 + $0x30] sm:$0xf]
    %v3625 = vld [vmem:[%s3611 + $0x34] sm:$0xf]
    %v3626 = vld [vmem:[%s3611 + $0x38] sm:$0xf]
    %v3627 = vld [vmem:[%s3611 + $0x3c] sm:$0xf]
    %s3628 = scalar_lea.vmem %s10, 3
    %v3629 = vld [vmem:[%s3628] sm:$0x1]
    %v3631 = vlaneseq
    %v3632 = vshrl.u32 %v3631, 7
    %v3633 = vsub.s32 0, %v3632
    %v3634 = vrot.slane %v3629, %v3633
    %v3652 = vunpack.c.l.b16 %v3612
    %v3653 = vunpack.c.l.b16 %v3613
    %v3654 = vunpack.c.l.b16 %v3614
    %v3655 = vunpack.c.l.b16 %v3615
    %v3656 = vunpack.c.l.b16 %v3616
    %v3657 = vunpack.c.l.b16 %v3617
    %v3658 = vunpack.c.l.b16 %v3618
    %v3659 = vunpack.c.l.b16 %v3619
    %v3660 = vunpack.c.l.b16 %v3620
    %v3661 = vunpack.c.l.b16 %v3621
    %v3662 = vunpack.c.l.b16 %v3622
    %v3663 = vunpack.c.l.b16 %v3623
    %v3664 = vunpack.c.l.b16 %v3624
    %v3665 = vunpack.c.l.b16 %v3625
    %v3666 = vunpack.c.l.b16 %v3626
    %v3667 = vunpack.c.l.b16 %v3627
    %v3668 = vpack.c.b16 %v3653, %v3652
    %v3669 = vpack.c.b16 %v3655, %v3654
    %v3670 = vpack.c.b16 %v3657, %v3656
    %v3671 = vpack.c.b16 %v3659, %v3658
    %v3672 = vpack.c.b16 %v3661, %v3660
    %v3673 = vpack.c.b16 %v3663, %v3662
    %v3674 = vpack.c.b16 %v3665, %v3664
    %v3675 = vpack.c.b16 %v3667, %v3666
    %3684 = vmatprep.subr.bf16.mxu0 0
    %3685 = vmatpush1.bf16.msra.mxu0 %v3668
    %3686 = vmatprep.subr.bf16.mxu0 0
    %3687 = vmatpush1.bf16.msra.mxu0 %v3669
    %3688 = vmatprep.subr.bf16.mxu0 0
    %3689 = vmatpush1.bf16.msra.mxu0 %v3670
    %3690 = vmatprep.subr.bf16.mxu0 0
    %3691 = vmatpush1.bf16.msra.mxu0 %v3671
    %3692 = vmatprep.subr.bf16.mxu0 0
    %3693 = vmatpush1.bf16.msra.mxu0 %v3672
    %3694 = vmatprep.subr.bf16.mxu0 0
    %3695 = vmatpush1.bf16.msra.mxu0 %v3673
    %3696 = vmatprep.subr.bf16.mxu0 0
    %3697 = vmatpush1.bf16.msra.mxu0 %v3674
    %3698 = vmatprep.subr.bf16.mxu0 0
    %3699 = vmatpush1.bf16.msra.mxu0 %v3675
    %3700 = vmatprep.subr.bf16.mxu0 0
    %3701 = vmatpush1.bf16.msra.mxu0 0
    %3702 = vmatprep.subr.bf16.mxu0 0
    %3703 = vmatpush1.bf16.msra.mxu0 0
    %3704 = vmatprep.subr.bf16.mxu0 0
    %3705 = vmatpush1.bf16.msra.mxu0 0
    %3706 = vmatprep.subr.bf16.mxu0 0
    %3707 = vmatpush1.bf16.msra.mxu0 0
    %3708 = vmatprep.subr.bf16.mxu0 0
    %3709 = vmatpush1.bf16.msra.mxu0 0
    %3710 = vmatprep.subr.bf16.mxu0 0
    %3711 = vmatpush1.bf16.msra.mxu0 0
    %3712 = vmatprep.subr.bf16.mxu0 0
    %3713 = vmatpush1.bf16.msra.mxu0 0
    %3714 = vmatprep.subr.bf16.mxu0 0
    %3715 = vmatpush1.bf16.msra.mxu0 0
    %3716 = vmatprep.mubr.bf16.mxu0 0
    %3717 = vmatmul.mubr.bf16.gmra.mrb[0].mxu0 %v3610
    %v3718 = vpop.f32.mrb[0].mxu0
    %v3719 = vadd.f32 %v3634, %v3718
    %v3720 = vpop.f32.mrb[0].mxu0
    %v3721 = vpop.f32.mrb[0].mxu0
    %v3722 = vpop.f32.mrb[0].mxu0
    %3723 = vdwg.mxu0
    %v3724 = vmax.f32 %v3719, 0.0
    %v3725 = vpack.c.bf16 %v3724, %v3724
    %s3726 = scalar_lea.vmem [#allocation10], 256
    %v3727 = vld [vmem:[%s3726] sm:$0xf]
    %v3728 = vld [vmem:[%s3726 + $0x4] sm:$0xf]
    %v3729 = vld [vmem:[%s3726 + $0x8] sm:$0xf]
    %v3730 = vld [vmem:[%s3726 + $0xc] sm:$0xf]
    %v3731 = vld [vmem:[%s3726 + $0x10] sm:$0xf]
    %v3732 = vld [vmem:[%s3726 + $0x14] sm:$0xf]
    %v3733 = vld [vmem:[%s3726 + $0x18] sm:$0xf]
    %v3734 = vld [vmem:[%s3726 + $0x1c] sm:$0xf]
    %v3735 = vld [vmem:[%s3726 + $0x20] sm:$0xf]
    %v3736 = vld [vmem:[%s3726 + $0x24] sm:$0xf]
    %v3737 = vld [vmem:[%s3726 + $0x28] sm:$0xf]
    %v3738 = vld [vmem:[%s3726 + $0x2c] sm:$0xf]
    %v3739 = vld [vmem:[%s3726 + $0x30] sm:$0xf]
    %v3740 = vld [vmem:[%s3726 + $0x34] sm:$0xf]
    %v3741 = vld [vmem:[%s3726 + $0x38] sm:$0xf]
    %v3742 = vld [vmem:[%s3726 + $0x3c] sm:$0xf]
    %s3743 = scalar_lea.vmem %s10, 4
    %v3744 = vld [vmem:[%s3743] sm:$0x1]
    %v3746 = vlaneseq
    %v3747 = vshrl.u32 %v3746, 7
    %v3748 = vsub.s32 0, %v3747
    %v3749 = vrot.slane %v3744, %v3748
    %v3767 = vunpack.c.l.b16 %v3727
    %v3768 = vunpack.c.l.b16 %v3728
    %v3769 = vunpack.c.l.b16 %v3729
    %v3770 = vunpack.c.l.b16 %v3730
    %v3771 = vunpack.c.l.b16 %v3731
    %v3772 = vunpack.c.l.b16 %v3732
    %v3773 = vunpack.c.l.b16 %v3733
    %v3774 = vunpack.c.l.b16 %v3734
    %v3775 = vunpack.c.l.b16 %v3735
    %v3776 = vunpack.c.l.b16 %v3736
    %v3777 = vunpack.c.l.b16 %v3737
    %v3778 = vunpack.c.l.b16 %v3738
    %v3779 = vunpack.c.l.b16 %v3739
    %v3780 = vunpack.c.l.b16 %v3740
    %v3781 = vunpack.c.l.b16 %v3741
    %v3782 = vunpack.c.l.b16 %v3742
    %v3783 = vpack.c.b16 %v3768, %v3767
    %v3784 = vpack.c.b16 %v3770, %v3769
    %v3785 = vpack.c.b16 %v3772, %v3771
    %v3786 = vpack.c.b16 %v3774, %v3773
    %v3787 = vpack.c.b16 %v3776, %v3775
    %v3788 = vpack.c.b16 %v3778, %v3777
    %v3789 = vpack.c.b16 %v3780, %v3779
    %v3790 = vpack.c.b16 %v3782, %v3781
    %3799 = vmatprep.subr.bf16.mxu0 0
    %3800 = vmatpush1.bf16.msra.mxu0 %v3783
    %3801 = vmatprep.subr.bf16.mxu0 0
    %3802 = vmatpush1.bf16.msra.mxu0 %v3784
    %3803 = vmatprep.subr.bf16.mxu0 0
    %3804 = vmatpush1.bf16.msra.mxu0 %v3785
    %3805 = vmatprep.subr.bf16.mxu0 0
    %3806 = vmatpush1.bf16.msra.mxu0 %v3786
    %3807 = vmatprep.subr.bf16.mxu0 0
    %3808 = vmatpush1.bf16.msra.mxu0 %v3787
    %3809 = vmatprep.subr.bf16.mxu0 0
    %3810 = vmatpush1.bf16.msra.mxu0 %v3788
    %3811 = vmatprep.subr.bf16.mxu0 0
    %3812 = vmatpush1.bf16.msra.mxu0 %v3789
    %3813 = vmatprep.subr.bf16.mxu0 0
    %3814 = vmatpush1.bf16.msra.mxu0 %v3790
    %3815 = vmatprep.subr.bf16.mxu0 0
    %3816 = vmatpush1.bf16.msra.mxu0 0
    %3817 = vmatprep.subr.bf16.mxu0 0
    %3818 = vmatpush1.bf16.msra.mxu0 0
    %3819 = vmatprep.subr.bf16.mxu0 0
    %3820 = vmatpush1.bf16.msra.mxu0 0
    %3821 = vmatprep.subr.bf16.mxu0 0
    %3822 = vmatpush1.bf16.msra.mxu0 0
    %3823 = vmatprep.subr.bf16.mxu0 0
    %3824 = vmatpush1.bf16.msra.mxu0 0
    %3825 = vmatprep.subr.bf16.mxu0 0
    %3826 = vmatpush1.bf16.msra.mxu0 0
    %3827 = vmatprep.subr.bf16.mxu0 0
    %3828 = vmatpush1.bf16.msra.mxu0 0
    %3829 = vmatprep.subr.bf16.mxu0 0
    %3830 = vmatpush1.bf16.msra.mxu0 0
    %3831 = vmatprep.mubr.bf16.mxu0 0
    %3832 = vmatmul.mubr.bf16.gmra.mrb[0].mxu0 %v3725
    %v3833 = vpop.f32.mrb[0].mxu0
    %v3834 = vadd.f32 %v3749, %v3833
    %v3835 = vpop.f32.mrb[0].mxu0
    %v3836 = vpop.f32.mrb[0].mxu0
    %v3837 = vpop.f32.mrb[0].mxu0
    %3838 = vdwg.mxu0
    %3839 = vst [vmem:[#allocation11] sm:$0xff] %v3834
    // Predicated region
    $region66: #{mlp_forward.1} parent=1 // pred_check
      _
    $region67: #{mlp_forward.1} parent=1 // pred_check_branch
      %3841 = sbr.rel (0) target = $region69
    $region68: #{mlp_forward.1} parent=1 // pred_region
      %s3843 = ssub.s32 128, 128
      %3844 = vsyncadd [#allocation4], %s3843
      %s3846 = sshll.u32 [#allocation11], 4
      %s3847 = int_to_ptr.vmem [resolvable:$true] %s3846
      %3849 = dma.vmem_to_hbm [thread:$0]  %s3847, 128, %s11, [#allocation4]
    $region69: #{mlp_forward.1} parent=1 // pred_fallthru
      _
    // Predicated region
    $region70: #{mlp_forward.1} parent=1 // pred_check
      _
    $region71: #{mlp_forward.1} parent=1 // pred_check_branch
      %3851 = sbr.rel (0) target = $region73
    $region72: #{mlp_forward.1} parent=1 // pred_region
      %3852 = dma.done [#allocation4], 128
    $region73: #{mlp_forward.1} parent=1 // pred_fallthru
      _
    %3853 = vsyncpa [#allocation3], 1
    %3854 = vsyncpa [#allocation6], 1
    %3855 = vsyncpa [#allocation9], 1
    %3856 = vsyncpa [#allocation4], 1

</llo_original>
